<compile_context>
chip_gen: v6e
topology: v6e:2x2x1
jax: 0.10.0
libtpu: 0.0.40
codegen_flags: <defaults>
</compile_context>

<pallas_src>
import functools
import math

import jax
import jax.numpy as jnp
from jax.experimental import pallas as pl
from jax.experimental.pallas import tpu as pltpu


# ----------------------------------------------------------------------------- #
# Pallas kernel: fused 3x3 conv (+bias [+ReLU] [+nan_to_num]) for G images
# ----------------------------------------------------------------------------- #
def _seg_head_kernel(x_ref, w_ref, b_ref, o_ref, *,
                     G, H, W, N, N_pad, KH, KW, relu, sanitize):
    """x_ref : (G, C, H*W)        f32   NCHW activations, spatially flattened
       w_ref : (KH*KW*N_pad, C)   bf16  all taps (+ both heads) stacked on M
       b_ref : (N_pad, 1)         f32   bias (heads concatenated, zero-padded)
       o_ref : (G, N, H*W)        f32   NCHW logits, spatially flattened"""
    HW = H * W

    # W-border validity masks (depend only on the output column).  Computed
    # once per grid step and shared by all G images / all taps.
    col = jax.lax.broadcasted_iota(jnp.int32, (1, HW), 1)
    w_idx = col % W
    w_masks = {}
    for dj in range(-(KW // 2), KW - KW // 2):
        if dj == 0:
            continue
        valid = (w_idx + dj >= 0) & (w_idx + dj < W)
        w_masks[dj] = valid.astype(jnp.float32)

    for g in range(G):
        x = x_ref[g]                                     # (C, HW) f32
        if sanitize:                                     # torch.nan_to_num(x, 0, 1000, -1000)
            x = jnp.where(jnp.isnan(x), 0.0, x)
            x = jnp.where(x == jnp.inf, 1000.0, x)
            x = jnp.where(x == -jnp.inf, -1000.0, x)
        xb = x.astype(jnp.bfloat16)

        # Single MXU matmul: every (tap, out-channel) row vs. all H*W columns.
        y = jnp.dot(w_ref[...], xb,
                    preferred_element_type=jnp.float32)  # (KH*KW*N_pad, HW) f32

        acc = jnp.zeros((N_pad, HW), jnp.float32)
        for i in range(KH):
            di = i - KH // 2
            for j in range(KW):
                dj = j - KW // 2
                t = i * KW + j
                z = y[t * N_pad:(t + 1) * N_pad, :]      # aligned sublane slice
                s = di * W + dj                          # flattened spatial shift
                if s > 0:                                # pull from hw+s, zero tail
                    z = jnp.concatenate(
                        [z[:, s:], jnp.zeros((N_pad, s), jnp.float32)], axis=1)
                elif s < 0:                              # pull from hw+s, zero head
                    z = jnp.concatenate(
                        [jnp.zeros((N_pad, -s), jnp.float32), z[:, :HW + s]], axis=1)
                if dj != 0:                              # kill row wrap at W border
                    z = z * w_masks[dj]
                acc = acc + z

        acc = acc + b_ref[...]                           # (N_pad,1) lane-broadcast
        if relu:
            acc = jnp.maximum(acc, 0.0)
        if sanitize:
            # torch.nan_to_num(out, 0, 1000, -1000); -inf branch dead after ReLU.
            acc = jnp.where(jnp.isnan(acc), 0.0, acc)
            acc = jnp.where(acc == jnp.inf, 1000.0, acc)
            if not relu:
                acc = jnp.where(acc == -jnp.inf, -1000.0, acc)

        o_ref[g] = acc[:N, :]


# ----------------------------------------------------------------------------- #
# Wrapper: BevSegHead.forward
# ----------------------------------------------------------------------------- #
def bev_seg_head_forward(x, params, *, target, b, l):
    """x: (b*l, C, H, W) float32 NCHW  ->  {'static_seg', 'dynamic_seg'} (b,l,c,H,W)."""
    BL, C, H, W = x.shape
    HW = H * W

    if target == 'dynamic':                # plain Conv2d, no ReLU, no nan_to_num
        w_t, bias = params['dynamic']['w'], params['dynamic']['b']
        relu = sanitize = False
    elif target == 'static':
        w_t, bias = params['static']['w'], params['static']['b']
        relu = sanitize = False
    else:                                  # 'both': Sequential(Conv2d, ReLU) per head
        w_t = jnp.concatenate([params['dynamic']['w'], params['static']['w']], axis=0)
        bias = jnp.concatenate([params['dynamic']['b'], params['static']['b']], axis=0)
        relu = sanitize = True

    N, _, KH, KW = w_t.shape
    N_pad = ((N + 7) // 8) * 8             # pad per-tap row group to a sublane tile

    # Weights: (N, C, KH, KW) -> rows [(i*KW+j)*N_pad + n, c] = w[n, c, i, j], bf16.
    w_perm = jnp.transpose(w_t, (2, 3, 0, 1))                    # (KH, KW, N, C)
    w_perm = jnp.pad(w_perm, ((0, 0), (0, 0), (0, N_pad - N), (0, 0)))
    w_mat = w_perm.reshape(KH * KW * N_pad, C).astype(jnp.bfloat16)
    b_col = jnp.pad(bias.astype(jnp.float32), (0, N_pad - N)).reshape(N_pad, 1)

    # Free metadata reshape: NCHW -> (BL, C, H*W); no transpose, pad or cast here.
    x_flat = x.reshape(BL, C, HW)

    G = 2 if BL % 2 == 0 else 1            # images per grid step (even grid for v7x)
    grid = (BL // G,)

    kernel = functools.partial(_seg_head_kernel, G=G, H=H, W=W, N=N, N_pad=N_pad,
                               KH=KH, KW=KW, relu=relu, sanitize=sanitize)

    out = pl.pallas_call(
        kernel,
        out_shape=jax.ShapeDtypeStruct((BL, N, HW), jnp.float32),
        grid=grid,
        in_specs=[
            pl.BlockSpec((G, C, HW), lambda g: (g, 0, 0)),
            pl.BlockSpec((KH * KW * N_pad, C), lambda g: (0, 0)),
            pl.BlockSpec((N_pad, 1), lambda g: (0, 0)),
        ],
        out_specs=pl.BlockSpec((G, N, HW), lambda g: (g, 0, 0)),
        compiler_params=pltpu.CompilerParams(
            dimension_semantics=("parallel",)),
        cost_estimate=pl.CostEstimate(
            flops=2 * BL * KH * KW * N * C * HW,
            transcendentals=0,
            bytes_accessed=BL * C * HW * 4 + KH * KW * N_pad * C * 2
                           + N_pad * 4 + BL * N * HW * 4),
    )(x_flat, w_mat, b_col)

    out_nchw = out.reshape(BL, N, H, W)    # free reshape: already channel-major

    if target == 'dynamic':
        dyn = out_nchw.reshape(b, l, N, H, W)
        stat = jnp.zeros_like(dyn)
    elif target == 'static':
        stat = out_nchw.reshape(b, l, N, H, W)
        dyn = jnp.zeros_like(stat)
    else:
        cd = params['dynamic']['w'].shape[0]
        dyn = out_nchw[:, :cd].reshape(b, l, cd, H, W)
        stat = out_nchw[:, cd:].reshape(b, l, N - cd, H, W)
    # TODO(synk): torch's in-graph `assert torch.isfinite(...).all()` has no Pallas
    # equivalent; finiteness follows from the fused nan_to_num epilogue and is
    # re-checked host-side in the test harness below.
    return {'static_seg': stat, 'dynamic_seg': dyn}


# ----------------------------------------------------------------------------- #
# Pure-JAX f32 reference (mirrors the torch module) for correctness checking
# ----------------------------------------------------------------------------- #
def reference_forward(x, params, target, b, l):
    def conv(inp, w, bias):
        y = jax.lax.conv_general_dilated(
            inp, w, window_strides=(1, 1), padding='SAME',
            dimension_numbers=('NCHW', 'OIHW', 'NCHW'),
            precision=jax.lax.Precision.HIGHEST)
        return y + bias[None, :, None, None]

    _, _, H, W = x.shape
    if target == 'dynamic':
        dyn = conv(x, params['dynamic']['w'], params['dynamic']['b']).reshape(b, l, -1, H, W)
        stat = jnp.zeros_like(dyn)
    elif target == 'static':
        stat = conv(x, params['static']['w'], params['static']['b']).reshape(b, l, -1, H, W)
        dyn = jnp.zeros_like(stat)
    else:
        xs = jnp.nan_to_num(x, nan=0.0, posinf=1000.0, neginf=-1000.0)
        dyn = jax.nn.relu(conv(xs, params['dynamic']['w'], params['dynamic']['b']))
        dyn = jnp.nan_to_num(dyn, nan=0.0, posinf=1000.0, neginf=-1000.0).reshape(b, l, -1, H, W)
        stat = jax.nn.relu(conv(xs, params['static']['w'], params['static']['b']))
        stat = jnp.nan_to_num(stat, nan=0.0, posinf=1000.0, neginf=-1000.0).reshape(b, l, -1, H, W)
    return {'static_seg': stat, 'dynamic_seg': dyn}


# ----------------------------------------------------------------------------- #
if __name__ == "__main__":
    key = jax.random.PRNGKey(0)
    kx, kwd, kbd, kws, kbs = jax.random.split(key, 5)

    b, l = 2, 2                          # rearrange '(b l) c h w -> b l c h w'
    input_dim, H, W = 128, 32, 32        # lane/sublane friendly small BEV head
    dyn_classes, stat_classes = 3, 3
    BL = b * l

    fan = input_dim * 3 * 3
    params = {
        'dynamic': {
            'w': jax.random.normal(kwd, (dyn_classes, input_dim, 3, 3), jnp.float32)
                 / math.sqrt(fan),
            'b': jax.random.normal(kbd, (dyn_classes,), jnp.float32) * 0.01,
        },
        'static': {
            'w': jax.random.normal(kws, (stat_classes, input_dim, 3, 3), jnp.float32)
                 / math.sqrt(fan),
            'b': jax.random.normal(kbs, (stat_classes,), jnp.float32) * 0.01,
        },
    }

    x = jax.random.normal(kx, (BL, input_dim, H, W), jnp.float32)
    # Exercise the nan_to_num path of the 'both' branch.
    x = x.at[0, 0, 0, 0].set(jnp.nan)
    x = x.at[0, 1, 3, 4].set(jnp.inf)
    x = x.at[1, 2, 5, 6].set(-jnp.inf)

    fwd = jax.jit(bev_seg_head_forward, static_argnames=('target', 'b', 'l'))

    # --- 'both' path (Conv + ReLU + nan_to_num, fused two-head kernel) ------- #
    out = jax.block_until_ready(fwd(x, params, target='both', b=b, l=l))
    ref = reference_forward(x, params, 'both', b, l)
    for name, n_cls in (('dynamic_seg', dyn_classes), ('static_seg', stat_classes)):
        assert out[name].shape == (b, l, n_cls, H, W), (name, out[name].shape)
        assert bool(jnp.all(jnp.isfinite(out[name]))), name
        err = float(jnp.max(jnp.abs(out[name] - ref[name])))
        assert bool(jnp.allclose(out[name], ref[name], atol=1e-1, rtol=5e-2)), (name, err)

    # --- 'dynamic'-only path (plain Conv2d, no ReLU / nan_to_num) ------------ #
    x_clean = jax.random.normal(kx, (BL, input_dim, H, W), jnp.float32)
    out_d = jax.block_until_ready(fwd(x_clean, params, target='dynamic', b=b, l=l))
    ref_d = reference_forward(x_clean, params, 'dynamic', b, l)
    err_d = float(jnp.max(jnp.abs(out_d['dynamic_seg'] - ref_d['dynamic_seg'])))
    assert bool(jnp.allclose(out_d['dynamic_seg'], ref_d['dynamic_seg'],
                             atol=1e-1, rtol=5e-2)), err_d
    assert bool(jnp.all(out_d['static_seg'] == 0))

    print("KERNEL_OK")
</pallas_src>

<mosaic_0001>
module attributes {stable_mosaic.version = 11 : i64} {
  func.func @_seg_head_kernel(%arg0: i32, %arg1: memref<2x128x1024xf32, #tpu.memory_space<vmem>>, %arg2: memref<72x128xbf16, #tpu.memory_space<vmem>>, %arg3: memref<8x1xf32, #tpu.memory_space<vmem>>, %arg4: memref<2x6x1024xf32, #tpu.memory_space<vmem>>) attributes {dimension_semantics = [#tpu.dimension_semantics<parallel>], iteration_bounds = array<i64: 2>, scalar_prefetch = 0 : i64, scratch_operands = 0 : i64, tpu.core_type = #tpu.core_type<tc>, window_params = [{transform_indices = @transform_0, window_bounds = array<i64: 2, 128, 1024>}, {pipeline_mode = #tpu.pipeline_mode<synchronous>, transform_indices = @transform_1, window_bounds = array<i64: 72, 128>}, {pipeline_mode = #tpu.pipeline_mode<synchronous>, transform_indices = @transform_2, window_bounds = array<i64: 8, 1>}, {transform_indices = @transform_3, window_bounds = array<i64: 2, 6, 1024>}]} {
    %0 = tpu.iota {dimensions = array<i32: 1>} : vector<1x1024xi32>
    %c32_i32 = arith.constant 32 : i32
    %c0_i32 = arith.constant 0 : i32
    %1 = arith.cmpi eq, %c32_i32, %c0_i32 : i32
    %c1_i32 = arith.constant 1 : i32
    %2 = arith.select %1, %c1_i32, %c32_i32 : i32
    %3 = vector.broadcast %2 : i32 to vector<1x1024xi32>
    %4 = arith.remsi %0, %3 : vector<1x1024xi32>
    %c0_i32_0 = arith.constant 0 : i32
    %5 = vector.broadcast %c0_i32_0 : i32 to vector<1x1024xi32>
    %6 = arith.cmpi ne, %4, %5 : vector<1x1024xi32>
    %c0_i32_1 = arith.constant 0 : i32
    %7 = vector.broadcast %c0_i32_1 : i32 to vector<1x1024xi32>
    %8 = arith.cmpi slt, %4, %7 : vector<1x1024xi32>
    %c0_i32_2 = arith.constant 0 : i32
    %9 = arith.cmpi slt, %2, %c0_i32_2 : i32
    %10 = vector.broadcast %9 : i1 to vector<1x1024xi1>
    %11 = vector.broadcast %10 : vector<1x1024xi1> to vector<1x1024xi1>
    %12 = arith.xori %8, %11 : vector<1x1024xi1>
    %13 = arith.andi %12, %6 : vector<1x1024xi1>
    %14 = vector.broadcast %2 : i32 to vector<1x1024xi32>
    %15 = arith.addi %4, %14 : vector<1x1024xi32>
    %16 = arith.select %13, %15, %4 : vector<1x1024xi1>, vector<1x1024xi32>
    %c-1_i32 = arith.constant -1 : i32
    %17 = vector.broadcast %c-1_i32 : i32 to vector<1x1024xi32>
    %18 = arith.addi %16, %17 : vector<1x1024xi32>
    %c0_i32_3 = arith.constant 0 : i32
    %19 = vector.broadcast %c0_i32_3 : i32 to vector<1x1024xi32>
    %20 = arith.cmpi sge, %18, %19 : vector<1x1024xi32>
    %c-1_i32_4 = arith.constant -1 : i32
    %21 = vector.broadcast %c-1_i32_4 : i32 to vector<1x1024xi32>
    %22 = arith.addi %16, %21 : vector<1x1024xi32>
    %c32_i32_5 = arith.constant 32 : i32
    %23 = vector.broadcast %c32_i32_5 : i32 to vector<1x1024xi32>
    %24 = arith.cmpi slt, %22, %23 : vector<1x1024xi32>
    %25 = arith.andi %20, %24 : vector<1x1024xi1>
    %26 = arith.extui %25 : vector<1x1024xi1> to vector<1x1024xi32>
    %27 = arith.sitofp %26 : vector<1x1024xi32> to vector<1x1024xf32>
    %c1_i32_6 = arith.constant 1 : i32
    %28 = vector.broadcast %c1_i32_6 : i32 to vector<1x1024xi32>
    %29 = arith.addi %16, %28 : vector<1x1024xi32>
    %c0_i32_7 = arith.constant 0 : i32
    %30 = vector.broadcast %c0_i32_7 : i32 to vector<1x1024xi32>
    %31 = arith.cmpi sge, %29, %30 : vector<1x1024xi32>
    %c1_i32_8 = arith.constant 1 : i32
    %32 = vector.broadcast %c1_i32_8 : i32 to vector<1x1024xi32>
    %33 = arith.addi %16, %32 : vector<1x1024xi32>
    %c32_i32_9 = arith.constant 32 : i32
    %34 = vector.broadcast %c32_i32_9 : i32 to vector<1x1024xi32>
    %35 = arith.cmpi slt, %33, %34 : vector<1x1024xi32>
    %36 = arith.andi %31, %35 : vector<1x1024xi1>
    %37 = arith.extui %36 : vector<1x1024xi1> to vector<1x1024xi32>
    %38 = arith.sitofp %37 : vector<1x1024xi32> to vector<1x1024xf32>
    %c0 = arith.constant 0 : index
    %c0_10 = arith.constant 0 : index
    %c0_11 = arith.constant 0 : index
    %39 = vector.load %arg1[%c0, %c0_10, %c0_11] : memref<2x128x1024xf32, #tpu.memory_space<vmem>>, vector<1x128x1024xf32>
    %40 = vector.shape_cast %39 : vector<1x128x1024xf32> to vector<128x1024xf32>
    %41 = arith.cmpf one, %40, %40 : vector<128x1024xf32>
    %cst = arith.constant 0.000000e+00 : f32
    %42 = vector.broadcast %cst : f32 to vector<128x1024xf32>
    %43 = arith.select %41, %42, %40 : vector<128x1024xi1>, vector<128x1024xf32>
    %cst_12 = arith.constant 0x7F800000 : f32
    %44 = vector.broadcast %cst_12 : f32 to vector<128x1024xf32>
    %45 = arith.cmpf oeq, %43, %44 : vector<128x1024xf32>
    %cst_13 = arith.constant 1.000000e+03 : f32
    %46 = vector.broadcast %cst_13 : f32 to vector<128x1024xf32>
    %47 = arith.select %45, %46, %43 : vector<128x1024xi1>, vector<128x1024xf32>
    %cst_14 = arith.constant 0xFF800000 : f32
    %48 = vector.broadcast %cst_14 : f32 to vector<128x1024xf32>
    %49 = arith.cmpf oeq, %47, %48 : vector<128x1024xf32>
    %cst_15 = arith.constant -1.000000e+03 : f32
    %50 = vector.broadcast %cst_15 : f32 to vector<128x1024xf32>
    %51 = arith.select %49, %50, %47 : vector<128x1024xi1>, vector<128x1024xf32>
    %52 = arith.truncf %51 : vector<128x1024xf32> to vector<128x1024xbf16>
    %c0_16 = arith.constant 0 : index
    %c0_17 = arith.constant 0 : index
    %53 = vector.load %arg2[%c0_16, %c0_17] : memref<72x128xbf16, #tpu.memory_space<vmem>>, vector<72x128xbf16>
    %cst_18 = arith.constant dense<0.000000e+00> : vector<72x1024xf32>
    %54 = tpu.matmul %53, %52, %cst_18 {dimension_numbers = #tpu.dot_dimension_numbers<[1], [0], [0], [1], [0, 0, 1, 1], [], []>} : vector<72x128xbf16>, vector<128x1024xbf16>, vector<72x1024xf32> -> vector<72x1024xf32>
    %cst_19 = arith.constant 0.000000e+00 : f32
    %55 = vector.broadcast %cst_19 : f32 to vector<8x1024xf32>
    %56 = vector.extract_strided_slice %54 {offsets = [0, 0], sizes = [8, 1024], strides = [1, 1]} : vector<72x1024xf32> to vector<8x1024xf32>
    %cst_20 = arith.constant 0.000000e+00 : f32
    %57 = vector.broadcast %cst_20 : f32 to vector<8x33xf32>
    %58 = vector.extract_strided_slice %56 {offsets = [0, 0], sizes = [8, 991], strides = [1, 1]} : vector<8x1024xf32> to vector<8x991xf32>
    %59 = tpu.concatenate %57, %58 in 1 : vector<8x33xf32>, vector<8x991xf32> -> vector<8x1024xf32>
    %60 = vector.broadcast %27 : vector<1x1024xf32> to vector<8x1024xf32>
    %61 = arith.mulf %59, %60 : vector<8x1024xf32>
    %62 = arith.addf %55, %61 : vector<8x1024xf32>
    %63 = vector.extract_strided_slice %54 {offsets = [8, 0], sizes = [8, 1024], strides = [1, 1]} : vector<72x1024xf32> to vector<8x1024xf32>
    %cst_21 = arith.constant 0.000000e+00 : f32
    %64 = vector.broadcast %cst_21 : f32 to vector<8x32xf32>
    %65 = vector.extract_strided_slice %63 {offsets = [0, 0], sizes = [8, 992], strides = [1, 1]} : vector<8x1024xf32> to vector<8x992xf32>
    %66 = tpu.concatenate %64, %65 in 1 : vector<8x32xf32>, vector<8x992xf32> -> vector<8x1024xf32>
    %67 = arith.addf %62, %66 : vector<8x1024xf32>
    %68 = vector.extract_strided_slice %54 {offsets = [16, 0], sizes = [8, 1024], strides = [1, 1]} : vector<72x1024xf32> to vector<8x1024xf32>
    %cst_22 = arith.constant 0.000000e+00 : f32
    %69 = vector.broadcast %cst_22 : f32 to vector<8x31xf32>
    %70 = vector.extract_strided_slice %68 {offsets = [0, 0], sizes = [8, 993], strides = [1, 1]} : vector<8x1024xf32> to vector<8x993xf32>
    %71 = tpu.concatenate %69, %70 in 1 : vector<8x31xf32>, vector<8x993xf32> -> vector<8x1024xf32>
    %72 = vector.broadcast %38 : vector<1x1024xf32> to vector<8x1024xf32>
    %73 = arith.mulf %71, %72 : vector<8x1024xf32>
    %74 = arith.addf %67, %73 : vector<8x1024xf32>
    %75 = vector.extract_strided_slice %54 {offsets = [24, 0], sizes = [8, 1024], strides = [1, 1]} : vector<72x1024xf32> to vector<8x1024xf32>
    %cst_23 = arith.constant 0.000000e+00 : f32
    %76 = vector.broadcast %cst_23 : f32 to vector<8x1xf32>
    %77 = vector.extract_strided_slice %75 {offsets = [0, 0], sizes = [8, 1023], strides = [1, 1]} : vector<8x1024xf32> to vector<8x1023xf32>
    %78 = tpu.concatenate %76, %77 in 1 : vector<8x1xf32>, vector<8x1023xf32> -> vector<8x1024xf32>
    %79 = vector.broadcast %27 : vector<1x1024xf32> to vector<8x1024xf32>
    %80 = arith.mulf %78, %79 : vector<8x1024xf32>
    %81 = arith.addf %74, %80 : vector<8x1024xf32>
    %82 = vector.extract_strided_slice %54 {offsets = [32, 0], sizes = [8, 1024], strides = [1, 1]} : vector<72x1024xf32> to vector<8x1024xf32>
    %83 = arith.addf %81, %82 : vector<8x1024xf32>
    %84 = vector.extract_strided_slice %54 {offsets = [40, 0], sizes = [8, 1024], strides = [1, 1]} : vector<72x1024xf32> to vector<8x1024xf32>
    %85 = vector.extract_strided_slice %84 {offsets = [0, 1], sizes = [8, 1023], strides = [1, 1]} : vector<8x1024xf32> to vector<8x1023xf32>
    %cst_24 = arith.constant 0.000000e+00 : f32
    %86 = vector.broadcast %cst_24 : f32 to vector<8x1xf32>
    %87 = tpu.concatenate %85, %86 in 1 : vector<8x1023xf32>, vector<8x1xf32> -> vector<8x1024xf32>
    %88 = vector.broadcast %38 : vector<1x1024xf32> to vector<8x1024xf32>
    %89 = arith.mulf %87, %88 : vector<8x1024xf32>
    %90 = arith.addf %83, %89 : vector<8x1024xf32>
    %91 = vector.extract_strided_slice %54 {offsets = [48, 0], sizes = [8, 1024], strides = [1, 1]} : vector<72x1024xf32> to vector<8x1024xf32>
    %92 = vector.extract_strided_slice %91 {offsets = [0, 31], sizes = [8, 993], strides = [1, 1]} : vector<8x1024xf32> to vector<8x993xf32>
    %cst_25 = arith.constant 0.000000e+00 : f32
    %93 = vector.broadcast %cst_25 : f32 to vector<8x31xf32>
    %94 = tpu.concatenate %92, %93 in 1 : vector<8x993xf32>, vector<8x31xf32> -> vector<8x1024xf32>
    %95 = vector.broadcast %27 : vector<1x1024xf32> to vector<8x1024xf32>
    %96 = arith.mulf %94, %95 : vector<8x1024xf32>
    %97 = arith.addf %90, %96 : vector<8x1024xf32>
    %98 = vector.extract_strided_slice %54 {offsets = [56, 0], sizes = [8, 1024], strides = [1, 1]} : vector<72x1024xf32> to vector<8x1024xf32>
    %99 = vector.extract_strided_slice %98 {offsets = [0, 32], sizes = [8, 992], strides = [1, 1]} : vector<8x1024xf32> to vector<8x992xf32>
    %cst_26 = arith.constant 0.000000e+00 : f32
    %100 = vector.broadcast %cst_26 : f32 to vector<8x32xf32>
    %101 = tpu.concatenate %99, %100 in 1 : vector<8x992xf32>, vector<8x32xf32> -> vector<8x1024xf32>
    %102 = arith.addf %97, %101 : vector<8x1024xf32>
    %103 = vector.extract_strided_slice %54 {offsets = [64, 0], sizes = [8, 1024], strides = [1, 1]} : vector<72x1024xf32> to vector<8x1024xf32>
    %104 = vector.extract_strided_slice %103 {offsets = [0, 33], sizes = [8, 991], strides = [1, 1]} : vector<8x1024xf32> to vector<8x991xf32>
    %cst_27 = arith.constant 0.000000e+00 : f32
    %105 = vector.broadcast %cst_27 : f32 to vector<8x33xf32>
    %106 = tpu.concatenate %104, %105 in 1 : vector<8x991xf32>, vector<8x33xf32> -> vector<8x1024xf32>
    %107 = vector.broadcast %38 : vector<1x1024xf32> to vector<8x1024xf32>
    %108 = arith.mulf %106, %107 : vector<8x1024xf32>
    %109 = arith.addf %102, %108 : vector<8x1024xf32>
    %c0_28 = arith.constant 0 : index
    %c0_29 = arith.constant 0 : index
    %110 = vector.load %arg3[%c0_28, %c0_29] : memref<8x1xf32, #tpu.memory_space<vmem>>, vector<8x1xf32>
    %111 = vector.broadcast %110 : vector<8x1xf32> to vector<8x1024xf32>
    %112 = arith.addf %109, %111 : vector<8x1024xf32>
    %cst_30 = arith.constant 0.000000e+00 : f32
    %113 = vector.broadcast %cst_30 : f32 to vector<8x1024xf32>
    %114 = arith.maximumf %112, %113 : vector<8x1024xf32>
    %115 = arith.cmpf one, %114, %114 : vector<8x1024xf32>
    %cst_31 = arith.constant 0.000000e+00 : f32
    %116 = vector.broadcast %cst_31 : f32 to vector<8x1024xf32>
    %117 = arith.select %115, %116, %114 : vector<8x1024xi1>, vector<8x1024xf32>
    %cst_32 = arith.constant 0x7F800000 : f32
    %118 = vector.broadcast %cst_32 : f32 to vector<8x1024xf32>
    %119 = arith.cmpf oeq, %117, %118 : vector<8x1024xf32>
    %cst_33 = arith.constant 1.000000e+03 : f32
    %120 = vector.broadcast %cst_33 : f32 to vector<8x1024xf32>
    %121 = arith.select %119, %120, %117 : vector<8x1024xi1>, vector<8x1024xf32>
    %122 = vector.extract_strided_slice %121 {offsets = [0, 0], sizes = [6, 1024], strides = [1, 1]} : vector<8x1024xf32> to vector<6x1024xf32>
    %c0_34 = arith.constant 0 : index
    %c0_35 = arith.constant 0 : index
    %c0_36 = arith.constant 0 : index
    %123 = vector.load %arg4[%c0_34, %c0_35, %c0_36] : memref<2x6x1024xf32, #tpu.memory_space<vmem>>, vector<1x6x1024xf32>
    %124 = vector.shape_cast %123 : vector<1x6x1024xf32> to vector<6x1024xf32>
    %125 = vector.shape_cast %122 : vector<6x1024xf32> to vector<1x6x1024xf32>
    tpu.vector_store %arg4[%c0_34, %c0_35, %c0_36], %125 {strides = array<i32>} : memref<2x6x1024xf32, #tpu.memory_space<vmem>>, vector<1x6x1024xf32>,
    %c1 = arith.constant 1 : index
    %c0_37 = arith.constant 0 : index
    %c0_38 = arith.constant 0 : index
    %126 = vector.load %arg1[%c1, %c0_37, %c0_38] : memref<2x128x1024xf32, #tpu.memory_space<vmem>>, vector<1x128x1024xf32>
    %127 = vector.shape_cast %126 : vector<1x128x1024xf32> to vector<128x1024xf32>
    %128 = arith.cmpf one, %127, %127 : vector<128x1024xf32>
    %cst_39 = arith.constant 0.000000e+00 : f32
    %129 = vector.broadcast %cst_39 : f32 to vector<128x1024xf32>
    %130 = arith.select %128, %129, %127 : vector<128x1024xi1>, vector<128x1024xf32>
    %cst_40 = arith.constant 0x7F800000 : f32
    %131 = vector.broadcast %cst_40 : f32 to vector<128x1024xf32>
    %132 = arith.cmpf oeq, %130, %131 : vector<128x1024xf32>
    %cst_41 = arith.constant 1.000000e+03 : f32
    %133 = vector.broadcast %cst_41 : f32 to vector<128x1024xf32>
    %134 = arith.select %132, %133, %130 : vector<128x1024xi1>, vector<128x1024xf32>
    %cst_42 = arith.constant 0xFF800000 : f32
    %135 = vector.broadcast %cst_42 : f32 to vector<128x1024xf32>
    %136 = arith.cmpf oeq, %134, %135 : vector<128x1024xf32>
    %cst_43 = arith.constant -1.000000e+03 : f32
    %137 = vector.broadcast %cst_43 : f32 to vector<128x1024xf32>
    %138 = arith.select %136, %137, %134 : vector<128x1024xi1>, vector<128x1024xf32>
    %139 = arith.truncf %138 : vector<128x1024xf32> to vector<128x1024xbf16>
    %c0_44 = arith.constant 0 : index
    %c0_45 = arith.constant 0 : index
    %140 = vector.load %arg2[%c0_44, %c0_45] : memref<72x128xbf16, #tpu.memory_space<vmem>>, vector<72x128xbf16>
    %cst_46 = arith.constant dense<0.000000e+00> : vector<72x1024xf32>
    %141 = tpu.matmul %140, %139, %cst_46 {dimension_numbers = #tpu.dot_dimension_numbers<[1], [0], [0], [1], [0, 0, 1, 1], [], []>} : vector<72x128xbf16>, vector<128x1024xbf16>, vector<72x1024xf32> -> vector<72x1024xf32>
    %cst_47 = arith.constant 0.000000e+00 : f32
    %142 = vector.broadcast %cst_47 : f32 to vector<8x1024xf32>
    %143 = vector.extract_strided_slice %141 {offsets = [0, 0], sizes = [8, 1024], strides = [1, 1]} : vector<72x1024xf32> to vector<8x1024xf32>
    %cst_48 = arith.constant 0.000000e+00 : f32
    %144 = vector.broadcast %cst_48 : f32 to vector<8x33xf32>
    %145 = vector.extract_strided_slice %143 {offsets = [0, 0], sizes = [8, 991], strides = [1, 1]} : vector<8x1024xf32> to vector<8x991xf32>
    %146 = tpu.concatenate %144, %145 in 1 : vector<8x33xf32>, vector<8x991xf32> -> vector<8x1024xf32>
    %147 = vector.broadcast %27 : vector<1x1024xf32> to vector<8x1024xf32>
    %148 = arith.mulf %146, %147 : vector<8x1024xf32>
    %149 = arith.addf %142, %148 : vector<8x1024xf32>
    %150 = vector.extract_strided_slice %141 {offsets = [8, 0], sizes = [8, 1024], strides = [1, 1]} : vector<72x1024xf32> to vector<8x1024xf32>
    %cst_49 = arith.constant 0.000000e+00 : f32
    %151 = vector.broadcast %cst_49 : f32 to vector<8x32xf32>
    %152 = vector.extract_strided_slice %150 {offsets = [0, 0], sizes = [8, 992], strides = [1, 1]} : vector<8x1024xf32> to vector<8x992xf32>
    %153 = tpu.concatenate %151, %152 in 1 : vector<8x32xf32>, vector<8x992xf32> -> vector<8x1024xf32>
    %154 = arith.addf %149, %153 : vector<8x1024xf32>
    %155 = vector.extract_strided_slice %141 {offsets = [16, 0], sizes = [8, 1024], strides = [1, 1]} : vector<72x1024xf32> to vector<8x1024xf32>
    %cst_50 = arith.constant 0.000000e+00 : f32
    %156 = vector.broadcast %cst_50 : f32 to vector<8x31xf32>
    %157 = vector.extract_strided_slice %155 {offsets = [0, 0], sizes = [8, 993], strides = [1, 1]} : vector<8x1024xf32> to vector<8x993xf32>
    %158 = tpu.concatenate %156, %157 in 1 : vector<8x31xf32>, vector<8x993xf32> -> vector<8x1024xf32>
    %159 = vector.broadcast %38 : vector<1x1024xf32> to vector<8x1024xf32>
    %160 = arith.mulf %158, %159 : vector<8x1024xf32>
    %161 = arith.addf %154, %160 : vector<8x1024xf32>
    %162 = vector.extract_strided_slice %141 {offsets = [24, 0], sizes = [8, 1024], strides = [1, 1]} : vector<72x1024xf32> to vector<8x1024xf32>
    %cst_51 = arith.constant 0.000000e+00 : f32
    %163 = vector.broadcast %cst_51 : f32 to vector<8x1xf32>
    %164 = vector.extract_strided_slice %162 {offsets = [0, 0], sizes = [8, 1023], strides = [1, 1]} : vector<8x1024xf32> to vector<8x1023xf32>
    %165 = tpu.concatenate %163, %164 in 1 : vector<8x1xf32>, vector<8x1023xf32> -> vector<8x1024xf32>
    %166 = vector.broadcast %27 : vector<1x1024xf32> to vector<8x1024xf32>
    %167 = arith.mulf %165, %166 : vector<8x1024xf32>
    %168 = arith.addf %161, %167 : vector<8x1024xf32>
    %169 = vector.extract_strided_slice %141 {offsets = [32, 0], sizes = [8, 1024], strides = [1, 1]} : vector<72x1024xf32> to vector<8x1024xf32>
    %170 = arith.addf %168, %169 : vector<8x1024xf32>
    %171 = vector.extract_strided_slice %141 {offsets = [40, 0], sizes = [8, 1024], strides = [1, 1]} : vector<72x1024xf32> to vector<8x1024xf32>
    %172 = vector.extract_strided_slice %171 {offsets = [0, 1], sizes = [8, 1023], strides = [1, 1]} : vector<8x1024xf32> to vector<8x1023xf32>
    %cst_52 = arith.constant 0.000000e+00 : f32
    %173 = vector.broadcast %cst_52 : f32 to vector<8x1xf32>
    %174 = tpu.concatenate %172, %173 in 1 : vector<8x1023xf32>, vector<8x1xf32> -> vector<8x1024xf32>
    %175 = vector.broadcast %38 : vector<1x1024xf32> to vector<8x1024xf32>
    %176 = arith.mulf %174, %175 : vector<8x1024xf32>
    %177 = arith.addf %170, %176 : vector<8x1024xf32>
    %178 = vector.extract_strided_slice %141 {offsets = [48, 0], sizes = [8, 1024], strides = [1, 1]} : vector<72x1024xf32> to vector<8x1024xf32>
    %179 = vector.extract_strided_slice %178 {offsets = [0, 31], sizes = [8, 993], strides = [1, 1]} : vector<8x1024xf32> to vector<8x993xf32>
    %cst_53 = arith.constant 0.000000e+00 : f32
    %180 = vector.broadcast %cst_53 : f32 to vector<8x31xf32>
    %181 = tpu.concatenate %179, %180 in 1 : vector<8x993xf32>, vector<8x31xf32> -> vector<8x1024xf32>
    %182 = vector.broadcast %27 : vector<1x1024xf32> to vector<8x1024xf32>
    %183 = arith.mulf %181, %182 : vector<8x1024xf32>
    %184 = arith.addf %177, %183 : vector<8x1024xf32>
    %185 = vector.extract_strided_slice %141 {offsets = [56, 0], sizes = [8, 1024], strides = [1, 1]} : vector<72x1024xf32> to vector<8x1024xf32>
    %186 = vector.extract_strided_slice %185 {offsets = [0, 32], sizes = [8, 992], strides = [1, 1]} : vector<8x1024xf32> to vector<8x992xf32>
    %cst_54 = arith.constant 0.000000e+00 : f32
    %187 = vector.broadcast %cst_54 : f32 to vector<8x32xf32>
    %188 = tpu.concatenate %186, %187 in 1 : vector<8x992xf32>, vector<8x32xf32> -> vector<8x1024xf32>
    %189 = arith.addf %184, %188 : vector<8x1024xf32>
    %190 = vector.extract_strided_slice %141 {offsets = [64, 0], sizes = [8, 1024], strides = [1, 1]} : vector<72x1024xf32> to vector<8x1024xf32>
    %191 = vector.extract_strided_slice %190 {offsets = [0, 33], sizes = [8, 991], strides = [1, 1]} : vector<8x1024xf32> to vector<8x991xf32>
    %cst_55 = arith.constant 0.000000e+00 : f32
    %192 = vector.broadcast %cst_55 : f32 to vector<8x33xf32>
    %193 = tpu.concatenate %191, %192 in 1 : vector<8x991xf32>, vector<8x33xf32> -> vector<8x1024xf32>
    %194 = vector.broadcast %38 : vector<1x1024xf32> to vector<8x1024xf32>
    %195 = arith.mulf %193, %194 : vector<8x1024xf32>
    %196 = arith.addf %189, %195 : vector<8x1024xf32>
    %c0_56 = arith.constant 0 : index
    %c0_57 = arith.constant 0 : index
    %197 = vector.load %arg3[%c0_56, %c0_57] : memref<8x1xf32, #tpu.memory_space<vmem>>, vector<8x1xf32>
    %198 = vector.broadcast %197 : vector<8x1xf32> to vector<8x1024xf32>
    %199 = arith.addf %196, %198 : vector<8x1024xf32>
    %cst_58 = arith.constant 0.000000e+00 : f32
    %200 = vector.broadcast %cst_58 : f32 to vector<8x1024xf32>
    %201 = arith.maximumf %199, %200 : vector<8x1024xf32>
    %202 = arith.cmpf one, %201, %201 : vector<8x1024xf32>
    %cst_59 = arith.constant 0.000000e+00 : f32
    %203 = vector.broadcast %cst_59 : f32 to vector<8x1024xf32>
    %204 = arith.select %202, %203, %201 : vector<8x1024xi1>, vector<8x1024xf32>
    %cst_60 = arith.constant 0x7F800000 : f32
    %205 = vector.broadcast %cst_60 : f32 to vector<8x1024xf32>
    %206 = arith.cmpf oeq, %204, %205 : vector<8x1024xf32>
    %cst_61 = arith.constant 1.000000e+03 : f32
    %207 = vector.broadcast %cst_61 : f32 to vector<8x1024xf32>
    %208 = arith.select %206, %207, %204 : vector<8x1024xi1>, vector<8x1024xf32>
    %209 = vector.extract_strided_slice %208 {offsets = [0, 0], sizes = [6, 1024], strides = [1, 1]} : vector<8x1024xf32> to vector<6x1024xf32>
    %c1_62 = arith.constant 1 : index
    %c0_63 = arith.constant 0 : index
    %c0_64 = arith.constant 0 : index
    %210 = vector.load %arg4[%c1_62, %c0_63, %c0_64] : memref<2x6x1024xf32, #tpu.memory_space<vmem>>, vector<1x6x1024xf32>
    %211 = vector.shape_cast %210 : vector<1x6x1024xf32> to vector<6x1024xf32>
    %212 = vector.shape_cast %209 : vector<6x1024xf32> to vector<1x6x1024xf32>
    tpu.vector_store %arg4[%c1_62, %c0_63, %c0_64], %212 {strides = array<i32>} : memref<2x6x1024xf32, #tpu.memory_space<vmem>>, vector<1x6x1024xf32>,
    return
  }
  func.func @transform_0(%arg0: i32) -> (i32, i32, i32) {
    %c0_i32 = arith.constant 0 : i32
    %c0_i32_0 = arith.constant 0 : i32
    %c0_i32_1 = arith.constant 0 : i32
    return %arg0, %c0_i32, %c0_i32_0 : i32, i32, i32
  }
  func.func @transform_1(%arg0: i32) -> (i32, i32) {
    %c0_i32 = arith.constant 0 : i32
    %c0_i32_0 = arith.constant 0 : i32
    %c0_i32_1 = arith.constant 0 : i32
    return %c0_i32, %c0_i32_0 : i32, i32
  }
  func.func @transform_2(%arg0: i32) -> (i32, i32) {
    %c0_i32 = arith.constant 0 : i32
    %c0_i32_0 = arith.constant 0 : i32
    %c0_i32_1 = arith.constant 0 : i32
    return %c0_i32, %c0_i32_0 : i32, i32
  }
  func.func @transform_3(%arg0: i32) -> (i32, i32, i32) {
    %c0_i32 = arith.constant 0 : i32
    %c0_i32_0 = arith.constant 0 : i32
    %c0_i32_1 = arith.constant 0 : i32
    return %arg0, %c0_i32, %c0_i32_0 : i32, i32, i32
  }
}

</mosaic_0001>

<llo_original>
// kernel: bev_seg_head_forward.1
$region0: #{bev_seg_head_forward.1}
  #allocation0 [shape = 'u32[]', space=smem, size = 0x4, offset = 0x4, fixed_abs, tag = 'smem constant byte address 0x4 - core index']
  #allocation1 [shape = 'u32[144,128]{1,0:T(1,128)}', space=vmem, size = 0x12000, scoped, tag = 'internal scratch']
  %s0 = inlined_call_operand.vmem [shape: f32[4,128,1024], index: 0, kind: input, shape index: {}]
  %s1 = inlined_call_operand.vmem [shape: bf16[72,128], index: 1, kind: input, shape index: {}]
  %s2 = inlined_call_operand.vmem [shape: f32[8,1], index: 2, kind: input, shape index: {}]
  %s3 = inlined_call_operand.vmem [shape: f32[4,6,1024], index: 3, kind: output, shape index: {}]
  %s4 = sld [smem:[#allocation0]]
  $region45: #{bev_seg_head_forward.1} parent=0
    _
  %s6 = ssub.s32 1, %s4
  %s7 = scalar_select 0, %s6, %s4
  loop: start=0, step=1, limit=4
  $region2: #{bev_seg_head_forward.1} parent=0 // loop_pre_header
    _
  $region3: #{bev_seg_head_forward.1} parent=0 // loop_header
    %s9 = sphi 0, %s13
    %p10 = scmp.ge.s32.totalorder %s9, 4
    %s19 = sphi 0, %s21
    %s22 = sphi 0, %s19
    %s23 = sphi 0, %s22
    %s39 = sphi 0, %s23
    %s43 = sphi 0, %s43
    %s45 = sphi 0, %s43
    %s46 = sphi 0, %s45
    %s60 = sphi 0, %s46
    %s64 = sphi 0, %s64
    %s66 = sphi 0, %s64
    %s67 = sphi 0, %s66
    %s81 = sphi 0, %s67
    %s87 = sphi 0, %s89
    %s90 = sphi 0, %s87
    %s91 = sphi 0, %s90
    %s107 = sphi 0, %s91
  $region4: #{bev_seg_head_forward.1} parent=0 // loop_header_branch
    %12 = sbr.rel (%p10) target = $region8
  $region5: #{bev_seg_head_forward.1} parent=0 // loop_body
    %s14 = ssub.s32 %s9, 1
    %s15 = ssub.s32 %s9, 2
    %s16 = sadd.s32 %s9, 1
    %s17 = ssub.s32 %s9, %s16
    %p18 = scmp.eq.s32.totalorder %s17, 0
    %s20 = sadd.s32 %s19, 1
    %s21 = scalar_select %p18, %s19, %s20
    %p24 = pneg %p18
    %p25 = scmp.eq.s32.totalorder %s9, 1
    %p26 = por %p24, %p25
    %p27 = scmp.ne.s32.totalorder %s19, %s22
    %p28 = scmp.eq.s32.totalorder %s9, 0
    %p29 = por %p27, %p28
    %p30 = scmp.ne.s32.totalorder %s19, %s22
    %p31 = scmp.eq.s32.totalorder %s14, 1
    %p32 = por %p30, %p31
    %p33 = scmp.ne.s32.totalorder %s22, %s23
    %p34 = scmp.eq.s32.totalorder %s14, 0
    %p35 = por %p33, %p34
    %p36 = scmp.ne.s32.totalorder %s22, %s23
    %p37 = scmp.eq.s32.totalorder %s15, 1
    %p38 = por %p36, %p37
    %p40 = scmp.ne.s32.totalorder %s23, %s39
    %p41 = scmp.eq.s32.totalorder %s15, 0
    %p42 = por %p40, %p41
    %s44 = sadd.s32 %s43, 1
    %p47 = scmp.eq.s32.totalorder %s9, 1
    %p48 = scmp.ne.s32.totalorder %s43, %s45
    %p49 = scmp.eq.s32.totalorder %s9, 0
    %p50 = por %p48, %p49
    %p51 = scmp.ne.s32.totalorder %s43, %s45
    %p52 = scmp.eq.s32.totalorder %s14, 1
    %p53 = por %p51, %p52
    %p54 = scmp.ne.s32.totalorder %s45, %s46
    %p55 = scmp.eq.s32.totalorder %s14, 0
    %p56 = por %p54, %p55
    %p57 = scmp.ne.s32.totalorder %s45, %s46
    %p58 = scmp.eq.s32.totalorder %s15, 1
    %p59 = por %p57, %p58
    %p61 = scmp.ne.s32.totalorder %s46, %s60
    %p62 = scmp.eq.s32.totalorder %s15, 0
    %p63 = por %p61, %p62
    %s65 = sadd.s32 %s64, 1
    %p68 = scmp.eq.s32.totalorder %s9, 1
    %p69 = scmp.ne.s32.totalorder %s64, %s66
    %p70 = scmp.eq.s32.totalorder %s9, 0
    %p71 = por %p69, %p70
    %p72 = scmp.ne.s32.totalorder %s64, %s66
    %p73 = scmp.eq.s32.totalorder %s14, 1
    %p74 = por %p72, %p73
    %p75 = scmp.ne.s32.totalorder %s66, %s67
    %p76 = scmp.eq.s32.totalorder %s14, 0
    %p77 = por %p75, %p76
    %p78 = scmp.ne.s32.totalorder %s66, %s67
    %p79 = scmp.eq.s32.totalorder %s15, 1
    %p80 = por %p78, %p79
    %p82 = scmp.ne.s32.totalorder %s67, %s81
    %p83 = scmp.eq.s32.totalorder %s15, 0
    %p84 = por %p82, %p83
    %s85 = ssub.s32 %s9, %s16
    %p86 = scmp.eq.s32.totalorder %s85, 0
    %s88 = sadd.s32 %s87, 1
    %s89 = scalar_select %p86, %s87, %s88
    %p92 = pneg %p86
    %p93 = scmp.eq.s32.totalorder %s9, 1
    %p94 = por %p92, %p93
    %p95 = scmp.ne.s32.totalorder %s87, %s90
    %p96 = scmp.eq.s32.totalorder %s9, 0
    %p97 = por %p95, %p96
    %p98 = scmp.ne.s32.totalorder %s87, %s90
    %p99 = scmp.eq.s32.totalorder %s14, 1
    %p100 = por %p98, %p99
    %p101 = scmp.ne.s32.totalorder %s90, %s91
    %p102 = scmp.eq.s32.totalorder %s14, 0
    %p103 = por %p101, %p102
    %p104 = scmp.ne.s32.totalorder %s90, %s91
    %p105 = scmp.eq.s32.totalorder %s15, 1
    %p106 = por %p104, %p105
    %p108 = scmp.ne.s32.totalorder %s91, %s107
    %p109 = scmp.eq.s32.totalorder %s15, 0
    %p110 = por %p108, %p109
    %p111 = scmp.le.s32.totalorder 1, %s9
    %p112 = scmp.lt.s32.totalorder %s9, 3
    %p113 = pnand %p111, %p112
    %p114 = pneg %p113
    // Predicated region
    $region9: #{bev_seg_head_forward.1} parent=5 // pred_check
      _
    $region10: #{bev_seg_head_forward.1} parent=5 // pred_check_branch
      %116 = sbr.rel (%p113) target = $region12
    $region11: #{bev_seg_head_forward.1} parent=5 // pred_region
      %s117 = ssub.s32 %s9, 1
      // Predicated region
      $region13: #{bev_seg_head_forward.1} parent=11 // pred_check
        %p118 = pneg %p56
      $region14: #{bev_seg_head_forward.1} parent=11 // pred_check_branch
        %120 = sbr.rel (%p118) target = $region16
      $region15: #{bev_seg_head_forward.1} parent=11 // pred_region
        _
      $region16: #{bev_seg_head_forward.1} parent=11 // pred_fallthru
        _
      // Predicated region
      $region17: #{bev_seg_head_forward.1} parent=11 // pred_check
        %p121 = pneg %p77
      $region18: #{bev_seg_head_forward.1} parent=11 // pred_check_branch
        %123 = sbr.rel (%p121) target = $region20
      $region19: #{bev_seg_head_forward.1} parent=11 // pred_region
        _
      $region20: #{bev_seg_head_forward.1} parent=11 // pred_fallthru
        _
    $region12: #{bev_seg_head_forward.1} parent=5 // pred_fallthru
      _
    %p124 = scmp.lt.s32.totalorder %s9, 2
    // Predicated region
    $region21: #{bev_seg_head_forward.1} parent=5 // pred_check
      %p125 = pneg %p124
    $region22: #{bev_seg_head_forward.1} parent=5 // pred_check_branch
      %127 = sbr.rel (%p125) target = $region24
    $region23: #{bev_seg_head_forward.1} parent=5 // pred_region
      // Predicated region
      $region25: #{bev_seg_head_forward.1} parent=23 // pred_check
        %p128 = pneg %p29
      $region26: #{bev_seg_head_forward.1} parent=23 // pred_check_branch
        %130 = sbr.rel (%p128) target = $region28
      $region27: #{bev_seg_head_forward.1} parent=23 // pred_region
        %s131 = smul.u32 2, %s9
        %p132 = scmp.lt.s32.totalorder %s131, 3
        %s133 = scalar_select %p132, %s131, 3
        %s134 = smul.addr %s133, 128
        %s135 = smul.addr %s134, 8
        %s136 = scalar_lea.vmem %s0, %s135
        %s137 = smul.u32 2, %s9
      $region28: #{bev_seg_head_forward.1} parent=23 // pred_fallthru
        _
    $region24: #{bev_seg_head_forward.1} parent=5 // pred_fallthru
      _
    %p138 = scmp.le.s32.totalorder 1, %s9
    %p139 = scmp.lt.s32.totalorder %s9, 3
    %p140 = pnand %p138, %p139
    %p141 = pneg %p140
    // Predicated region
    $region29: #{bev_seg_head_forward.1} parent=5 // pred_check
      _
    $region30: #{bev_seg_head_forward.1} parent=5 // pred_check_branch
      %143 = sbr.rel (%p140) target = $region32
    $region31: #{bev_seg_head_forward.1} parent=5 // pred_region
      %s144 = ssub.s32 %s9, 1
      %s145 = smul.u32 2, %s14
      %p146 = scmp.lt.s32.totalorder %s145, 3
      %s147 = scalar_select %p146, %s145, 3
      %s148 = smul.addr %s147, 128
      %s149 = smul.addr %s148, 8
      %s150 = scalar_lea.vmem %s0, %s149
      %p151 = pneg %p35
      %p152 = pneg %p32
      %p153 = pneg %p56
      %p154 = pneg %p53
      %p155 = pneg %p77
      %p156 = pneg %p74
      %p157 = pneg %p103
      %p158 = pneg %p100
      %s159 = smul.u32 2, %s14
      %p160 = scmp.lt.s32.totalorder %s159, 3
      %s161 = scalar_select %p160, %s159, 3
      %s162 = smul.addr %s161, 8
      %s163 = smul.addr %s162, 8
      %s164 = scalar_lea.vmem %s3, %s163
      %s165 = smul.u32 2, %s14
      %p166 = scmp.lt.s32.totalorder %s165, 3
      %s167 = scalar_select %p166, %s165, 3
      %s168 = smul.addr %s167, 128
      %s169 = smul.addr %s168, 8
      %s170 = scalar_lea.vmem %s0, %s169
      %s171 = smul.u32 2, %s14
      %s172 = smul.u32 2, %s14
      %p173 = scmp.lt.s32.totalorder %s172, 3
      %s174 = scalar_select %p173, %s172, 3
      %s175 = smul.addr %s174, 8
      %s176 = smul.addr %s175, 8
      %s177 = scalar_lea.vmem %s3, %s176
      %s178 = smul.u32 2, %s14
      %v180 = vlaneseq
      %v181 = vand.u32 %v180, 127
      %v182 = vadd.s32 %v181, 128
      %v183 = vadd.s32 %v181, 256
      %v184 = vadd.s32 %v181, 384
      %v185 = vadd.s32 %v181, 512
      %v186 = vadd.s32 %v181, 640
      %v187 = vadd.s32 %v181, 768
      %v188 = vadd.s32 %v181, 896
      %vm189 = vcmp.lt.s32.totalorder %v181, 0
      %v190 = vsub.s32 0, %v181
      %v191 = vsel %vm189, %v190, %v181
      %v192 = vshrl.u32 %v191, 5
      %v193 = vand.u32 %v191, 31
      %v194 = vsub.s32 0, %v193
      %v195 = vsel %vm189, %v194, %v193
      %vm196 = vcmp.lt.s32.totalorder %v182, 0
      %v197 = vsub.s32 0, %v182
      %v198 = vsel %vm196, %v197, %v182
      %v199 = vshrl.u32 %v198, 5
      %v200 = vand.u32 %v198, 31
      %v201 = vsub.s32 0, %v200
      %v202 = vsel %vm196, %v201, %v200
      %vm203 = vcmp.lt.s32.totalorder %v183, 0
      %v204 = vsub.s32 0, %v183
      %v205 = vsel %vm203, %v204, %v183
      %v206 = vshrl.u32 %v205, 5
      %v207 = vand.u32 %v205, 31
      %v208 = vsub.s32 0, %v207
      %v209 = vsel %vm203, %v208, %v207
      %vm210 = vcmp.lt.s32.totalorder %v184, 0
      %v211 = vsub.s32 0, %v184
      %v212 = vsel %vm210, %v211, %v184
      %v213 = vshrl.u32 %v212, 5
      %v214 = vand.u32 %v212, 31
      %v215 = vsub.s32 0, %v214
      %v216 = vsel %vm210, %v215, %v214
      %vm217 = vcmp.lt.s32.totalorder %v185, 0
      %v218 = vsub.s32 0, %v185
      %v219 = vsel %vm217, %v218, %v185
      %v220 = vshrl.u32 %v219, 5
      %v221 = vand.u32 %v219, 31
      %v222 = vsub.s32 0, %v221
      %v223 = vsel %vm217, %v222, %v221
      %vm224 = vcmp.lt.s32.totalorder %v186, 0
      %v225 = vsub.s32 0, %v186
      %v226 = vsel %vm224, %v225, %v186
      %v227 = vshrl.u32 %v226, 5
      %v228 = vand.u32 %v226, 31
      %v229 = vsub.s32 0, %v228
      %v230 = vsel %vm224, %v229, %v228
      %vm231 = vcmp.lt.s32.totalorder %v187, 0
      %v232 = vsub.s32 0, %v187
      %v233 = vsel %vm231, %v232, %v187
      %v234 = vshrl.u32 %v233, 5
      %v235 = vand.u32 %v233, 31
      %v236 = vsub.s32 0, %v235
      %v237 = vsel %vm231, %v236, %v235
      %vm238 = vcmp.lt.s32.totalorder %v188, 0
      %v239 = vsub.s32 0, %v188
      %v240 = vsel %vm238, %v239, %v188
      %v241 = vshrl.u32 %v240, 5
      %v242 = vand.u32 %v240, 31
      %v243 = vsub.s32 0, %v242
      %v244 = vsel %vm238, %v243, %v242
      %vm245 = vcmp.ne.s32.totalorder %v195, 0
      %vm246 = vcmp.ne.s32.totalorder %v202, 0
      %vm247 = vcmp.ne.s32.totalorder %v209, 0
      %vm248 = vcmp.ne.s32.totalorder %v216, 0
      %vm249 = vcmp.ne.s32.totalorder %v223, 0
      %vm250 = vcmp.ne.s32.totalorder %v230, 0
      %vm251 = vcmp.ne.s32.totalorder %v237, 0
      %vm252 = vcmp.ne.s32.totalorder %v244, 0
      %vm253 = vcmp.lt.s32.totalorder %v195, 0
      %vm254 = vcmp.lt.s32.totalorder %v202, 0
      %vm255 = vcmp.lt.s32.totalorder %v209, 0
      %vm256 = vcmp.lt.s32.totalorder %v216, 0
      %vm257 = vcmp.lt.s32.totalorder %v223, 0
      %vm258 = vcmp.lt.s32.totalorder %v230, 0
      %vm259 = vcmp.lt.s32.totalorder %v237, 0
      %vm260 = vcmp.lt.s32.totalorder %v244, 0
      %vm261 = vmand %vm253, %vm245
      %vm262 = vmand %vm254, %vm246
      %vm263 = vmand %vm255, %vm247
      %vm264 = vmand %vm256, %vm248
      %vm265 = vmand %vm257, %vm249
      %vm266 = vmand %vm258, %vm250
      %vm267 = vmand %vm259, %vm251
      %vm268 = vmand %vm260, %vm252
      %v269 = vadd.s32 %v195, 32
      %v270 = vadd.s32 %v202, 32
      %v271 = vadd.s32 %v209, 32
      %v272 = vadd.s32 %v216, 32
      %v273 = vadd.s32 %v223, 32
      %v274 = vadd.s32 %v230, 32
      %v275 = vadd.s32 %v237, 32
      %v276 = vadd.s32 %v244, 32
      %v277 = vsel %vm261, %v269, %v195
      %v278 = vsel %vm262, %v270, %v202
      %v279 = vsel %vm263, %v271, %v209
      %v280 = vsel %vm264, %v272, %v216
      %v281 = vsel %vm265, %v273, %v223
      %v282 = vsel %vm266, %v274, %v230
      %v283 = vsel %vm267, %v275, %v237
      %v284 = vsel %vm268, %v276, %v244
      %v285 = vadd.s32 %v277, 4294967295
      %v286 = vadd.s32 %v278, 4294967295
      %v287 = vadd.s32 %v279, 4294967295
      %v288 = vadd.s32 %v280, 4294967295
      %v289 = vadd.s32 %v281, 4294967295
      %v290 = vadd.s32 %v282, 4294967295
      %v291 = vadd.s32 %v283, 4294967295
      %v292 = vadd.s32 %v284, 4294967295
      %vm293 = vcmp.ge.s32.totalorder %v285, 0
      %vm294 = vcmp.ge.s32.totalorder %v286, 0
      %vm295 = vcmp.ge.s32.totalorder %v287, 0
      %vm296 = vcmp.ge.s32.totalorder %v288, 0
      %vm297 = vcmp.ge.s32.totalorder %v289, 0
      %vm298 = vcmp.ge.s32.totalorder %v290, 0
      %vm299 = vcmp.ge.s32.totalorder %v291, 0
      %vm300 = vcmp.ge.s32.totalorder %v292, 0
      %vm301 = vcmp.lt.s32.totalorder %v285, 32
      %vm302 = vcmp.lt.s32.totalorder %v286, 32
      %vm303 = vcmp.lt.s32.totalorder %v287, 32
      %vm304 = vcmp.lt.s32.totalorder %v288, 32
      %vm305 = vcmp.lt.s32.totalorder %v289, 32
      %vm306 = vcmp.lt.s32.totalorder %v290, 32
      %vm307 = vcmp.lt.s32.totalorder %v291, 32
      %vm308 = vcmp.lt.s32.totalorder %v292, 32
      %vm309 = vmand %vm293, %vm301
      %vm310 = vmand %vm294, %vm302
      %vm311 = vmand %vm295, %vm303
      %vm312 = vmand %vm296, %vm304
      %vm313 = vmand %vm297, %vm305
      %vm314 = vmand %vm298, %vm306
      %vm315 = vmand %vm299, %vm307
      %vm316 = vmand %vm300, %vm308
      %v317 = vsel %vm309, 1, 0
      %v318 = vsel %vm310, 1, 0
      %v319 = vsel %vm311, 1, 0
      %v320 = vsel %vm312, 1, 0
      %v321 = vsel %vm313, 1, 0
      %v322 = vsel %vm314, 1, 0
      %v323 = vsel %vm315, 1, 0
      %v324 = vsel %vm316, 1, 0
      %v325 = vcvt.s32.f32 %v317
      %v326 = vcvt.s32.f32 %v318
      %v327 = vcvt.s32.f32 %v319
      %v328 = vcvt.s32.f32 %v320
      %v329 = vcvt.s32.f32 %v321
      %v330 = vcvt.s32.f32 %v322
      %v331 = vcvt.s32.f32 %v323
      %v332 = vcvt.s32.f32 %v324
      %v333 = vadd.s32 %v277, 1
      %v334 = vadd.s32 %v278, 1
      %v335 = vadd.s32 %v279, 1
      %v336 = vadd.s32 %v280, 1
      %v337 = vadd.s32 %v281, 1
      %v338 = vadd.s32 %v282, 1
      %v339 = vadd.s32 %v283, 1
      %v340 = vadd.s32 %v284, 1
      %vm341 = vcmp.ge.s32.totalorder %v333, 0
      %vm342 = vcmp.ge.s32.totalorder %v334, 0
      %vm343 = vcmp.ge.s32.totalorder %v335, 0
      %vm344 = vcmp.ge.s32.totalorder %v336, 0
      %vm345 = vcmp.ge.s32.totalorder %v337, 0
      %vm346 = vcmp.ge.s32.totalorder %v338, 0
      %vm347 = vcmp.ge.s32.totalorder %v339, 0
      %vm348 = vcmp.ge.s32.totalorder %v340, 0
      %vm349 = vcmp.lt.s32.totalorder %v333, 32
      %vm350 = vcmp.lt.s32.totalorder %v334, 32
      %vm351 = vcmp.lt.s32.totalorder %v335, 32
      %vm352 = vcmp.lt.s32.totalorder %v336, 32
      %vm353 = vcmp.lt.s32.totalorder %v337, 32
      %vm354 = vcmp.lt.s32.totalorder %v338, 32
      %vm355 = vcmp.lt.s32.totalorder %v339, 32
      %vm356 = vcmp.lt.s32.totalorder %v340, 32
      %vm357 = vmand %vm341, %vm349
      %vm358 = vmand %vm342, %vm350
      %vm359 = vmand %vm343, %vm351
      %vm360 = vmand %vm344, %vm352
      %vm361 = vmand %vm345, %vm353
      %vm362 = vmand %vm346, %vm354
      %vm363 = vmand %vm347, %vm355
      %vm364 = vmand %vm348, %vm356
      %v365 = vsel %vm357, 1, 0
      %v366 = vsel %vm358, 1, 0
      %v367 = vsel %vm359, 1, 0
      %v368 = vsel %vm360, 1, 0
      %v369 = vsel %vm361, 1, 0
      %v370 = vsel %vm362, 1, 0
      %v371 = vsel %vm363, 1, 0
      %v372 = vsel %vm364, 1, 0
      %v373 = vcvt.s32.f32 %v365
      %v374 = vcvt.s32.f32 %v366
      %v375 = vcvt.s32.f32 %v367
      %v376 = vcvt.s32.f32 %v368
      %v377 = vcvt.s32.f32 %v369
      %v378 = vcvt.s32.f32 %v370
      %v379 = vcvt.s32.f32 %v371
      %v380 = vcvt.s32.f32 %v372
      %v381 = vld [vmem:[%s170] sm:$0xff]
      %v382 = vld [vmem:[%s170 + $0x8] sm:$0xff]
      %v383 = vld [vmem:[%s170 + $0x10] sm:$0xff]
      %v384 = vld [vmem:[%s170 + $0x18] sm:$0xff]
      %v385 = vld [vmem:[%s170 + $0x20] sm:$0xff]
      %v386 = vld [vmem:[%s170 + $0x28] sm:$0xff]
      %v387 = vld [vmem:[%s170 + $0x30] sm:$0xff]
      %v388 = vld [vmem:[%s170 + $0x38] sm:$0xff]
      %v389 = vld [vmem:[%s170 + $0x40] sm:$0xff]
      %v390 = vld [vmem:[%s170 + $0x48] sm:$0xff]
      %v391 = vld [vmem:[%s170 + $0x50] sm:$0xff]
      %v392 = vld [vmem:[%s170 + $0x58] sm:$0xff]
      %v393 = vld [vmem:[%s170 + $0x60] sm:$0xff]
      %v394 = vld [vmem:[%s170 + $0x68] sm:$0xff]
      %v395 = vld [vmem:[%s170 + $0x70] sm:$0xff]
      %v396 = vld [vmem:[%s170 + $0x78] sm:$0xff]
      %v397 = vld [vmem:[%s170 + $0x80] sm:$0xff]
      %v398 = vld [vmem:[%s170 + $0x88] sm:$0xff]
      %v399 = vld [vmem:[%s170 + $0x90] sm:$0xff]
      %v400 = vld [vmem:[%s170 + $0x98] sm:$0xff]
      %v401 = vld [vmem:[%s170 + $0xa0] sm:$0xff]
      %v402 = vld [vmem:[%s170 + $0xa8] sm:$0xff]
      %v403 = vld [vmem:[%s170 + $0xb0] sm:$0xff]
      %v404 = vld [vmem:[%s170 + $0xb8] sm:$0xff]
      %v405 = vld [vmem:[%s170 + $0xc0] sm:$0xff]
      %v406 = vld [vmem:[%s170 + $0xc8] sm:$0xff]
      %v407 = vld [vmem:[%s170 + $0xd0] sm:$0xff]
      %v408 = vld [vmem:[%s170 + $0xd8] sm:$0xff]
      %v409 = vld [vmem:[%s170 + $0xe0] sm:$0xff]
      %v410 = vld [vmem:[%s170 + $0xe8] sm:$0xff]
      %v411 = vld [vmem:[%s170 + $0xf0] sm:$0xff]
      %v412 = vld [vmem:[%s170 + $0xf8] sm:$0xff]
      %v413 = vld [vmem:[%s170 + $0x100] sm:$0xff]
      %v414 = vld [vmem:[%s170 + $0x108] sm:$0xff]
      %v415 = vld [vmem:[%s170 + $0x110] sm:$0xff]
      %v416 = vld [vmem:[%s170 + $0x118] sm:$0xff]
      %v417 = vld [vmem:[%s170 + $0x120] sm:$0xff]
      %v418 = vld [vmem:[%s170 + $0x128] sm:$0xff]
      %v419 = vld [vmem:[%s170 + $0x130] sm:$0xff]
      %v420 = vld [vmem:[%s170 + $0x138] sm:$0xff]
      %v421 = vld [vmem:[%s170 + $0x140] sm:$0xff]
      %v422 = vld [vmem:[%s170 + $0x148] sm:$0xff]
      %v423 = vld [vmem:[%s170 + $0x150] sm:$0xff]
      %v424 = vld [vmem:[%s170 + $0x158] sm:$0xff]
      %v425 = vld [vmem:[%s170 + $0x160] sm:$0xff]
      %v426 = vld [vmem:[%s170 + $0x168] sm:$0xff]
      %v427 = vld [vmem:[%s170 + $0x170] sm:$0xff]
      %v428 = vld [vmem:[%s170 + $0x178] sm:$0xff]
      %v429 = vld [vmem:[%s170 + $0x180] sm:$0xff]
      %v430 = vld [vmem:[%s170 + $0x188] sm:$0xff]
      %v431 = vld [vmem:[%s170 + $0x190] sm:$0xff]
      %v432 = vld [vmem:[%s170 + $0x198] sm:$0xff]
      %v433 = vld [vmem:[%s170 + $0x1a0] sm:$0xff]
      %v434 = vld [vmem:[%s170 + $0x1a8] sm:$0xff]
      %v435 = vld [vmem:[%s170 + $0x1b0] sm:$0xff]
      %v436 = vld [vmem:[%s170 + $0x1b8] sm:$0xff]
      %v437 = vld [vmem:[%s170 + $0x1c0] sm:$0xff]
      %v438 = vld [vmem:[%s170 + $0x1c8] sm:$0xff]
      %v439 = vld [vmem:[%s170 + $0x1d0] sm:$0xff]
      %v440 = vld [vmem:[%s170 + $0x1d8] sm:$0xff]
      %v441 = vld [vmem:[%s170 + $0x1e0] sm:$0xff]
      %v442 = vld [vmem:[%s170 + $0x1e8] sm:$0xff]
      %v443 = vld [vmem:[%s170 + $0x1f0] sm:$0xff]
      %v444 = vld [vmem:[%s170 + $0x1f8] sm:$0xff]
      %v445 = vld [vmem:[%s170 + $0x200] sm:$0xff]
      %v446 = vld [vmem:[%s170 + $0x208] sm:$0xff]
      %v447 = vld [vmem:[%s170 + $0x210] sm:$0xff]
      %v448 = vld [vmem:[%s170 + $0x218] sm:$0xff]
      %v449 = vld [vmem:[%s170 + $0x220] sm:$0xff]
      %v450 = vld [vmem:[%s170 + $0x228] sm:$0xff]
      %v451 = vld [vmem:[%s170 + $0x230] sm:$0xff]
      %v452 = vld [vmem:[%s170 + $0x238] sm:$0xff]
      %v453 = vld [vmem:[%s170 + $0x240] sm:$0xff]
      %v454 = vld [vmem:[%s170 + $0x248] sm:$0xff]
      %v455 = vld [vmem:[%s170 + $0x250] sm:$0xff]
      %v456 = vld [vmem:[%s170 + $0x258] sm:$0xff]
      %v457 = vld [vmem:[%s170 + $0x260] sm:$0xff]
      %v458 = vld [vmem:[%s170 + $0x268] sm:$0xff]
      %v459 = vld [vmem:[%s170 + $0x270] sm:$0xff]
      %v460 = vld [vmem:[%s170 + $0x278] sm:$0xff]
      %v461 = vld [vmem:[%s170 + $0x280] sm:$0xff]
      %v462 = vld [vmem:[%s170 + $0x288] sm:$0xff]
      %v463 = vld [vmem:[%s170 + $0x290] sm:$0xff]
      %v464 = vld [vmem:[%s170 + $0x298] sm:$0xff]
      %v465 = vld [vmem:[%s170 + $0x2a0] sm:$0xff]
      %v466 = vld [vmem:[%s170 + $0x2a8] sm:$0xff]
      %v467 = vld [vmem:[%s170 + $0x2b0] sm:$0xff]
      %v468 = vld [vmem:[%s170 + $0x2b8] sm:$0xff]
      %v469 = vld [vmem:[%s170 + $0x2c0] sm:$0xff]
      %v470 = vld [vmem:[%s170 + $0x2c8] sm:$0xff]
      %v471 = vld [vmem:[%s170 + $0x2d0] sm:$0xff]
      %v472 = vld [vmem:[%s170 + $0x2d8] sm:$0xff]
      %v473 = vld [vmem:[%s170 + $0x2e0] sm:$0xff]
      %v474 = vld [vmem:[%s170 + $0x2e8] sm:$0xff]
      %v475 = vld [vmem:[%s170 + $0x2f0] sm:$0xff]
      %v476 = vld [vmem:[%s170 + $0x2f8] sm:$0xff]
      %v477 = vld [vmem:[%s170 + $0x300] sm:$0xff]
      %v478 = vld [vmem:[%s170 + $0x308] sm:$0xff]
      %v479 = vld [vmem:[%s170 + $0x310] sm:$0xff]
      %v480 = vld [vmem:[%s170 + $0x318] sm:$0xff]
      %v481 = vld [vmem:[%s170 + $0x320] sm:$0xff]
      %v482 = vld [vmem:[%s170 + $0x328] sm:$0xff]
      %v483 = vld [vmem:[%s170 + $0x330] sm:$0xff]
      %v484 = vld [vmem:[%s170 + $0x338] sm:$0xff]
      %v485 = vld [vmem:[%s170 + $0x340] sm:$0xff]
      %v486 = vld [vmem:[%s170 + $0x348] sm:$0xff]
      %v487 = vld [vmem:[%s170 + $0x350] sm:$0xff]
      %v488 = vld [vmem:[%s170 + $0x358] sm:$0xff]
      %v489 = vld [vmem:[%s170 + $0x360] sm:$0xff]
      %v490 = vld [vmem:[%s170 + $0x368] sm:$0xff]
      %v491 = vld [vmem:[%s170 + $0x370] sm:$0xff]
      %v492 = vld [vmem:[%s170 + $0x378] sm:$0xff]
      %v493 = vld [vmem:[%s170 + $0x380] sm:$0xff]
      %v494 = vld [vmem:[%s170 + $0x388] sm:$0xff]
      %v495 = vld [vmem:[%s170 + $0x390] sm:$0xff]
      %v496 = vld [vmem:[%s170 + $0x398] sm:$0xff]
      %v497 = vld [vmem:[%s170 + $0x3a0] sm:$0xff]
      %v498 = vld [vmem:[%s170 + $0x3a8] sm:$0xff]
      %v499 = vld [vmem:[%s170 + $0x3b0] sm:$0xff]
      %v500 = vld [vmem:[%s170 + $0x3b8] sm:$0xff]
      %v501 = vld [vmem:[%s170 + $0x3c0] sm:$0xff]
      %v502 = vld [vmem:[%s170 + $0x3c8] sm:$0xff]
      %v503 = vld [vmem:[%s170 + $0x3d0] sm:$0xff]
      %v504 = vld [vmem:[%s170 + $0x3d8] sm:$0xff]
      %v505 = vld [vmem:[%s170 + $0x3e0] sm:$0xff]
      %v506 = vld [vmem:[%s170 + $0x3e8] sm:$0xff]
      %v507 = vld [vmem:[%s170 + $0x3f0] sm:$0xff]
      %v508 = vld [vmem:[%s170 + $0x3f8] sm:$0xff]
      %vm509 = vcmp.ne.f32.partialorder %v381, %v381
      %vm510 = vcmp.ne.f32.partialorder %v382, %v382
      %vm511 = vcmp.ne.f32.partialorder %v383, %v383
      %vm512 = vcmp.ne.f32.partialorder %v384, %v384
      %vm513 = vcmp.ne.f32.partialorder %v385, %v385
      %vm514 = vcmp.ne.f32.partialorder %v386, %v386
      %vm515 = vcmp.ne.f32.partialorder %v387, %v387
      %vm516 = vcmp.ne.f32.partialorder %v388, %v388
      %vm517 = vcmp.ne.f32.partialorder %v389, %v389
      %vm518 = vcmp.ne.f32.partialorder %v390, %v390
      %vm519 = vcmp.ne.f32.partialorder %v391, %v391
      %vm520 = vcmp.ne.f32.partialorder %v392, %v392
      %vm521 = vcmp.ne.f32.partialorder %v393, %v393
      %vm522 = vcmp.ne.f32.partialorder %v394, %v394
      %vm523 = vcmp.ne.f32.partialorder %v395, %v395
      %vm524 = vcmp.ne.f32.partialorder %v396, %v396
      %vm525 = vcmp.ne.f32.partialorder %v397, %v397
      %vm526 = vcmp.ne.f32.partialorder %v398, %v398
      %vm527 = vcmp.ne.f32.partialorder %v399, %v399
      %vm528 = vcmp.ne.f32.partialorder %v400, %v400
      %vm529 = vcmp.ne.f32.partialorder %v401, %v401
      %vm530 = vcmp.ne.f32.partialorder %v402, %v402
      %vm531 = vcmp.ne.f32.partialorder %v403, %v403
      %vm532 = vcmp.ne.f32.partialorder %v404, %v404
      %vm533 = vcmp.ne.f32.partialorder %v405, %v405
      %vm534 = vcmp.ne.f32.partialorder %v406, %v406
      %vm535 = vcmp.ne.f32.partialorder %v407, %v407
      %vm536 = vcmp.ne.f32.partialorder %v408, %v408
      %vm537 = vcmp.ne.f32.partialorder %v409, %v409
      %vm538 = vcmp.ne.f32.partialorder %v410, %v410
      %vm539 = vcmp.ne.f32.partialorder %v411, %v411
      %vm540 = vcmp.ne.f32.partialorder %v412, %v412
      %vm541 = vcmp.ne.f32.partialorder %v413, %v413
      %vm542 = vcmp.ne.f32.partialorder %v414, %v414
      %vm543 = vcmp.ne.f32.partialorder %v415, %v415
      %vm544 = vcmp.ne.f32.partialorder %v416, %v416
      %vm545 = vcmp.ne.f32.partialorder %v417, %v417
      %vm546 = vcmp.ne.f32.partialorder %v418, %v418
      %vm547 = vcmp.ne.f32.partialorder %v419, %v419
      %vm548 = vcmp.ne.f32.partialorder %v420, %v420
      %vm549 = vcmp.ne.f32.partialorder %v421, %v421
      %vm550 = vcmp.ne.f32.partialorder %v422, %v422
      %vm551 = vcmp.ne.f32.partialorder %v423, %v423
      %vm552 = vcmp.ne.f32.partialorder %v424, %v424
      %vm553 = vcmp.ne.f32.partialorder %v425, %v425
      %vm554 = vcmp.ne.f32.partialorder %v426, %v426
      %vm555 = vcmp.ne.f32.partialorder %v427, %v427
      %vm556 = vcmp.ne.f32.partialorder %v428, %v428
      %vm557 = vcmp.ne.f32.partialorder %v429, %v429
      %vm558 = vcmp.ne.f32.partialorder %v430, %v430
      %vm559 = vcmp.ne.f32.partialorder %v431, %v431
      %vm560 = vcmp.ne.f32.partialorder %v432, %v432
      %vm561 = vcmp.ne.f32.partialorder %v433, %v433
      %vm562 = vcmp.ne.f32.partialorder %v434, %v434
      %vm563 = vcmp.ne.f32.partialorder %v435, %v435
      %vm564 = vcmp.ne.f32.partialorder %v436, %v436
      %vm565 = vcmp.ne.f32.partialorder %v437, %v437
      %vm566 = vcmp.ne.f32.partialorder %v438, %v438
      %vm567 = vcmp.ne.f32.partialorder %v439, %v439
      %vm568 = vcmp.ne.f32.partialorder %v440, %v440
      %vm569 = vcmp.ne.f32.partialorder %v441, %v441
      %vm570 = vcmp.ne.f32.partialorder %v442, %v442
      %vm571 = vcmp.ne.f32.partialorder %v443, %v443
      %vm572 = vcmp.ne.f32.partialorder %v444, %v444
      %vm573 = vcmp.ne.f32.partialorder %v445, %v445
      %vm574 = vcmp.ne.f32.partialorder %v446, %v446
      %vm575 = vcmp.ne.f32.partialorder %v447, %v447
      %vm576 = vcmp.ne.f32.partialorder %v448, %v448
      %vm577 = vcmp.ne.f32.partialorder %v449, %v449
      %vm578 = vcmp.ne.f32.partialorder %v450, %v450
      %vm579 = vcmp.ne.f32.partialorder %v451, %v451
      %vm580 = vcmp.ne.f32.partialorder %v452, %v452
      %vm581 = vcmp.ne.f32.partialorder %v453, %v453
      %vm582 = vcmp.ne.f32.partialorder %v454, %v454
      %vm583 = vcmp.ne.f32.partialorder %v455, %v455
      %vm584 = vcmp.ne.f32.partialorder %v456, %v456
      %vm585 = vcmp.ne.f32.partialorder %v457, %v457
      %vm586 = vcmp.ne.f32.partialorder %v458, %v458
      %vm587 = vcmp.ne.f32.partialorder %v459, %v459
      %vm588 = vcmp.ne.f32.partialorder %v460, %v460
      %vm589 = vcmp.ne.f32.partialorder %v461, %v461
      %vm590 = vcmp.ne.f32.partialorder %v462, %v462
      %vm591 = vcmp.ne.f32.partialorder %v463, %v463
      %vm592 = vcmp.ne.f32.partialorder %v464, %v464
      %vm593 = vcmp.ne.f32.partialorder %v465, %v465
      %vm594 = vcmp.ne.f32.partialorder %v466, %v466
      %vm595 = vcmp.ne.f32.partialorder %v467, %v467
      %vm596 = vcmp.ne.f32.partialorder %v468, %v468
      %vm597 = vcmp.ne.f32.partialorder %v469, %v469
      %vm598 = vcmp.ne.f32.partialorder %v470, %v470
      %vm599 = vcmp.ne.f32.partialorder %v471, %v471
      %vm600 = vcmp.ne.f32.partialorder %v472, %v472
      %vm601 = vcmp.ne.f32.partialorder %v473, %v473
      %vm602 = vcmp.ne.f32.partialorder %v474, %v474
      %vm603 = vcmp.ne.f32.partialorder %v475, %v475
      %vm604 = vcmp.ne.f32.partialorder %v476, %v476
      %vm605 = vcmp.ne.f32.partialorder %v477, %v477
      %vm606 = vcmp.ne.f32.partialorder %v478, %v478
      %vm607 = vcmp.ne.f32.partialorder %v479, %v479
      %vm608 = vcmp.ne.f32.partialorder %v480, %v480
      %vm609 = vcmp.ne.f32.partialorder %v481, %v481
      %vm610 = vcmp.ne.f32.partialorder %v482, %v482
      %vm611 = vcmp.ne.f32.partialorder %v483, %v483
      %vm612 = vcmp.ne.f32.partialorder %v484, %v484
      %vm613 = vcmp.ne.f32.partialorder %v485, %v485
      %vm614 = vcmp.ne.f32.partialorder %v486, %v486
      %vm615 = vcmp.ne.f32.partialorder %v487, %v487
      %vm616 = vcmp.ne.f32.partialorder %v488, %v488
      %vm617 = vcmp.ne.f32.partialorder %v489, %v489
      %vm618 = vcmp.ne.f32.partialorder %v490, %v490
      %vm619 = vcmp.ne.f32.partialorder %v491, %v491
      %vm620 = vcmp.ne.f32.partialorder %v492, %v492
      %vm621 = vcmp.ne.f32.partialorder %v493, %v493
      %vm622 = vcmp.ne.f32.partialorder %v494, %v494
      %vm623 = vcmp.ne.f32.partialorder %v495, %v495
      %vm624 = vcmp.ne.f32.partialorder %v496, %v496
      %vm625 = vcmp.ne.f32.partialorder %v497, %v497
      %vm626 = vcmp.ne.f32.partialorder %v498, %v498
      %vm627 = vcmp.ne.f32.partialorder %v499, %v499
      %vm628 = vcmp.ne.f32.partialorder %v500, %v500
      %vm629 = vcmp.ne.f32.partialorder %v501, %v501
      %vm630 = vcmp.ne.f32.partialorder %v502, %v502
      %vm631 = vcmp.ne.f32.partialorder %v503, %v503
      %vm632 = vcmp.ne.f32.partialorder %v504, %v504
      %vm633 = vcmp.ne.f32.partialorder %v505, %v505
      %vm634 = vcmp.ne.f32.partialorder %v506, %v506
      %vm635 = vcmp.ne.f32.partialorder %v507, %v507
      %vm636 = vcmp.ne.f32.partialorder %v508, %v508
      %v637 = vsel %vm509, 0.0, %v381
      %v638 = vsel %vm510, 0.0, %v382
      %v639 = vsel %vm511, 0.0, %v383
      %v640 = vsel %vm512, 0.0, %v384
      %v641 = vsel %vm513, 0.0, %v385
      %v642 = vsel %vm514, 0.0, %v386
      %v643 = vsel %vm515, 0.0, %v387
      %v644 = vsel %vm516, 0.0, %v388
      %v645 = vsel %vm517, 0.0, %v389
      %v646 = vsel %vm518, 0.0, %v390
      %v647 = vsel %vm519, 0.0, %v391
      %v648 = vsel %vm520, 0.0, %v392
      %v649 = vsel %vm521, 0.0, %v393
      %v650 = vsel %vm522, 0.0, %v394
      %v651 = vsel %vm523, 0.0, %v395
      %v652 = vsel %vm524, 0.0, %v396
      %v653 = vsel %vm525, 0.0, %v397
      %v654 = vsel %vm526, 0.0, %v398
      %v655 = vsel %vm527, 0.0, %v399
      %v656 = vsel %vm528, 0.0, %v400
      %v657 = vsel %vm529, 0.0, %v401
      %v658 = vsel %vm530, 0.0, %v402
      %v659 = vsel %vm531, 0.0, %v403
      %v660 = vsel %vm532, 0.0, %v404
      %v661 = vsel %vm533, 0.0, %v405
      %v662 = vsel %vm534, 0.0, %v406
      %v663 = vsel %vm535, 0.0, %v407
      %v664 = vsel %vm536, 0.0, %v408
      %v665 = vsel %vm537, 0.0, %v409
      %v666 = vsel %vm538, 0.0, %v410
      %v667 = vsel %vm539, 0.0, %v411
      %v668 = vsel %vm540, 0.0, %v412
      %v669 = vsel %vm541, 0.0, %v413
      %v670 = vsel %vm542, 0.0, %v414
      %v671 = vsel %vm543, 0.0, %v415
      %v672 = vsel %vm544, 0.0, %v416
      %v673 = vsel %vm545, 0.0, %v417
      %v674 = vsel %vm546, 0.0, %v418
      %v675 = vsel %vm547, 0.0, %v419
      %v676 = vsel %vm548, 0.0, %v420
      %v677 = vsel %vm549, 0.0, %v421
      %v678 = vsel %vm550, 0.0, %v422
      %v679 = vsel %vm551, 0.0, %v423
      %v680 = vsel %vm552, 0.0, %v424
      %v681 = vsel %vm553, 0.0, %v425
      %v682 = vsel %vm554, 0.0, %v426
      %v683 = vsel %vm555, 0.0, %v427
      %v684 = vsel %vm556, 0.0, %v428
      %v685 = vsel %vm557, 0.0, %v429
      %v686 = vsel %vm558, 0.0, %v430
      %v687 = vsel %vm559, 0.0, %v431
      %v688 = vsel %vm560, 0.0, %v432
      %v689 = vsel %vm561, 0.0, %v433
      %v690 = vsel %vm562, 0.0, %v434
      %v691 = vsel %vm563, 0.0, %v435
      %v692 = vsel %vm564, 0.0, %v436
      %v693 = vsel %vm565, 0.0, %v437
      %v694 = vsel %vm566, 0.0, %v438
      %v695 = vsel %vm567, 0.0, %v439
      %v696 = vsel %vm568, 0.0, %v440
      %v697 = vsel %vm569, 0.0, %v441
      %v698 = vsel %vm570, 0.0, %v442
      %v699 = vsel %vm571, 0.0, %v443
      %v700 = vsel %vm572, 0.0, %v444
      %v701 = vsel %vm573, 0.0, %v445
      %v702 = vsel %vm574, 0.0, %v446
      %v703 = vsel %vm575, 0.0, %v447
      %v704 = vsel %vm576, 0.0, %v448
      %v705 = vsel %vm577, 0.0, %v449
      %v706 = vsel %vm578, 0.0, %v450
      %v707 = vsel %vm579, 0.0, %v451
      %v708 = vsel %vm580, 0.0, %v452
      %v709 = vsel %vm581, 0.0, %v453
      %v710 = vsel %vm582, 0.0, %v454
      %v711 = vsel %vm583, 0.0, %v455
      %v712 = vsel %vm584, 0.0, %v456
      %v713 = vsel %vm585, 0.0, %v457
      %v714 = vsel %vm586, 0.0, %v458
      %v715 = vsel %vm587, 0.0, %v459
      %v716 = vsel %vm588, 0.0, %v460
      %v717 = vsel %vm589, 0.0, %v461
      %v718 = vsel %vm590, 0.0, %v462
      %v719 = vsel %vm591, 0.0, %v463
      %v720 = vsel %vm592, 0.0, %v464
      %v721 = vsel %vm593, 0.0, %v465
      %v722 = vsel %vm594, 0.0, %v466
      %v723 = vsel %vm595, 0.0, %v467
      %v724 = vsel %vm596, 0.0, %v468
      %v725 = vsel %vm597, 0.0, %v469
      %v726 = vsel %vm598, 0.0, %v470
      %v727 = vsel %vm599, 0.0, %v471
      %v728 = vsel %vm600, 0.0, %v472
      %v729 = vsel %vm601, 0.0, %v473
      %v730 = vsel %vm602, 0.0, %v474
      %v731 = vsel %vm603, 0.0, %v475
      %v732 = vsel %vm604, 0.0, %v476
      %v733 = vsel %vm605, 0.0, %v477
      %v734 = vsel %vm606, 0.0, %v478
      %v735 = vsel %vm607, 0.0, %v479
      %v736 = vsel %vm608, 0.0, %v480
      %v737 = vsel %vm609, 0.0, %v481
      %v738 = vsel %vm610, 0.0, %v482
      %v739 = vsel %vm611, 0.0, %v483
      %v740 = vsel %vm612, 0.0, %v484
      %v741 = vsel %vm613, 0.0, %v485
      %v742 = vsel %vm614, 0.0, %v486
      %v743 = vsel %vm615, 0.0, %v487
      %v744 = vsel %vm616, 0.0, %v488
      %v745 = vsel %vm617, 0.0, %v489
      %v746 = vsel %vm618, 0.0, %v490
      %v747 = vsel %vm619, 0.0, %v491
      %v748 = vsel %vm620, 0.0, %v492
      %v749 = vsel %vm621, 0.0, %v493
      %v750 = vsel %vm622, 0.0, %v494
      %v751 = vsel %vm623, 0.0, %v495
      %v752 = vsel %vm624, 0.0, %v496
      %v753 = vsel %vm625, 0.0, %v497
      %v754 = vsel %vm626, 0.0, %v498
      %v755 = vsel %vm627, 0.0, %v499
      %v756 = vsel %vm628, 0.0, %v500
      %v757 = vsel %vm629, 0.0, %v501
      %v758 = vsel %vm630, 0.0, %v502
      %v759 = vsel %vm631, 0.0, %v503
      %v760 = vsel %vm632, 0.0, %v504
      %v761 = vsel %vm633, 0.0, %v505
      %v762 = vsel %vm634, 0.0, %v506
      %v763 = vsel %vm635, 0.0, %v507
      %v764 = vsel %vm636, 0.0, %v508
      %vm765 = vcmp.eq.f32.partialorder %v637, inf
      %vm766 = vcmp.eq.f32.partialorder %v638, inf
      %vm767 = vcmp.eq.f32.partialorder %v639, inf
      %vm768 = vcmp.eq.f32.partialorder %v640, inf
      %vm769 = vcmp.eq.f32.partialorder %v641, inf
      %vm770 = vcmp.eq.f32.partialorder %v642, inf
      %vm771 = vcmp.eq.f32.partialorder %v643, inf
      %vm772 = vcmp.eq.f32.partialorder %v644, inf
      %vm773 = vcmp.eq.f32.partialorder %v645, inf
      %vm774 = vcmp.eq.f32.partialorder %v646, inf
      %vm775 = vcmp.eq.f32.partialorder %v647, inf
      %vm776 = vcmp.eq.f32.partialorder %v648, inf
      %vm777 = vcmp.eq.f32.partialorder %v649, inf
      %vm778 = vcmp.eq.f32.partialorder %v650, inf
      %vm779 = vcmp.eq.f32.partialorder %v651, inf
      %vm780 = vcmp.eq.f32.partialorder %v652, inf
      %vm781 = vcmp.eq.f32.partialorder %v653, inf
      %vm782 = vcmp.eq.f32.partialorder %v654, inf
      %vm783 = vcmp.eq.f32.partialorder %v655, inf
      %vm784 = vcmp.eq.f32.partialorder %v656, inf
      %vm785 = vcmp.eq.f32.partialorder %v657, inf
      %vm786 = vcmp.eq.f32.partialorder %v658, inf
      %vm787 = vcmp.eq.f32.partialorder %v659, inf
      %vm788 = vcmp.eq.f32.partialorder %v660, inf
      %vm789 = vcmp.eq.f32.partialorder %v661, inf
      %vm790 = vcmp.eq.f32.partialorder %v662, inf
      %vm791 = vcmp.eq.f32.partialorder %v663, inf
      %vm792 = vcmp.eq.f32.partialorder %v664, inf
      %vm793 = vcmp.eq.f32.partialorder %v665, inf
      %vm794 = vcmp.eq.f32.partialorder %v666, inf
      %vm795 = vcmp.eq.f32.partialorder %v667, inf
      %vm796 = vcmp.eq.f32.partialorder %v668, inf
      %vm797 = vcmp.eq.f32.partialorder %v669, inf
      %vm798 = vcmp.eq.f32.partialorder %v670, inf
      %vm799 = vcmp.eq.f32.partialorder %v671, inf
      %vm800 = vcmp.eq.f32.partialorder %v672, inf
      %vm801 = vcmp.eq.f32.partialorder %v673, inf
      %vm802 = vcmp.eq.f32.partialorder %v674, inf
      %vm803 = vcmp.eq.f32.partialorder %v675, inf
      %vm804 = vcmp.eq.f32.partialorder %v676, inf
      %vm805 = vcmp.eq.f32.partialorder %v677, inf
      %vm806 = vcmp.eq.f32.partialorder %v678, inf
      %vm807 = vcmp.eq.f32.partialorder %v679, inf
      %vm808 = vcmp.eq.f32.partialorder %v680, inf
      %vm809 = vcmp.eq.f32.partialorder %v681, inf
      %vm810 = vcmp.eq.f32.partialorder %v682, inf
      %vm811 = vcmp.eq.f32.partialorder %v683, inf
      %vm812 = vcmp.eq.f32.partialorder %v684, inf
      %vm813 = vcmp.eq.f32.partialorder %v685, inf
      %vm814 = vcmp.eq.f32.partialorder %v686, inf
      %vm815 = vcmp.eq.f32.partialorder %v687, inf
      %vm816 = vcmp.eq.f32.partialorder %v688, inf
      %vm817 = vcmp.eq.f32.partialorder %v689, inf
      %vm818 = vcmp.eq.f32.partialorder %v690, inf
      %vm819 = vcmp.eq.f32.partialorder %v691, inf
      %vm820 = vcmp.eq.f32.partialorder %v692, inf
      %vm821 = vcmp.eq.f32.partialorder %v693, inf
      %vm822 = vcmp.eq.f32.partialorder %v694, inf
      %vm823 = vcmp.eq.f32.partialorder %v695, inf
      %vm824 = vcmp.eq.f32.partialorder %v696, inf
      %vm825 = vcmp.eq.f32.partialorder %v697, inf
      %vm826 = vcmp.eq.f32.partialorder %v698, inf
      %vm827 = vcmp.eq.f32.partialorder %v699, inf
      %vm828 = vcmp.eq.f32.partialorder %v700, inf
      %vm829 = vcmp.eq.f32.partialorder %v701, inf
      %vm830 = vcmp.eq.f32.partialorder %v702, inf
      %vm831 = vcmp.eq.f32.partialorder %v703, inf
      %vm832 = vcmp.eq.f32.partialorder %v704, inf
      %vm833 = vcmp.eq.f32.partialorder %v705, inf
      %vm834 = vcmp.eq.f32.partialorder %v706, inf
      %vm835 = vcmp.eq.f32.partialorder %v707, inf
      %vm836 = vcmp.eq.f32.partialorder %v708, inf
      %vm837 = vcmp.eq.f32.partialorder %v709, inf
      %vm838 = vcmp.eq.f32.partialorder %v710, inf
      %vm839 = vcmp.eq.f32.partialorder %v711, inf
      %vm840 = vcmp.eq.f32.partialorder %v712, inf
      %vm841 = vcmp.eq.f32.partialorder %v713, inf
      %vm842 = vcmp.eq.f32.partialorder %v714, inf
      %vm843 = vcmp.eq.f32.partialorder %v715, inf
      %vm844 = vcmp.eq.f32.partialorder %v716, inf
      %vm845 = vcmp.eq.f32.partialorder %v717, inf
      %vm846 = vcmp.eq.f32.partialorder %v718, inf
      %vm847 = vcmp.eq.f32.partialorder %v719, inf
      %vm848 = vcmp.eq.f32.partialorder %v720, inf
      %vm849 = vcmp.eq.f32.partialorder %v721, inf
      %vm850 = vcmp.eq.f32.partialorder %v722, inf
      %vm851 = vcmp.eq.f32.partialorder %v723, inf
      %vm852 = vcmp.eq.f32.partialorder %v724, inf
      %vm853 = vcmp.eq.f32.partialorder %v725, inf
      %vm854 = vcmp.eq.f32.partialorder %v726, inf
      %vm855 = vcmp.eq.f32.partialorder %v727, inf
      %vm856 = vcmp.eq.f32.partialorder %v728, inf
      %vm857 = vcmp.eq.f32.partialorder %v729, inf
      %vm858 = vcmp.eq.f32.partialorder %v730, inf
      %vm859 = vcmp.eq.f32.partialorder %v731, inf
      %vm860 = vcmp.eq.f32.partialorder %v732, inf
      %vm861 = vcmp.eq.f32.partialorder %v733, inf
      %vm862 = vcmp.eq.f32.partialorder %v734, inf
      %vm863 = vcmp.eq.f32.partialorder %v735, inf
      %vm864 = vcmp.eq.f32.partialorder %v736, inf
      %vm865 = vcmp.eq.f32.partialorder %v737, inf
      %vm866 = vcmp.eq.f32.partialorder %v738, inf
      %vm867 = vcmp.eq.f32.partialorder %v739, inf
      %vm868 = vcmp.eq.f32.partialorder %v740, inf
      %vm869 = vcmp.eq.f32.partialorder %v741, inf
      %vm870 = vcmp.eq.f32.partialorder %v742, inf
      %vm871 = vcmp.eq.f32.partialorder %v743, inf
      %vm872 = vcmp.eq.f32.partialorder %v744, inf
      %vm873 = vcmp.eq.f32.partialorder %v745, inf
      %vm874 = vcmp.eq.f32.partialorder %v746, inf
      %vm875 = vcmp.eq.f32.partialorder %v747, inf
      %vm876 = vcmp.eq.f32.partialorder %v748, inf
      %vm877 = vcmp.eq.f32.partialorder %v749, inf
      %vm878 = vcmp.eq.f32.partialorder %v750, inf
      %vm879 = vcmp.eq.f32.partialorder %v751, inf
      %vm880 = vcmp.eq.f32.partialorder %v752, inf
      %vm881 = vcmp.eq.f32.partialorder %v753, inf
      %vm882 = vcmp.eq.f32.partialorder %v754, inf
      %vm883 = vcmp.eq.f32.partialorder %v755, inf
      %vm884 = vcmp.eq.f32.partialorder %v756, inf
      %vm885 = vcmp.eq.f32.partialorder %v757, inf
      %vm886 = vcmp.eq.f32.partialorder %v758, inf
      %vm887 = vcmp.eq.f32.partialorder %v759, inf
      %vm888 = vcmp.eq.f32.partialorder %v760, inf
      %vm889 = vcmp.eq.f32.partialorder %v761, inf
      %vm890 = vcmp.eq.f32.partialorder %v762, inf
      %vm891 = vcmp.eq.f32.partialorder %v763, inf
      %vm892 = vcmp.eq.f32.partialorder %v764, inf
      %v893 = vsel %vm765, 1000.0, %v637
      %v894 = vsel %vm766, 1000.0, %v638
      %v895 = vsel %vm767, 1000.0, %v639
      %v896 = vsel %vm768, 1000.0, %v640
      %v897 = vsel %vm769, 1000.0, %v641
      %v898 = vsel %vm770, 1000.0, %v642
      %v899 = vsel %vm771, 1000.0, %v643
      %v900 = vsel %vm772, 1000.0, %v644
      %v901 = vsel %vm773, 1000.0, %v645
      %v902 = vsel %vm774, 1000.0, %v646
      %v903 = vsel %vm775, 1000.0, %v647
      %v904 = vsel %vm776, 1000.0, %v648
      %v905 = vsel %vm777, 1000.0, %v649
      %v906 = vsel %vm778, 1000.0, %v650
      %v907 = vsel %vm779, 1000.0, %v651
      %v908 = vsel %vm780, 1000.0, %v652
      %v909 = vsel %vm781, 1000.0, %v653
      %v910 = vsel %vm782, 1000.0, %v654
      %v911 = vsel %vm783, 1000.0, %v655
      %v912 = vsel %vm784, 1000.0, %v656
      %v913 = vsel %vm785, 1000.0, %v657
      %v914 = vsel %vm786, 1000.0, %v658
      %v915 = vsel %vm787, 1000.0, %v659
      %v916 = vsel %vm788, 1000.0, %v660
      %v917 = vsel %vm789, 1000.0, %v661
      %v918 = vsel %vm790, 1000.0, %v662
      %v919 = vsel %vm791, 1000.0, %v663
      %v920 = vsel %vm792, 1000.0, %v664
      %v921 = vsel %vm793, 1000.0, %v665
      %v922 = vsel %vm794, 1000.0, %v666
      %v923 = vsel %vm795, 1000.0, %v667
      %v924 = vsel %vm796, 1000.0, %v668
      %v925 = vsel %vm797, 1000.0, %v669
      %v926 = vsel %vm798, 1000.0, %v670
      %v927 = vsel %vm799, 1000.0, %v671
      %v928 = vsel %vm800, 1000.0, %v672
      %v929 = vsel %vm801, 1000.0, %v673
      %v930 = vsel %vm802, 1000.0, %v674
      %v931 = vsel %vm803, 1000.0, %v675
      %v932 = vsel %vm804, 1000.0, %v676
      %v933 = vsel %vm805, 1000.0, %v677
      %v934 = vsel %vm806, 1000.0, %v678
      %v935 = vsel %vm807, 1000.0, %v679
      %v936 = vsel %vm808, 1000.0, %v680
      %v937 = vsel %vm809, 1000.0, %v681
      %v938 = vsel %vm810, 1000.0, %v682
      %v939 = vsel %vm811, 1000.0, %v683
      %v940 = vsel %vm812, 1000.0, %v684
      %v941 = vsel %vm813, 1000.0, %v685
      %v942 = vsel %vm814, 1000.0, %v686
      %v943 = vsel %vm815, 1000.0, %v687
      %v944 = vsel %vm816, 1000.0, %v688
      %v945 = vsel %vm817, 1000.0, %v689
      %v946 = vsel %vm818, 1000.0, %v690
      %v947 = vsel %vm819, 1000.0, %v691
      %v948 = vsel %vm820, 1000.0, %v692
      %v949 = vsel %vm821, 1000.0, %v693
      %v950 = vsel %vm822, 1000.0, %v694
      %v951 = vsel %vm823, 1000.0, %v695
      %v952 = vsel %vm824, 1000.0, %v696
      %v953 = vsel %vm825, 1000.0, %v697
      %v954 = vsel %vm826, 1000.0, %v698
      %v955 = vsel %vm827, 1000.0, %v699
      %v956 = vsel %vm828, 1000.0, %v700
      %v957 = vsel %vm829, 1000.0, %v701
      %v958 = vsel %vm830, 1000.0, %v702
      %v959 = vsel %vm831, 1000.0, %v703
      %v960 = vsel %vm832, 1000.0, %v704
      %v961 = vsel %vm833, 1000.0, %v705
      %v962 = vsel %vm834, 1000.0, %v706
      %v963 = vsel %vm835, 1000.0, %v707
      %v964 = vsel %vm836, 1000.0, %v708
      %v965 = vsel %vm837, 1000.0, %v709
      %v966 = vsel %vm838, 1000.0, %v710
      %v967 = vsel %vm839, 1000.0, %v711
      %v968 = vsel %vm840, 1000.0, %v712
      %v969 = vsel %vm841, 1000.0, %v713
      %v970 = vsel %vm842, 1000.0, %v714
      %v971 = vsel %vm843, 1000.0, %v715
      %v972 = vsel %vm844, 1000.0, %v716
      %v973 = vsel %vm845, 1000.0, %v717
      %v974 = vsel %vm846, 1000.0, %v718
      %v975 = vsel %vm847, 1000.0, %v719
      %v976 = vsel %vm848, 1000.0, %v720
      %v977 = vsel %vm849, 1000.0, %v721
      %v978 = vsel %vm850, 1000.0, %v722
      %v979 = vsel %vm851, 1000.0, %v723
      %v980 = vsel %vm852, 1000.0, %v724
      %v981 = vsel %vm853, 1000.0, %v725
      %v982 = vsel %vm854, 1000.0, %v726
      %v983 = vsel %vm855, 1000.0, %v727
      %v984 = vsel %vm856, 1000.0, %v728
      %v985 = vsel %vm857, 1000.0, %v729
      %v986 = vsel %vm858, 1000.0, %v730
      %v987 = vsel %vm859, 1000.0, %v731
      %v988 = vsel %vm860, 1000.0, %v732
      %v989 = vsel %vm861, 1000.0, %v733
      %v990 = vsel %vm862, 1000.0, %v734
      %v991 = vsel %vm863, 1000.0, %v735
      %v992 = vsel %vm864, 1000.0, %v736
      %v993 = vsel %vm865, 1000.0, %v737
      %v994 = vsel %vm866, 1000.0, %v738
      %v995 = vsel %vm867, 1000.0, %v739
      %v996 = vsel %vm868, 1000.0, %v740
      %v997 = vsel %vm869, 1000.0, %v741
      %v998 = vsel %vm870, 1000.0, %v742
      %v999 = vsel %vm871, 1000.0, %v743
      %v1000 = vsel %vm872, 1000.0, %v744
      %v1001 = vsel %vm873, 1000.0, %v745
      %v1002 = vsel %vm874, 1000.0, %v746
      %v1003 = vsel %vm875, 1000.0, %v747
      %v1004 = vsel %vm876, 1000.0, %v748
      %v1005 = vsel %vm877, 1000.0, %v749
      %v1006 = vsel %vm878, 1000.0, %v750
      %v1007 = vsel %vm879, 1000.0, %v751
      %v1008 = vsel %vm880, 1000.0, %v752
      %v1009 = vsel %vm881, 1000.0, %v753
      %v1010 = vsel %vm882, 1000.0, %v754
      %v1011 = vsel %vm883, 1000.0, %v755
      %v1012 = vsel %vm884, 1000.0, %v756
      %v1013 = vsel %vm885, 1000.0, %v757
      %v1014 = vsel %vm886, 1000.0, %v758
      %v1015 = vsel %vm887, 1000.0, %v759
      %v1016 = vsel %vm888, 1000.0, %v760
      %v1017 = vsel %vm889, 1000.0, %v761
      %v1018 = vsel %vm890, 1000.0, %v762
      %v1019 = vsel %vm891, 1000.0, %v763
      %v1020 = vsel %vm892, 1000.0, %v764
      %vm1021 = vcmp.eq.f32.partialorder %v893, -inf
      %vm1022 = vcmp.eq.f32.partialorder %v894, -inf
      %vm1023 = vcmp.eq.f32.partialorder %v895, -inf
      %vm1024 = vcmp.eq.f32.partialorder %v896, -inf
      %vm1025 = vcmp.eq.f32.partialorder %v897, -inf
      %vm1026 = vcmp.eq.f32.partialorder %v898, -inf
      %vm1027 = vcmp.eq.f32.partialorder %v899, -inf
      %vm1028 = vcmp.eq.f32.partialorder %v900, -inf
      %vm1029 = vcmp.eq.f32.partialorder %v901, -inf
      %vm1030 = vcmp.eq.f32.partialorder %v902, -inf
      %vm1031 = vcmp.eq.f32.partialorder %v903, -inf
      %vm1032 = vcmp.eq.f32.partialorder %v904, -inf
      %vm1033 = vcmp.eq.f32.partialorder %v905, -inf
      %vm1034 = vcmp.eq.f32.partialorder %v906, -inf
      %vm1035 = vcmp.eq.f32.partialorder %v907, -inf
      %vm1036 = vcmp.eq.f32.partialorder %v908, -inf
      %vm1037 = vcmp.eq.f32.partialorder %v909, -inf
      %vm1038 = vcmp.eq.f32.partialorder %v910, -inf
      %vm1039 = vcmp.eq.f32.partialorder %v911, -inf
      %vm1040 = vcmp.eq.f32.partialorder %v912, -inf
      %vm1041 = vcmp.eq.f32.partialorder %v913, -inf
      %vm1042 = vcmp.eq.f32.partialorder %v914, -inf
      %vm1043 = vcmp.eq.f32.partialorder %v915, -inf
      %vm1044 = vcmp.eq.f32.partialorder %v916, -inf
      %vm1045 = vcmp.eq.f32.partialorder %v917, -inf
      %vm1046 = vcmp.eq.f32.partialorder %v918, -inf
      %vm1047 = vcmp.eq.f32.partialorder %v919, -inf
      %vm1048 = vcmp.eq.f32.partialorder %v920, -inf
      %vm1049 = vcmp.eq.f32.partialorder %v921, -inf
      %vm1050 = vcmp.eq.f32.partialorder %v922, -inf
      %vm1051 = vcmp.eq.f32.partialorder %v923, -inf
      %vm1052 = vcmp.eq.f32.partialorder %v924, -inf
      %vm1053 = vcmp.eq.f32.partialorder %v925, -inf
      %vm1054 = vcmp.eq.f32.partialorder %v926, -inf
      %vm1055 = vcmp.eq.f32.partialorder %v927, -inf
      %vm1056 = vcmp.eq.f32.partialorder %v928, -inf
      %vm1057 = vcmp.eq.f32.partialorder %v929, -inf
      %vm1058 = vcmp.eq.f32.partialorder %v930, -inf
      %vm1059 = vcmp.eq.f32.partialorder %v931, -inf
      %vm1060 = vcmp.eq.f32.partialorder %v932, -inf
      %vm1061 = vcmp.eq.f32.partialorder %v933, -inf
      %vm1062 = vcmp.eq.f32.partialorder %v934, -inf
      %vm1063 = vcmp.eq.f32.partialorder %v935, -inf
      %vm1064 = vcmp.eq.f32.partialorder %v936, -inf
      %vm1065 = vcmp.eq.f32.partialorder %v937, -inf
      %vm1066 = vcmp.eq.f32.partialorder %v938, -inf
      %vm1067 = vcmp.eq.f32.partialorder %v939, -inf
      %vm1068 = vcmp.eq.f32.partialorder %v940, -inf
      %vm1069 = vcmp.eq.f32.partialorder %v941, -inf
      %vm1070 = vcmp.eq.f32.partialorder %v942, -inf
      %vm1071 = vcmp.eq.f32.partialorder %v943, -inf
      %vm1072 = vcmp.eq.f32.partialorder %v944, -inf
      %vm1073 = vcmp.eq.f32.partialorder %v945, -inf
      %vm1074 = vcmp.eq.f32.partialorder %v946, -inf
      %vm1075 = vcmp.eq.f32.partialorder %v947, -inf
      %vm1076 = vcmp.eq.f32.partialorder %v948, -inf
      %vm1077 = vcmp.eq.f32.partialorder %v949, -inf
      %vm1078 = vcmp.eq.f32.partialorder %v950, -inf
      %vm1079 = vcmp.eq.f32.partialorder %v951, -inf
      %vm1080 = vcmp.eq.f32.partialorder %v952, -inf
      %vm1081 = vcmp.eq.f32.partialorder %v953, -inf
      %vm1082 = vcmp.eq.f32.partialorder %v954, -inf
      %vm1083 = vcmp.eq.f32.partialorder %v955, -inf
      %vm1084 = vcmp.eq.f32.partialorder %v956, -inf
      %vm1085 = vcmp.eq.f32.partialorder %v957, -inf
      %vm1086 = vcmp.eq.f32.partialorder %v958, -inf
      %vm1087 = vcmp.eq.f32.partialorder %v959, -inf
      %vm1088 = vcmp.eq.f32.partialorder %v960, -inf
      %vm1089 = vcmp.eq.f32.partialorder %v961, -inf
      %vm1090 = vcmp.eq.f32.partialorder %v962, -inf
      %vm1091 = vcmp.eq.f32.partialorder %v963, -inf
      %vm1092 = vcmp.eq.f32.partialorder %v964, -inf
      %vm1093 = vcmp.eq.f32.partialorder %v965, -inf
      %vm1094 = vcmp.eq.f32.partialorder %v966, -inf
      %vm1095 = vcmp.eq.f32.partialorder %v967, -inf
      %vm1096 = vcmp.eq.f32.partialorder %v968, -inf
      %vm1097 = vcmp.eq.f32.partialorder %v969, -inf
      %vm1098 = vcmp.eq.f32.partialorder %v970, -inf
      %vm1099 = vcmp.eq.f32.partialorder %v971, -inf
      %vm1100 = vcmp.eq.f32.partialorder %v972, -inf
      %vm1101 = vcmp.eq.f32.partialorder %v973, -inf
      %vm1102 = vcmp.eq.f32.partialorder %v974, -inf
      %vm1103 = vcmp.eq.f32.partialorder %v975, -inf
      %vm1104 = vcmp.eq.f32.partialorder %v976, -inf
      %vm1105 = vcmp.eq.f32.partialorder %v977, -inf
      %vm1106 = vcmp.eq.f32.partialorder %v978, -inf
      %vm1107 = vcmp.eq.f32.partialorder %v979, -inf
      %vm1108 = vcmp.eq.f32.partialorder %v980, -inf
      %vm1109 = vcmp.eq.f32.partialorder %v981, -inf
      %vm1110 = vcmp.eq.f32.partialorder %v982, -inf
      %vm1111 = vcmp.eq.f32.partialorder %v983, -inf
      %vm1112 = vcmp.eq.f32.partialorder %v984, -inf
      %vm1113 = vcmp.eq.f32.partialorder %v985, -inf
      %vm1114 = vcmp.eq.f32.partialorder %v986, -inf
      %vm1115 = vcmp.eq.f32.partialorder %v987, -inf
      %vm1116 = vcmp.eq.f32.partialorder %v988, -inf
      %vm1117 = vcmp.eq.f32.partialorder %v989, -inf
      %vm1118 = vcmp.eq.f32.partialorder %v990, -inf
      %vm1119 = vcmp.eq.f32.partialorder %v991, -inf
      %vm1120 = vcmp.eq.f32.partialorder %v992, -inf
      %vm1121 = vcmp.eq.f32.partialorder %v993, -inf
      %vm1122 = vcmp.eq.f32.partialorder %v994, -inf
      %vm1123 = vcmp.eq.f32.partialorder %v995, -inf
      %vm1124 = vcmp.eq.f32.partialorder %v996, -inf
      %vm1125 = vcmp.eq.f32.partialorder %v997, -inf
      %vm1126 = vcmp.eq.f32.partialorder %v998, -inf
      %vm1127 = vcmp.eq.f32.partialorder %v999, -inf
      %vm1128 = vcmp.eq.f32.partialorder %v1000, -inf
      %vm1129 = vcmp.eq.f32.partialorder %v1001, -inf
      %vm1130 = vcmp.eq.f32.partialorder %v1002, -inf
      %vm1131 = vcmp.eq.f32.partialorder %v1003, -inf
      %vm1132 = vcmp.eq.f32.partialorder %v1004, -inf
      %vm1133 = vcmp.eq.f32.partialorder %v1005, -inf
      %vm1134 = vcmp.eq.f32.partialorder %v1006, -inf
      %vm1135 = vcmp.eq.f32.partialorder %v1007, -inf
      %vm1136 = vcmp.eq.f32.partialorder %v1008, -inf
      %vm1137 = vcmp.eq.f32.partialorder %v1009, -inf
      %vm1138 = vcmp.eq.f32.partialorder %v1010, -inf
      %vm1139 = vcmp.eq.f32.partialorder %v1011, -inf
      %vm1140 = vcmp.eq.f32.partialorder %v1012, -inf
      %vm1141 = vcmp.eq.f32.partialorder %v1013, -inf
      %vm1142 = vcmp.eq.f32.partialorder %v1014, -inf
      %vm1143 = vcmp.eq.f32.partialorder %v1015, -inf
      %vm1144 = vcmp.eq.f32.partialorder %v1016, -inf
      %vm1145 = vcmp.eq.f32.partialorder %v1017, -inf
      %vm1146 = vcmp.eq.f32.partialorder %v1018, -inf
      %vm1147 = vcmp.eq.f32.partialorder %v1019, -inf
      %vm1148 = vcmp.eq.f32.partialorder %v1020, -inf
      %v1149 = vsel %vm1021, -1000.0, %v893
      %v1150 = vsel %vm1022, -1000.0, %v894
      %v1151 = vsel %vm1023, -1000.0, %v895
      %v1152 = vsel %vm1024, -1000.0, %v896
      %v1153 = vsel %vm1025, -1000.0, %v897
      %v1154 = vsel %vm1026, -1000.0, %v898
      %v1155 = vsel %vm1027, -1000.0, %v899
      %v1156 = vsel %vm1028, -1000.0, %v900
      %v1157 = vsel %vm1029, -1000.0, %v901
      %v1158 = vsel %vm1030, -1000.0, %v902
      %v1159 = vsel %vm1031, -1000.0, %v903
      %v1160 = vsel %vm1032, -1000.0, %v904
      %v1161 = vsel %vm1033, -1000.0, %v905
      %v1162 = vsel %vm1034, -1000.0, %v906
      %v1163 = vsel %vm1035, -1000.0, %v907
      %v1164 = vsel %vm1036, -1000.0, %v908
      %v1165 = vsel %vm1037, -1000.0, %v909
      %v1166 = vsel %vm1038, -1000.0, %v910
      %v1167 = vsel %vm1039, -1000.0, %v911
      %v1168 = vsel %vm1040, -1000.0, %v912
      %v1169 = vsel %vm1041, -1000.0, %v913
      %v1170 = vsel %vm1042, -1000.0, %v914
      %v1171 = vsel %vm1043, -1000.0, %v915
      %v1172 = vsel %vm1044, -1000.0, %v916
      %v1173 = vsel %vm1045, -1000.0, %v917
      %v1174 = vsel %vm1046, -1000.0, %v918
      %v1175 = vsel %vm1047, -1000.0, %v919
      %v1176 = vsel %vm1048, -1000.0, %v920
      %v1177 = vsel %vm1049, -1000.0, %v921
      %v1178 = vsel %vm1050, -1000.0, %v922
      %v1179 = vsel %vm1051, -1000.0, %v923
      %v1180 = vsel %vm1052, -1000.0, %v924
      %v1181 = vsel %vm1053, -1000.0, %v925
      %v1182 = vsel %vm1054, -1000.0, %v926
      %v1183 = vsel %vm1055, -1000.0, %v927
      %v1184 = vsel %vm1056, -1000.0, %v928
      %v1185 = vsel %vm1057, -1000.0, %v929
      %v1186 = vsel %vm1058, -1000.0, %v930
      %v1187 = vsel %vm1059, -1000.0, %v931
      %v1188 = vsel %vm1060, -1000.0, %v932
      %v1189 = vsel %vm1061, -1000.0, %v933
      %v1190 = vsel %vm1062, -1000.0, %v934
      %v1191 = vsel %vm1063, -1000.0, %v935
      %v1192 = vsel %vm1064, -1000.0, %v936
      %v1193 = vsel %vm1065, -1000.0, %v937
      %v1194 = vsel %vm1066, -1000.0, %v938
      %v1195 = vsel %vm1067, -1000.0, %v939
      %v1196 = vsel %vm1068, -1000.0, %v940
      %v1197 = vsel %vm1069, -1000.0, %v941
      %v1198 = vsel %vm1070, -1000.0, %v942
      %v1199 = vsel %vm1071, -1000.0, %v943
      %v1200 = vsel %vm1072, -1000.0, %v944
      %v1201 = vsel %vm1073, -1000.0, %v945
      %v1202 = vsel %vm1074, -1000.0, %v946
      %v1203 = vsel %vm1075, -1000.0, %v947
      %v1204 = vsel %vm1076, -1000.0, %v948
      %v1205 = vsel %vm1077, -1000.0, %v949
      %v1206 = vsel %vm1078, -1000.0, %v950
      %v1207 = vsel %vm1079, -1000.0, %v951
      %v1208 = vsel %vm1080, -1000.0, %v952
      %v1209 = vsel %vm1081, -1000.0, %v953
      %v1210 = vsel %vm1082, -1000.0, %v954
      %v1211 = vsel %vm1083, -1000.0, %v955
      %v1212 = vsel %vm1084, -1000.0, %v956
      %v1213 = vsel %vm1085, -1000.0, %v957
      %v1214 = vsel %vm1086, -1000.0, %v958
      %v1215 = vsel %vm1087, -1000.0, %v959
      %v1216 = vsel %vm1088, -1000.0, %v960
      %v1217 = vsel %vm1089, -1000.0, %v961
      %v1218 = vsel %vm1090, -1000.0, %v962
      %v1219 = vsel %vm1091, -1000.0, %v963
      %v1220 = vsel %vm1092, -1000.0, %v964
      %v1221 = vsel %vm1093, -1000.0, %v965
      %v1222 = vsel %vm1094, -1000.0, %v966
      %v1223 = vsel %vm1095, -1000.0, %v967
      %v1224 = vsel %vm1096, -1000.0, %v968
      %v1225 = vsel %vm1097, -1000.0, %v969
      %v1226 = vsel %vm1098, -1000.0, %v970
      %v1227 = vsel %vm1099, -1000.0, %v971
      %v1228 = vsel %vm1100, -1000.0, %v972
      %v1229 = vsel %vm1101, -1000.0, %v973
      %v1230 = vsel %vm1102, -1000.0, %v974
      %v1231 = vsel %vm1103, -1000.0, %v975
      %v1232 = vsel %vm1104, -1000.0, %v976
      %v1233 = vsel %vm1105, -1000.0, %v977
      %v1234 = vsel %vm1106, -1000.0, %v978
      %v1235 = vsel %vm1107, -1000.0, %v979
      %v1236 = vsel %vm1108, -1000.0, %v980
      %v1237 = vsel %vm1109, -1000.0, %v981
      %v1238 = vsel %vm1110, -1000.0, %v982
      %v1239 = vsel %vm1111, -1000.0, %v983
      %v1240 = vsel %vm1112, -1000.0, %v984
      %v1241 = vsel %vm1113, -1000.0, %v985
      %v1242 = vsel %vm1114, -1000.0, %v986
      %v1243 = vsel %vm1115, -1000.0, %v987
      %v1244 = vsel %vm1116, -1000.0, %v988
      %v1245 = vsel %vm1117, -1000.0, %v989
      %v1246 = vsel %vm1118, -1000.0, %v990
      %v1247 = vsel %vm1119, -1000.0, %v991
      %v1248 = vsel %vm1120, -1000.0, %v992
      %v1249 = vsel %vm1121, -1000.0, %v993
      %v1250 = vsel %vm1122, -1000.0, %v994
      %v1251 = vsel %vm1123, -1000.0, %v995
      %v1252 = vsel %vm1124, -1000.0, %v996
      %v1253 = vsel %vm1125, -1000.0, %v997
      %v1254 = vsel %vm1126, -1000.0, %v998
      %v1255 = vsel %vm1127, -1000.0, %v999
      %v1256 = vsel %vm1128, -1000.0, %v1000
      %v1257 = vsel %vm1129, -1000.0, %v1001
      %v1258 = vsel %vm1130, -1000.0, %v1002
      %v1259 = vsel %vm1131, -1000.0, %v1003
      %v1260 = vsel %vm1132, -1000.0, %v1004
      %v1261 = vsel %vm1133, -1000.0, %v1005
      %v1262 = vsel %vm1134, -1000.0, %v1006
      %v1263 = vsel %vm1135, -1000.0, %v1007
      %v1264 = vsel %vm1136, -1000.0, %v1008
      %v1265 = vsel %vm1137, -1000.0, %v1009
      %v1266 = vsel %vm1138, -1000.0, %v1010
      %v1267 = vsel %vm1139, -1000.0, %v1011
      %v1268 = vsel %vm1140, -1000.0, %v1012
      %v1269 = vsel %vm1141, -1000.0, %v1013
      %v1270 = vsel %vm1142, -1000.0, %v1014
      %v1271 = vsel %vm1143, -1000.0, %v1015
      %v1272 = vsel %vm1144, -1000.0, %v1016
      %v1273 = vsel %vm1145, -1000.0, %v1017
      %v1274 = vsel %vm1146, -1000.0, %v1018
      %v1275 = vsel %vm1147, -1000.0, %v1019
      %v1276 = vsel %vm1148, -1000.0, %v1020
      %v1277 = vpack.c.bf16 %v1157, %v1149
      %v1278 = vpack.c.bf16 %v1158, %v1150
      %v1279 = vpack.c.bf16 %v1159, %v1151
      %v1280 = vpack.c.bf16 %v1160, %v1152
      %v1281 = vpack.c.bf16 %v1161, %v1153
      %v1282 = vpack.c.bf16 %v1162, %v1154
      %v1283 = vpack.c.bf16 %v1163, %v1155
      %v1284 = vpack.c.bf16 %v1164, %v1156
      %v1285 = vpack.c.bf16 %v1173, %v1165
      %v1286 = vpack.c.bf16 %v1174, %v1166
      %v1287 = vpack.c.bf16 %v1175, %v1167
      %v1288 = vpack.c.bf16 %v1176, %v1168
      %v1289 = vpack.c.bf16 %v1177, %v1169
      %v1290 = vpack.c.bf16 %v1178, %v1170
      %v1291 = vpack.c.bf16 %v1179, %v1171
      %v1292 = vpack.c.bf16 %v1180, %v1172
      %v1293 = vpack.c.bf16 %v1189, %v1181
      %v1294 = vpack.c.bf16 %v1190, %v1182
      %v1295 = vpack.c.bf16 %v1191, %v1183
      %v1296 = vpack.c.bf16 %v1192, %v1184
      %v1297 = vpack.c.bf16 %v1193, %v1185
      %v1298 = vpack.c.bf16 %v1194, %v1186
      %v1299 = vpack.c.bf16 %v1195, %v1187
      %v1300 = vpack.c.bf16 %v1196, %v1188
      %v1301 = vpack.c.bf16 %v1205, %v1197
      %v1302 = vpack.c.bf16 %v1206, %v1198
      %v1303 = vpack.c.bf16 %v1207, %v1199
      %v1304 = vpack.c.bf16 %v1208, %v1200
      %v1305 = vpack.c.bf16 %v1209, %v1201
      %v1306 = vpack.c.bf16 %v1210, %v1202
      %v1307 = vpack.c.bf16 %v1211, %v1203
      %v1308 = vpack.c.bf16 %v1212, %v1204
      %v1309 = vpack.c.bf16 %v1221, %v1213
      %v1310 = vpack.c.bf16 %v1222, %v1214
      %v1311 = vpack.c.bf16 %v1223, %v1215
      %v1312 = vpack.c.bf16 %v1224, %v1216
      %v1313 = vpack.c.bf16 %v1225, %v1217
      %v1314 = vpack.c.bf16 %v1226, %v1218
      %v1315 = vpack.c.bf16 %v1227, %v1219
      %v1316 = vpack.c.bf16 %v1228, %v1220
      %v1317 = vpack.c.bf16 %v1237, %v1229
      %v1318 = vpack.c.bf16 %v1238, %v1230
      %v1319 = vpack.c.bf16 %v1239, %v1231
      %v1320 = vpack.c.bf16 %v1240, %v1232
      %v1321 = vpack.c.bf16 %v1241, %v1233
      %v1322 = vpack.c.bf16 %v1242, %v1234
      %v1323 = vpack.c.bf16 %v1243, %v1235
      %v1324 = vpack.c.bf16 %v1244, %v1236
      %v1325 = vpack.c.bf16 %v1253, %v1245
      %v1326 = vpack.c.bf16 %v1254, %v1246
      %v1327 = vpack.c.bf16 %v1255, %v1247
      %v1328 = vpack.c.bf16 %v1256, %v1248
      %v1329 = vpack.c.bf16 %v1257, %v1249
      %v1330 = vpack.c.bf16 %v1258, %v1250
      %v1331 = vpack.c.bf16 %v1259, %v1251
      %v1332 = vpack.c.bf16 %v1260, %v1252
      %v1333 = vpack.c.bf16 %v1269, %v1261
      %v1334 = vpack.c.bf16 %v1270, %v1262
      %v1335 = vpack.c.bf16 %v1271, %v1263
      %v1336 = vpack.c.bf16 %v1272, %v1264
      %v1337 = vpack.c.bf16 %v1273, %v1265
      %v1338 = vpack.c.bf16 %v1274, %v1266
      %v1339 = vpack.c.bf16 %v1275, %v1267
      %v1340 = vpack.c.bf16 %v1276, %v1268
      %v1341 = vld [vmem:[%s1] sm:$0xf]
      %v1342 = vld [vmem:[%s1 + $0x4] sm:$0xf]
      %v1343 = vld [vmem:[%s1 + $0x8] sm:$0xf]
      %v1344 = vld [vmem:[%s1 + $0xc] sm:$0xf]
      %v1345 = vld [vmem:[%s1 + $0x10] sm:$0xf]
      %v1346 = vld [vmem:[%s1 + $0x14] sm:$0xf]
      %v1347 = vld [vmem:[%s1 + $0x18] sm:$0xf]
      %v1348 = vld [vmem:[%s1 + $0x1c] sm:$0xf]
      %v1349 = vld [vmem:[%s1 + $0x20] sm:$0xf]
      %v1359 = vunpack.c.l.b16 %v1341
      %v1360 = vunpack.c.l.b16 %v1342
      %v1361 = vunpack.c.l.b16 %v1343
      %v1362 = vunpack.c.l.b16 %v1344
      %v1363 = vunpack.c.l.b16 %v1345
      %v1364 = vunpack.c.l.b16 %v1346
      %v1365 = vunpack.c.l.b16 %v1347
      %v1366 = vunpack.c.l.b16 %v1348
      %v1367 = vunpack.c.l.b16 %v1349
      %v1368 = vpack.c.b16 %v1360, %v1359
      %v1369 = vpack.c.b16 %v1362, %v1361
      %v1370 = vpack.c.b16 %v1364, %v1363
      %v1371 = vpack.c.b16 %v1366, %v1365
      %v1372 = vpack.c.b16 %v1367, %v1367
      %1378 = vmatprep.subr.bf16.mxu0 %v1334
      %1379 = vmatpush1.bf16.msra.mxu0 %v1333
      %1380 = vmatprep.subr.bf16.mxu0 %v1326
      %1381 = vmatpush1.bf16.msra.mxu0 %v1325
      %1382 = vmatprep.subr.bf16.mxu0 %v1318
      %1383 = vmatpush1.bf16.msra.mxu0 %v1317
      %1384 = vmatprep.subr.bf16.mxu0 %v1310
      %1385 = vmatpush1.bf16.msra.mxu0 %v1309
      %1386 = vmatprep.subr.bf16.mxu0 %v1302
      %1387 = vmatpush1.bf16.msra.mxu0 %v1301
      %1388 = vmatprep.subr.bf16.mxu0 %v1294
      %1389 = vmatpush1.bf16.msra.mxu0 %v1293
      %1390 = vmatprep.subr.bf16.mxu0 %v1286
      %1391 = vmatpush1.bf16.msra.mxu0 %v1285
      %1392 = vmatprep.subr.bf16.mxu0 %v1278
      %1393 = vmatpush1.bf16.msra.mxu0 %v1277
      %1394 = vmatprep.subr.bf16.mxu0 0
      %1395 = vmatpush2.bf16.msra.mxu0 0
      %1396 = vmatprep.subr.bf16.mxu0 0
      %1397 = vmatpush2.bf16.msra.mxu0 0
      %1398 = vmatprep.subr.bf16.mxu0 0
      %1399 = vmatpush2.bf16.msra.mxu0 0
      %1400 = vmatprep.subr.bf16.mxu0 0
      %1401 = vmatpush2.bf16.msra.mxu0 0
      %1402 = vmatprep.subr.bf16.mxu0 0
      %1403 = vmatpush2.bf16.msra.mxu0 0
      %1404 = vmatprep.subr.bf16.mxu0 0
      %1405 = vmatpush2.bf16.msra.mxu0 0
      %1406 = vmatprep.subr.bf16.mxu0 0
      %1407 = vmatpush2.bf16.msra.mxu0 0
      %1408 = vmatprep.subr.bf16.mxu0 0
      %1409 = vmatpush2.bf16.msra.mxu0 0
      %1410 = vmatprep.mubr.bf16.mxu0 0
      %1411 = vmatmul.mubr.bf16.gmra.mxu0 %v1368
      %v1412 = vpop.f32.mrf.mxu0
      %v1413 = vadd.f32 0.0, %v1412
      %v1414 = vpop.f32.mrf.mxu0
      %v1415 = vadd.f32 0.0, %v1414
      %v1416 = vpop.f32.mrf.mxu0
      %v1417 = vadd.f32 0.0, %v1416
      %v1418 = vpop.f32.mrf.mxu0
      %v1419 = vadd.f32 0.0, %v1418
      %1420 = vmatprep.mubr.bf16.mxu0 0
      %1421 = vmatmul.mubr.bf16.gmra.mxu0 %v1369
      %v1422 = vpop.f32.mrf.mxu0
      %v1423 = vadd.f32 0.0, %v1422
      %v1424 = vpop.f32.mrf.mxu0
      %v1425 = vadd.f32 0.0, %v1424
      %v1426 = vpop.f32.mrf.mxu0
      %v1427 = vadd.f32 0.0, %v1426
      %v1428 = vpop.f32.mrf.mxu0
      %v1429 = vadd.f32 0.0, %v1428
      %1430 = vmatprep.mubr.bf16.mxu0 0
      %1431 = vmatmul.mubr.bf16.gmra.mxu0 %v1370
      %v1432 = vpop.f32.mrf.mxu0
      %v1433 = vadd.f32 0.0, %v1432
      %v1434 = vpop.f32.mrf.mxu0
      %v1435 = vadd.f32 0.0, %v1434
      %v1436 = vpop.f32.mrf.mxu0
      %v1437 = vadd.f32 0.0, %v1436
      %v1438 = vpop.f32.mrf.mxu0
      %v1439 = vadd.f32 0.0, %v1438
      %1440 = vmatprep.mubr.bf16.mxu0 0
      %1441 = vmatmul.mubr.bf16.gmra.mxu0 %v1371
      %v1442 = vpop.f32.mrf.mxu0
      %v1443 = vadd.f32 0.0, %v1442
      %v1444 = vpop.f32.mrf.mxu0
      %v1445 = vadd.f32 0.0, %v1444
      %v1446 = vpop.f32.mrf.mxu0
      %v1447 = vadd.f32 0.0, %v1446
      %v1448 = vpop.f32.mrf.mxu0
      %v1449 = vadd.f32 0.0, %v1448
      %1450 = vmatprep.mubr.bf16.mxu0 0
      %1451 = vmatmul.mubr.bf16.gmra.mxu0 %v1372
      %v1452 = vpop.f32.mrf.mxu0
      %v1453 = vadd.f32 0.0, %v1452
      %v1454 = vpop.f32.mrf.mxu0
      %v1455 = vadd.f32 0.0, %v1454
      %v1456 = vpop.f32.mrf.mxu0
      %v1457 = vpop.f32.mrf.mxu0
      %1458 = vdwg.mxu0
      %1459 = vmatprep.subr.bf16.mxu0 %v1336
      %1460 = vmatpush1.bf16.msra.mxu0 %v1335
      %1461 = vmatprep.subr.bf16.mxu0 %v1328
      %1462 = vmatpush1.bf16.msra.mxu0 %v1327
      %1463 = vmatprep.subr.bf16.mxu0 %v1320
      %1464 = vmatpush1.bf16.msra.mxu0 %v1319
      %1465 = vmatprep.subr.bf16.mxu0 %v1312
      %1466 = vmatpush1.bf16.msra.mxu0 %v1311
      %1467 = vmatprep.subr.bf16.mxu0 %v1304
      %1468 = vmatpush1.bf16.msra.mxu0 %v1303
      %1469 = vmatprep.subr.bf16.mxu0 %v1296
      %1470 = vmatpush1.bf16.msra.mxu0 %v1295
      %1471 = vmatprep.subr.bf16.mxu0 %v1288
      %1472 = vmatpush1.bf16.msra.mxu0 %v1287
      %1473 = vmatprep.subr.bf16.mxu0 %v1280
      %1474 = vmatpush1.bf16.msra.mxu0 %v1279
      %1475 = vmatprep.subr.bf16.mxu0 0
      %1476 = vmatpush2.bf16.msra.mxu0 0
      %1477 = vmatprep.subr.bf16.mxu0 0
      %1478 = vmatpush2.bf16.msra.mxu0 0
      %1479 = vmatprep.subr.bf16.mxu0 0
      %1480 = vmatpush2.bf16.msra.mxu0 0
      %1481 = vmatprep.subr.bf16.mxu0 0
      %1482 = vmatpush2.bf16.msra.mxu0 0
      %1483 = vmatprep.subr.bf16.mxu0 0
      %1484 = vmatpush2.bf16.msra.mxu0 0
      %1485 = vmatprep.subr.bf16.mxu0 0
      %1486 = vmatpush2.bf16.msra.mxu0 0
      %1487 = vmatprep.subr.bf16.mxu0 0
      %1488 = vmatpush2.bf16.msra.mxu0 0
      %1489 = vmatprep.subr.bf16.mxu0 0
      %1490 = vmatpush2.bf16.msra.mxu0 0
      %1491 = vmatprep.mubr.bf16.mxu0 0
      %1492 = vmatmul.mubr.bf16.gmra.mxu0 %v1368
      %v1493 = vpop.f32.mrf.mxu0
      %v1494 = vadd.f32 0.0, %v1493
      %v1495 = vpop.f32.mrf.mxu0
      %v1496 = vadd.f32 0.0, %v1495
      %v1497 = vpop.f32.mrf.mxu0
      %v1498 = vadd.f32 0.0, %v1497
      %v1499 = vpop.f32.mrf.mxu0
      %v1500 = vadd.f32 0.0, %v1499
      %1501 = vmatprep.mubr.bf16.mxu0 0
      %1502 = vmatmul.mubr.bf16.gmra.mxu0 %v1369
      %v1503 = vpop.f32.mrf.mxu0
      %v1504 = vadd.f32 0.0, %v1503
      %v1505 = vpop.f32.mrf.mxu0
      %v1506 = vadd.f32 0.0, %v1505
      %v1507 = vpop.f32.mrf.mxu0
      %v1508 = vadd.f32 0.0, %v1507
      %v1509 = vpop.f32.mrf.mxu0
      %v1510 = vadd.f32 0.0, %v1509
      %1511 = vmatprep.mubr.bf16.mxu0 0
      %1512 = vmatmul.mubr.bf16.gmra.mxu0 %v1370
      %v1513 = vpop.f32.mrf.mxu0
      %v1514 = vadd.f32 0.0, %v1513
      %v1515 = vpop.f32.mrf.mxu0
      %v1516 = vadd.f32 0.0, %v1515
      %v1517 = vpop.f32.mrf.mxu0
      %v1518 = vadd.f32 0.0, %v1517
      %v1519 = vpop.f32.mrf.mxu0
      %v1520 = vadd.f32 0.0, %v1519
      %1521 = vmatprep.mubr.bf16.mxu0 0
      %1522 = vmatmul.mubr.bf16.gmra.mxu0 %v1371
      %v1523 = vpop.f32.mrf.mxu0
      %v1524 = vadd.f32 0.0, %v1523
      %v1525 = vpop.f32.mrf.mxu0
      %v1526 = vadd.f32 0.0, %v1525
      %v1527 = vpop.f32.mrf.mxu0
      %v1528 = vadd.f32 0.0, %v1527
      %v1529 = vpop.f32.mrf.mxu0
      %v1530 = vadd.f32 0.0, %v1529
      %1531 = vmatprep.mubr.bf16.mxu0 0
      %1532 = vmatmul.mubr.bf16.gmra.mxu0 %v1372
      %v1533 = vpop.f32.mrf.mxu0
      %v1534 = vadd.f32 0.0, %v1533
      %v1535 = vpop.f32.mrf.mxu0
      %v1536 = vadd.f32 0.0, %v1535
      %v1537 = vpop.f32.mrf.mxu0
      %v1538 = vpop.f32.mrf.mxu0
      %1539 = vdwg.mxu0
      %1540 = vmatprep.subr.bf16.mxu0 %v1338
      %1541 = vmatpush1.bf16.msra.mxu0 %v1337
      %1542 = vmatprep.subr.bf16.mxu0 %v1330
      %1543 = vmatpush1.bf16.msra.mxu0 %v1329
      %1544 = vmatprep.subr.bf16.mxu0 %v1322
      %1545 = vmatpush1.bf16.msra.mxu0 %v1321
      %1546 = vmatprep.subr.bf16.mxu0 %v1314
      %1547 = vmatpush1.bf16.msra.mxu0 %v1313
      %1548 = vmatprep.subr.bf16.mxu0 %v1306
      %1549 = vmatpush1.bf16.msra.mxu0 %v1305
      %1550 = vmatprep.subr.bf16.mxu0 %v1298
      %1551 = vmatpush1.bf16.msra.mxu0 %v1297
      %1552 = vmatprep.subr.bf16.mxu0 %v1290
      %1553 = vmatpush1.bf16.msra.mxu0 %v1289
      %1554 = vmatprep.subr.bf16.mxu0 %v1282
      %1555 = vmatpush1.bf16.msra.mxu0 %v1281
      %1556 = vmatprep.subr.bf16.mxu0 0
      %1557 = vmatpush2.bf16.msra.mxu0 0
      %1558 = vmatprep.subr.bf16.mxu0 0
      %1559 = vmatpush2.bf16.msra.mxu0 0
      %1560 = vmatprep.subr.bf16.mxu0 0
      %1561 = vmatpush2.bf16.msra.mxu0 0
      %1562 = vmatprep.subr.bf16.mxu0 0
      %1563 = vmatpush2.bf16.msra.mxu0 0
      %1564 = vmatprep.subr.bf16.mxu0 0
      %1565 = vmatpush2.bf16.msra.mxu0 0
      %1566 = vmatprep.subr.bf16.mxu0 0
      %1567 = vmatpush2.bf16.msra.mxu0 0
      %1568 = vmatprep.subr.bf16.mxu0 0
      %1569 = vmatpush2.bf16.msra.mxu0 0
      %1570 = vmatprep.subr.bf16.mxu0 0
      %1571 = vmatpush2.bf16.msra.mxu0 0
      %1572 = vmatprep.mubr.bf16.mxu0 0
      %1573 = vmatmul.mubr.bf16.gmra.mxu0 %v1368
      %v1574 = vpop.f32.mrf.mxu0
      %v1575 = vadd.f32 0.0, %v1574
      %v1576 = vpop.f32.mrf.mxu0
      %v1577 = vadd.f32 0.0, %v1576
      %v1578 = vpop.f32.mrf.mxu0
      %v1579 = vadd.f32 0.0, %v1578
      %v1580 = vpop.f32.mrf.mxu0
      %v1581 = vadd.f32 0.0, %v1580
      %1582 = vmatprep.mubr.bf16.mxu0 0
      %1583 = vmatmul.mubr.bf16.gmra.mxu0 %v1369
      %v1584 = vpop.f32.mrf.mxu0
      %v1585 = vadd.f32 0.0, %v1584
      %v1586 = vpop.f32.mrf.mxu0
      %v1587 = vadd.f32 0.0, %v1586
      %v1588 = vpop.f32.mrf.mxu0
      %v1589 = vadd.f32 0.0, %v1588
      %v1590 = vpop.f32.mrf.mxu0
      %v1591 = vadd.f32 0.0, %v1590
      %1592 = vmatprep.mubr.bf16.mxu0 0
      %1593 = vmatmul.mubr.bf16.gmra.mxu0 %v1370
      %v1594 = vpop.f32.mrf.mxu0
      %v1595 = vadd.f32 0.0, %v1594
      %v1596 = vpop.f32.mrf.mxu0
      %v1597 = vadd.f32 0.0, %v1596
      %v1598 = vpop.f32.mrf.mxu0
      %v1599 = vadd.f32 0.0, %v1598
      %v1600 = vpop.f32.mrf.mxu0
      %v1601 = vadd.f32 0.0, %v1600
      %1602 = vmatprep.mubr.bf16.mxu0 0
      %1603 = vmatmul.mubr.bf16.gmra.mxu0 %v1371
      %v1604 = vpop.f32.mrf.mxu0
      %v1605 = vadd.f32 0.0, %v1604
      %v1606 = vpop.f32.mrf.mxu0
      %v1607 = vadd.f32 0.0, %v1606
      %v1608 = vpop.f32.mrf.mxu0
      %v1609 = vadd.f32 0.0, %v1608
      %v1610 = vpop.f32.mrf.mxu0
      %v1611 = vadd.f32 0.0, %v1610
      %1612 = vmatprep.mubr.bf16.mxu0 0
      %1613 = vmatmul.mubr.bf16.gmra.mxu0 %v1372
      %v1614 = vpop.f32.mrf.mxu0
      %v1615 = vadd.f32 0.0, %v1614
      %v1616 = vpop.f32.mrf.mxu0
      %v1617 = vadd.f32 0.0, %v1616
      %v1618 = vpop.f32.mrf.mxu0
      %v1619 = vpop.f32.mrf.mxu0
      %1620 = vdwg.mxu0
      %1621 = vmatprep.subr.bf16.mxu0 %v1340
      %1622 = vmatpush1.bf16.msra.mxu0 %v1339
      %1623 = vmatprep.subr.bf16.mxu0 %v1332
      %1624 = vmatpush1.bf16.msra.mxu0 %v1331
      %1625 = vmatprep.subr.bf16.mxu0 %v1324
      %1626 = vmatpush1.bf16.msra.mxu0 %v1323
      %1627 = vmatprep.subr.bf16.mxu0 %v1316
      %1628 = vmatpush1.bf16.msra.mxu0 %v1315
      %1629 = vmatprep.subr.bf16.mxu0 %v1308
      %1630 = vmatpush1.bf16.msra.mxu0 %v1307
      %1631 = vmatprep.subr.bf16.mxu0 %v1300
      %1632 = vmatpush1.bf16.msra.mxu0 %v1299
      %1633 = vmatprep.subr.bf16.mxu0 %v1292
      %1634 = vmatpush1.bf16.msra.mxu0 %v1291
      %1635 = vmatprep.subr.bf16.mxu0 %v1284
      %1636 = vmatpush1.bf16.msra.mxu0 %v1283
      %1637 = vmatprep.subr.bf16.mxu0 0
      %1638 = vmatpush2.bf16.msra.mxu0 0
      %1639 = vmatprep.subr.bf16.mxu0 0
      %1640 = vmatpush2.bf16.msra.mxu0 0
      %1641 = vmatprep.subr.bf16.mxu0 0
      %1642 = vmatpush2.bf16.msra.mxu0 0
      %1643 = vmatprep.subr.bf16.mxu0 0
      %1644 = vmatpush2.bf16.msra.mxu0 0
      %1645 = vmatprep.subr.bf16.mxu0 0
      %1646 = vmatpush2.bf16.msra.mxu0 0
      %1647 = vmatprep.subr.bf16.mxu0 0
      %1648 = vmatpush2.bf16.msra.mxu0 0
      %1649 = vmatprep.subr.bf16.mxu0 0
      %1650 = vmatpush2.bf16.msra.mxu0 0
      %1651 = vmatprep.subr.bf16.mxu0 0
      %1652 = vmatpush2.bf16.msra.mxu0 0
      %1653 = vmatprep.mubr.bf16.mxu0 0
      %1654 = vmatmul.mubr.bf16.gmra.mxu0 %v1368
      %v1655 = vpop.f32.mrf.mxu0
      %v1656 = vadd.f32 0.0, %v1655
      %v1657 = vpop.f32.mrf.mxu0
      %v1658 = vadd.f32 0.0, %v1657
      %v1659 = vpop.f32.mrf.mxu0
      %v1660 = vadd.f32 0.0, %v1659
      %v1661 = vpop.f32.mrf.mxu0
      %v1662 = vadd.f32 0.0, %v1661
      %1663 = vmatprep.mubr.bf16.mxu0 0
      %1664 = vmatmul.mubr.bf16.gmra.mxu0 %v1369
      %v1665 = vpop.f32.mrf.mxu0
      %v1666 = vadd.f32 0.0, %v1665
      %v1667 = vpop.f32.mrf.mxu0
      %v1668 = vadd.f32 0.0, %v1667
      %v1669 = vpop.f32.mrf.mxu0
      %v1670 = vadd.f32 0.0, %v1669
      %v1671 = vpop.f32.mrf.mxu0
      %v1672 = vadd.f32 0.0, %v1671
      %1673 = vmatprep.mubr.bf16.mxu0 0
      %1674 = vmatmul.mubr.bf16.gmra.mxu0 %v1370
      %v1675 = vpop.f32.mrf.mxu0
      %v1676 = vadd.f32 0.0, %v1675
      %v1677 = vpop.f32.mrf.mxu0
      %v1678 = vadd.f32 0.0, %v1677
      %v1679 = vpop.f32.mrf.mxu0
      %v1680 = vadd.f32 0.0, %v1679
      %v1681 = vpop.f32.mrf.mxu0
      %v1682 = vadd.f32 0.0, %v1681
      %1683 = vmatprep.mubr.bf16.mxu0 0
      %1684 = vmatmul.mubr.bf16.gmra.mxu0 %v1371
      %v1685 = vpop.f32.mrf.mxu0
      %v1686 = vadd.f32 0.0, %v1685
      %v1687 = vpop.f32.mrf.mxu0
      %v1688 = vadd.f32 0.0, %v1687
      %v1689 = vpop.f32.mrf.mxu0
      %v1690 = vadd.f32 0.0, %v1689
      %v1691 = vpop.f32.mrf.mxu0
      %v1692 = vadd.f32 0.0, %v1691
      %1693 = vmatprep.mubr.bf16.mxu0 0
      %1694 = vmatmul.mubr.bf16.gmra.mxu0 %v1372
      %v1695 = vpop.f32.mrf.mxu0
      %v1696 = vadd.f32 0.0, %v1695
      %v1697 = vpop.f32.mrf.mxu0
      %v1698 = vadd.f32 0.0, %v1697
      %v1699 = vpop.f32.mrf.mxu0
      %v1700 = vpop.f32.mrf.mxu0
      %1701 = vdwg.mxu0
      %1710 = vrot.lane.b32.xlu0 %v1413, 33
      %v1711 = vpop.permute.xlu0 %1710
      %1712 = vrot.lane.b32.xlu0 %v1415, 33
      %v1713 = vpop.permute.xlu0 %1712
      %1714 = vrot.lane.b32.xlu0 %v1494, 33
      %v1715 = vpop.permute.xlu0 %1714
      %1716 = vrot.lane.b32.xlu0 %v1496, 33
      %v1717 = vpop.permute.xlu0 %1716
      %1718 = vrot.lane.b32.xlu0 %v1575, 33
      %v1719 = vpop.permute.xlu0 %1718
      %1720 = vrot.lane.b32.xlu0 %v1577, 33
      %v1721 = vpop.permute.xlu0 %1720
      %1722 = vrot.lane.b32.xlu0 %v1656, 33
      %v1723 = vpop.permute.xlu0 %1722
      %1724 = vrot.lane.b32.xlu0 %v1658, 33
      %v1725 = vpop.permute.xlu0 %1724
      %vm1726 = vcmask 269312
      %v1727 = vsel %vm1726, %v1711, %v1713
      %v1728 = vsel %vm1726, %v1713, %v1715
      %v1729 = vsel %vm1726, %v1715, %v1717
      %v1730 = vsel %vm1726, %v1717, %v1719
      %v1731 = vsel %vm1726, %v1719, %v1721
      %v1732 = vsel %vm1726, %v1721, %v1723
      %v1733 = vsel %vm1726, %v1723, %v1725
      %v1742 = vsel %vm1726, 0.0, %v1711
      %v1743 = vmul.f32 %v1742, %v325
      %v1744 = vmul.f32 %v1727, %v326
      %v1745 = vmul.f32 %v1728, %v327
      %v1746 = vmul.f32 %v1729, %v328
      %v1747 = vmul.f32 %v1730, %v329
      %v1748 = vmul.f32 %v1731, %v330
      %v1749 = vmul.f32 %v1732, %v331
      %v1750 = vmul.f32 %v1733, %v332
      %v1751 = vadd.f32 %v1743, 0.0
      %v1752 = vadd.f32 %v1744, 0.0
      %v1753 = vadd.f32 %v1745, 0.0
      %v1754 = vadd.f32 %v1746, 0.0
      %v1755 = vadd.f32 %v1747, 0.0
      %v1756 = vadd.f32 %v1748, 0.0
      %v1757 = vadd.f32 %v1749, 0.0
      %v1758 = vadd.f32 %v1750, 0.0
      %1767 = vrot.lane.b32.xlu0 %v1417, 32
      %v1768 = vpop.permute.xlu0 %1767
      %1769 = vrot.lane.b32.xlu0 %v1419, 32
      %v1770 = vpop.permute.xlu0 %1769
      %1771 = vrot.lane.b32.xlu0 %v1498, 32
      %v1772 = vpop.permute.xlu0 %1771
      %1773 = vrot.lane.b32.xlu0 %v1500, 32
      %v1774 = vpop.permute.xlu0 %1773
      %1775 = vrot.lane.b32.xlu0 %v1579, 32
      %v1776 = vpop.permute.xlu0 %1775
      %1777 = vrot.lane.b32.xlu0 %v1581, 32
      %v1778 = vpop.permute.xlu0 %1777
      %1779 = vrot.lane.b32.xlu0 %v1660, 32
      %v1780 = vpop.permute.xlu0 %1779
      %1781 = vrot.lane.b32.xlu0 %v1662, 32
      %v1782 = vpop.permute.xlu0 %1781
      %vm1783 = vcmask 261120
      %v1784 = vsel %vm1783, %v1768, %v1770
      %v1785 = vsel %vm1783, %v1770, %v1772
      %v1786 = vsel %vm1783, %v1772, %v1774
      %v1787 = vsel %vm1783, %v1774, %v1776
      %v1788 = vsel %vm1783, %v1776, %v1778
      %v1789 = vsel %vm1783, %v1778, %v1780
      %v1790 = vsel %vm1783, %v1780, %v1782
      %v1799 = vsel %vm1783, 0.0, %v1768
      %v1800 = vadd.f32 %v1751, %v1799
      %v1801 = vadd.f32 %v1752, %v1784
      %v1802 = vadd.f32 %v1753, %v1785
      %v1803 = vadd.f32 %v1754, %v1786
      %v1804 = vadd.f32 %v1755, %v1787
      %v1805 = vadd.f32 %v1756, %v1788
      %v1806 = vadd.f32 %v1757, %v1789
      %v1807 = vadd.f32 %v1758, %v1790
      %1816 = vrot.lane.b32.xlu0 %v1423, 31
      %v1817 = vpop.permute.xlu0 %1816
      %1818 = vrot.lane.b32.xlu0 %v1425, 31
      %v1819 = vpop.permute.xlu0 %1818
      %1820 = vrot.lane.b32.xlu0 %v1504, 31
      %v1821 = vpop.permute.xlu0 %1820
      %1822 = vrot.lane.b32.xlu0 %v1506, 31
      %v1823 = vpop.permute.xlu0 %1822
      %1824 = vrot.lane.b32.xlu0 %v1585, 31
      %v1825 = vpop.permute.xlu0 %1824
      %1826 = vrot.lane.b32.xlu0 %v1587, 31
      %v1827 = vpop.permute.xlu0 %1826
      %1828 = vrot.lane.b32.xlu0 %v1666, 31
      %v1829 = vpop.permute.xlu0 %1828
      %1830 = vrot.lane.b32.xlu0 %v1668, 31
      %v1831 = vpop.permute.xlu0 %1830
      %vm1832 = vcmask 252928
      %v1833 = vsel %vm1832, %v1817, %v1819
      %v1834 = vsel %vm1832, %v1819, %v1821
      %v1835 = vsel %vm1832, %v1821, %v1823
      %v1836 = vsel %vm1832, %v1823, %v1825
      %v1837 = vsel %vm1832, %v1825, %v1827
      %v1838 = vsel %vm1832, %v1827, %v1829
      %v1839 = vsel %vm1832, %v1829, %v1831
      %v1848 = vsel %vm1832, 0.0, %v1817
      %v1849 = vmul.f32 %v1848, %v373
      %v1850 = vmul.f32 %v1833, %v374
      %v1851 = vmul.f32 %v1834, %v375
      %v1852 = vmul.f32 %v1835, %v376
      %v1853 = vmul.f32 %v1836, %v377
      %v1854 = vmul.f32 %v1837, %v378
      %v1855 = vmul.f32 %v1838, %v379
      %v1856 = vmul.f32 %v1839, %v380
      %v1857 = vadd.f32 %v1800, %v1849
      %v1858 = vadd.f32 %v1801, %v1850
      %v1859 = vadd.f32 %v1802, %v1851
      %v1860 = vadd.f32 %v1803, %v1852
      %v1861 = vadd.f32 %v1804, %v1853
      %v1862 = vadd.f32 %v1805, %v1854
      %v1863 = vadd.f32 %v1806, %v1855
      %v1864 = vadd.f32 %v1807, %v1856
      %1873 = vrot.lane.b32.xlu0 %v1427, 1
      %v1874 = vpop.permute.xlu0 %1873
      %1875 = vrot.lane.b32.xlu0 %v1429, 1
      %v1876 = vpop.permute.xlu0 %1875
      %1877 = vrot.lane.b32.xlu0 %v1508, 1
      %v1878 = vpop.permute.xlu0 %1877
      %1879 = vrot.lane.b32.xlu0 %v1510, 1
      %v1880 = vpop.permute.xlu0 %1879
      %1881 = vrot.lane.b32.xlu0 %v1589, 1
      %v1882 = vpop.permute.xlu0 %1881
      %1883 = vrot.lane.b32.xlu0 %v1591, 1
      %v1884 = vpop.permute.xlu0 %1883
      %1885 = vrot.lane.b32.xlu0 %v1670, 1
      %v1886 = vpop.permute.xlu0 %1885
      %1887 = vrot.lane.b32.xlu0 %v1672, 1
      %v1888 = vpop.permute.xlu0 %1887
      %vm1889 = vcmask 7168
      %v1890 = vsel %vm1889, %v1874, %v1876
      %v1891 = vsel %vm1889, %v1876, %v1878
      %v1892 = vsel %vm1889, %v1878, %v1880
      %v1893 = vsel %vm1889, %v1880, %v1882
      %v1894 = vsel %vm1889, %v1882, %v1884
      %v1895 = vsel %vm1889, %v1884, %v1886
      %v1896 = vsel %vm1889, %v1886, %v1888
      %v1905 = vsel %vm1889, 0.0, %v1874
      %v1906 = vmul.f32 %v1905, %v325
      %v1907 = vmul.f32 %v1890, %v326
      %v1908 = vmul.f32 %v1891, %v327
      %v1909 = vmul.f32 %v1892, %v328
      %v1910 = vmul.f32 %v1893, %v329
      %v1911 = vmul.f32 %v1894, %v330
      %v1912 = vmul.f32 %v1895, %v331
      %v1913 = vmul.f32 %v1896, %v332
      %v1914 = vadd.f32 %v1857, %v1906
      %v1915 = vadd.f32 %v1858, %v1907
      %v1916 = vadd.f32 %v1859, %v1908
      %v1917 = vadd.f32 %v1860, %v1909
      %v1918 = vadd.f32 %v1861, %v1910
      %v1919 = vadd.f32 %v1862, %v1911
      %v1920 = vadd.f32 %v1863, %v1912
      %v1921 = vadd.f32 %v1864, %v1913
      %v1922 = vadd.f32 %v1914, %v1433
      %v1923 = vadd.f32 %v1915, %v1435
      %v1924 = vadd.f32 %v1916, %v1514
      %v1925 = vadd.f32 %v1917, %v1516
      %v1926 = vadd.f32 %v1918, %v1595
      %v1927 = vadd.f32 %v1919, %v1597
      %v1928 = vadd.f32 %v1920, %v1676
      %v1929 = vadd.f32 %v1921, %v1678
      %1938 = vrot.lane.b32.xlu0 %v1437, 127
      %v1939 = vpop.permute.xlu0 %1938
      %1940 = vrot.lane.b32.xlu0 %v1439, 127
      %v1941 = vpop.permute.xlu0 %1940
      %1942 = vrot.lane.b32.xlu0 %v1518, 127
      %v1943 = vpop.permute.xlu0 %1942
      %1944 = vrot.lane.b32.xlu0 %v1520, 127
      %v1945 = vpop.permute.xlu0 %1944
      %1946 = vrot.lane.b32.xlu0 %v1599, 127
      %v1947 = vpop.permute.xlu0 %1946
      %1948 = vrot.lane.b32.xlu0 %v1601, 127
      %v1949 = vpop.permute.xlu0 %1948
      %1950 = vrot.lane.b32.xlu0 %v1680, 127
      %v1951 = vpop.permute.xlu0 %1950
      %1952 = vrot.lane.b32.xlu0 %v1682, 127
      %v1953 = vpop.permute.xlu0 %1952
      %vm1954 = vcmask 1039360
      %v1955 = vsel %vm1954, %v1939, %v1941
      %v1956 = vsel %vm1954, %v1941, %v1943
      %v1957 = vsel %vm1954, %v1943, %v1945
      %v1958 = vsel %vm1954, %v1945, %v1947
      %v1959 = vsel %vm1954, %v1947, %v1949
      %v1960 = vsel %vm1954, %v1949, %v1951
      %v1961 = vsel %vm1954, %v1951, %v1953
      %v1970 = vsel %vm1954, %v1953, 0.0
      %v1971 = vmul.f32 %v1955, %v373
      %v1972 = vmul.f32 %v1956, %v374
      %v1973 = vmul.f32 %v1957, %v375
      %v1974 = vmul.f32 %v1958, %v376
      %v1975 = vmul.f32 %v1959, %v377
      %v1976 = vmul.f32 %v1960, %v378
      %v1977 = vmul.f32 %v1961, %v379
      %v1978 = vmul.f32 %v1970, %v380
      %v1979 = vadd.f32 %v1922, %v1971
      %v1980 = vadd.f32 %v1923, %v1972
      %v1981 = vadd.f32 %v1924, %v1973
      %v1982 = vadd.f32 %v1925, %v1974
      %v1983 = vadd.f32 %v1926, %v1975
      %v1984 = vadd.f32 %v1927, %v1976
      %v1985 = vadd.f32 %v1928, %v1977
      %v1986 = vadd.f32 %v1929, %v1978
      %1995 = vrot.lane.b32.xlu0 %v1443, 97
      %v1996 = vpop.permute.xlu0 %1995
      %1997 = vrot.lane.b32.xlu0 %v1445, 97
      %v1998 = vpop.permute.xlu0 %1997
      %1999 = vrot.lane.b32.xlu0 %v1524, 97
      %v2000 = vpop.permute.xlu0 %1999
      %2001 = vrot.lane.b32.xlu0 %v1526, 97
      %v2002 = vpop.permute.xlu0 %2001
      %2003 = vrot.lane.b32.xlu0 %v1605, 97
      %v2004 = vpop.permute.xlu0 %2003
      %2005 = vrot.lane.b32.xlu0 %v1607, 97
      %v2006 = vpop.permute.xlu0 %2005
      %2007 = vrot.lane.b32.xlu0 %v1686, 97
      %v2008 = vpop.permute.xlu0 %2007
      %2009 = vrot.lane.b32.xlu0 %v1688, 97
      %v2010 = vpop.permute.xlu0 %2009
      %vm2011 = vcmask 793600
      %v2012 = vsel %vm2011, %v1996, %v1998
      %v2013 = vsel %vm2011, %v1998, %v2000
      %v2014 = vsel %vm2011, %v2000, %v2002
      %v2015 = vsel %vm2011, %v2002, %v2004
      %v2016 = vsel %vm2011, %v2004, %v2006
      %v2017 = vsel %vm2011, %v2006, %v2008
      %v2018 = vsel %vm2011, %v2008, %v2010
      %v2027 = vsel %vm2011, %v2010, 0.0
      %v2028 = vmul.f32 %v2012, %v325
      %v2029 = vmul.f32 %v2013, %v326
      %v2030 = vmul.f32 %v2014, %v327
      %v2031 = vmul.f32 %v2015, %v328
      %v2032 = vmul.f32 %v2016, %v329
      %v2033 = vmul.f32 %v2017, %v330
      %v2034 = vmul.f32 %v2018, %v331
      %v2035 = vmul.f32 %v2027, %v332
      %v2036 = vadd.f32 %v1979, %v2028
      %v2037 = vadd.f32 %v1980, %v2029
      %v2038 = vadd.f32 %v1981, %v2030
      %v2039 = vadd.f32 %v1982, %v2031
      %v2040 = vadd.f32 %v1983, %v2032
      %v2041 = vadd.f32 %v1984, %v2033
      %v2042 = vadd.f32 %v1985, %v2034
      %v2043 = vadd.f32 %v1986, %v2035
      %2052 = vrot.lane.b32.xlu0 %v1447, 96
      %v2053 = vpop.permute.xlu0 %2052
      %2054 = vrot.lane.b32.xlu0 %v1449, 96
      %v2055 = vpop.permute.xlu0 %2054
      %2056 = vrot.lane.b32.xlu0 %v1528, 96
      %v2057 = vpop.permute.xlu0 %2056
      %2058 = vrot.lane.b32.xlu0 %v1530, 96
      %v2059 = vpop.permute.xlu0 %2058
      %2060 = vrot.lane.b32.xlu0 %v1609, 96
      %v2061 = vpop.permute.xlu0 %2060
      %2062 = vrot.lane.b32.xlu0 %v1611, 96
      %v2063 = vpop.permute.xlu0 %2062
      %2064 = vrot.lane.b32.xlu0 %v1690, 96
      %v2065 = vpop.permute.xlu0 %2064
      %2066 = vrot.lane.b32.xlu0 %v1692, 96
      %v2067 = vpop.permute.xlu0 %2066
      %vm2068 = vcmask 785408
      %v2069 = vsel %vm2068, %v2053, %v2055
      %v2070 = vsel %vm2068, %v2055, %v2057
      %v2071 = vsel %vm2068, %v2057, %v2059
      %v2072 = vsel %vm2068, %v2059, %v2061
      %v2073 = vsel %vm2068, %v2061, %v2063
      %v2074 = vsel %vm2068, %v2063, %v2065
      %v2075 = vsel %vm2068, %v2065, %v2067
      %v2084 = vsel %vm2068, %v2067, 0.0
      %v2085 = vadd.f32 %v2036, %v2069
      %v2086 = vadd.f32 %v2037, %v2070
      %v2087 = vadd.f32 %v2038, %v2071
      %v2088 = vadd.f32 %v2039, %v2072
      %v2089 = vadd.f32 %v2040, %v2073
      %v2090 = vadd.f32 %v2041, %v2074
      %v2091 = vadd.f32 %v2042, %v2075
      %v2092 = vadd.f32 %v2043, %v2084
      %2101 = vrot.lane.b32.xlu0 %v1453, 95
      %v2102 = vpop.permute.xlu0 %2101
      %2103 = vrot.lane.b32.xlu0 %v1455, 95
      %v2104 = vpop.permute.xlu0 %2103
      %2105 = vrot.lane.b32.xlu0 %v1534, 95
      %v2106 = vpop.permute.xlu0 %2105
      %2107 = vrot.lane.b32.xlu0 %v1536, 95
      %v2108 = vpop.permute.xlu0 %2107
      %2109 = vrot.lane.b32.xlu0 %v1615, 95
      %v2110 = vpop.permute.xlu0 %2109
      %2111 = vrot.lane.b32.xlu0 %v1617, 95
      %v2112 = vpop.permute.xlu0 %2111
      %2113 = vrot.lane.b32.xlu0 %v1696, 95
      %v2114 = vpop.permute.xlu0 %2113
      %2115 = vrot.lane.b32.xlu0 %v1698, 95
      %v2116 = vpop.permute.xlu0 %2115
      %vm2117 = vcmask 777216
      %v2118 = vsel %vm2117, %v2102, %v2104
      %v2119 = vsel %vm2117, %v2104, %v2106
      %v2120 = vsel %vm2117, %v2106, %v2108
      %v2121 = vsel %vm2117, %v2108, %v2110
      %v2122 = vsel %vm2117, %v2110, %v2112
      %v2123 = vsel %vm2117, %v2112, %v2114
      %v2124 = vsel %vm2117, %v2114, %v2116
      %v2133 = vsel %vm2117, %v2116, 0.0
      %v2134 = vmul.f32 %v2118, %v373
      %v2135 = vmul.f32 %v2119, %v374
      %v2136 = vmul.f32 %v2120, %v375
      %v2137 = vmul.f32 %v2121, %v376
      %v2138 = vmul.f32 %v2122, %v377
      %v2139 = vmul.f32 %v2123, %v378
      %v2140 = vmul.f32 %v2124, %v379
      %v2141 = vmul.f32 %v2133, %v380
      %v2142 = vadd.f32 %v2085, %v2134
      %v2143 = vadd.f32 %v2086, %v2135
      %v2144 = vadd.f32 %v2087, %v2136
      %v2145 = vadd.f32 %v2088, %v2137
      %v2146 = vadd.f32 %v2089, %v2138
      %v2147 = vadd.f32 %v2090, %v2139
      %v2148 = vadd.f32 %v2091, %v2140
      %v2149 = vadd.f32 %v2092, %v2141
      %v2150 = vld [vmem:[%s2] sm:$0xff]
      %2152 = vset.pattern.permute.xlu0 0
      %2153 = vperm.xlu0 %2152, %v2150
      %v2154 = vpop.permute.xlu0 %2153
      %v2156 = vadd.f32 %v2142, %v2154
      %v2157 = vadd.f32 %v2143, %v2154
      %v2158 = vadd.f32 %v2144, %v2154
      %v2159 = vadd.f32 %v2145, %v2154
      %v2160 = vadd.f32 %v2146, %v2154
      %v2161 = vadd.f32 %v2147, %v2154
      %v2162 = vadd.f32 %v2148, %v2154
      %v2163 = vadd.f32 %v2149, %v2154
      %v2164 = vmax.f32 %v2156, 0.0
      %v2165 = vmax.f32 %v2157, 0.0
      %v2166 = vmax.f32 %v2158, 0.0
      %v2167 = vmax.f32 %v2159, 0.0
      %v2168 = vmax.f32 %v2160, 0.0
      %v2169 = vmax.f32 %v2161, 0.0
      %v2170 = vmax.f32 %v2162, 0.0
      %v2171 = vmax.f32 %v2163, 0.0
      %vm2172 = vcmp.ne.f32.partialorder %v2164, %v2164
      %vm2173 = vcmp.ne.f32.partialorder %v2165, %v2165
      %vm2174 = vcmp.ne.f32.partialorder %v2166, %v2166
      %vm2175 = vcmp.ne.f32.partialorder %v2167, %v2167
      %vm2176 = vcmp.ne.f32.partialorder %v2168, %v2168
      %vm2177 = vcmp.ne.f32.partialorder %v2169, %v2169
      %vm2178 = vcmp.ne.f32.partialorder %v2170, %v2170
      %vm2179 = vcmp.ne.f32.partialorder %v2171, %v2171
      %v2180 = vsel %vm2172, 0.0, %v2164
      %v2181 = vsel %vm2173, 0.0, %v2165
      %v2182 = vsel %vm2174, 0.0, %v2166
      %v2183 = vsel %vm2175, 0.0, %v2167
      %v2184 = vsel %vm2176, 0.0, %v2168
      %v2185 = vsel %vm2177, 0.0, %v2169
      %v2186 = vsel %vm2178, 0.0, %v2170
      %v2187 = vsel %vm2179, 0.0, %v2171
      %vm2188 = vcmp.eq.f32.partialorder %v2180, inf
      %vm2189 = vcmp.eq.f32.partialorder %v2181, inf
      %vm2190 = vcmp.eq.f32.partialorder %v2182, inf
      %vm2191 = vcmp.eq.f32.partialorder %v2183, inf
      %vm2192 = vcmp.eq.f32.partialorder %v2184, inf
      %vm2193 = vcmp.eq.f32.partialorder %v2185, inf
      %vm2194 = vcmp.eq.f32.partialorder %v2186, inf
      %vm2195 = vcmp.eq.f32.partialorder %v2187, inf
      %v2196 = vsel %vm2188, 1000.0, %v2180
      %v2197 = vsel %vm2189, 1000.0, %v2181
      %v2198 = vsel %vm2190, 1000.0, %v2182
      %v2199 = vsel %vm2191, 1000.0, %v2183
      %v2200 = vsel %vm2192, 1000.0, %v2184
      %v2201 = vsel %vm2193, 1000.0, %v2185
      %v2202 = vsel %vm2194, 1000.0, %v2186
      %v2203 = vsel %vm2195, 1000.0, %v2187
      %2204 = vst [vmem:[%s177] sm:$0x3f] %v2196
      %2205 = vst [vmem:[%s177 + $0x8] sm:$0x3f] %v2197
      %2206 = vst [vmem:[%s177 + $0x10] sm:$0x3f] %v2198
      %2207 = vst [vmem:[%s177 + $0x18] sm:$0x3f] %v2199
      %2208 = vst [vmem:[%s177 + $0x20] sm:$0x3f] %v2200
      %2209 = vst [vmem:[%s177 + $0x28] sm:$0x3f] %v2201
      %2210 = vst [vmem:[%s177 + $0x30] sm:$0x3f] %v2202
      %2211 = vst [vmem:[%s177 + $0x38] sm:$0x3f] %v2203
      %s2212 = scalar_lea.vmem %s170, 1024
      %v2213 = vld [vmem:[%s2212] sm:$0xff]
      %v2214 = vld [vmem:[%s2212 + $0x8] sm:$0xff]
      %v2215 = vld [vmem:[%s2212 + $0x10] sm:$0xff]
      %v2216 = vld [vmem:[%s2212 + $0x18] sm:$0xff]
      %v2217 = vld [vmem:[%s2212 + $0x20] sm:$0xff]
      %v2218 = vld [vmem:[%s2212 + $0x28] sm:$0xff]
      %v2219 = vld [vmem:[%s2212 + $0x30] sm:$0xff]
      %v2220 = vld [vmem:[%s2212 + $0x38] sm:$0xff]
      %v2221 = vld [vmem:[%s2212 + $0x40] sm:$0xff]
      %v2222 = vld [vmem:[%s2212 + $0x48] sm:$0xff]
      %v2223 = vld [vmem:[%s2212 + $0x50] sm:$0xff]
      %v2224 = vld [vmem:[%s2212 + $0x58] sm:$0xff]
      %v2225 = vld [vmem:[%s2212 + $0x60] sm:$0xff]
      %v2226 = vld [vmem:[%s2212 + $0x68] sm:$0xff]
      %v2227 = vld [vmem:[%s2212 + $0x70] sm:$0xff]
      %v2228 = vld [vmem:[%s2212 + $0x78] sm:$0xff]
      %v2229 = vld [vmem:[%s2212 + $0x80] sm:$0xff]
      %v2230 = vld [vmem:[%s2212 + $0x88] sm:$0xff]
      %v2231 = vld [vmem:[%s2212 + $0x90] sm:$0xff]
      %v2232 = vld [vmem:[%s2212 + $0x98] sm:$0xff]
      %v2233 = vld [vmem:[%s2212 + $0xa0] sm:$0xff]
      %v2234 = vld [vmem:[%s2212 + $0xa8] sm:$0xff]
      %v2235 = vld [vmem:[%s2212 + $0xb0] sm:$0xff]
      %v2236 = vld [vmem:[%s2212 + $0xb8] sm:$0xff]
      %v2237 = vld [vmem:[%s2212 + $0xc0] sm:$0xff]
      %v2238 = vld [vmem:[%s2212 + $0xc8] sm:$0xff]
      %v2239 = vld [vmem:[%s2212 + $0xd0] sm:$0xff]
      %v2240 = vld [vmem:[%s2212 + $0xd8] sm:$0xff]
      %v2241 = vld [vmem:[%s2212 + $0xe0] sm:$0xff]
      %v2242 = vld [vmem:[%s2212 + $0xe8] sm:$0xff]
      %v2243 = vld [vmem:[%s2212 + $0xf0] sm:$0xff]
      %v2244 = vld [vmem:[%s2212 + $0xf8] sm:$0xff]
      %v2245 = vld [vmem:[%s2212 + $0x100] sm:$0xff]
      %v2246 = vld [vmem:[%s2212 + $0x108] sm:$0xff]
      %v2247 = vld [vmem:[%s2212 + $0x110] sm:$0xff]
      %v2248 = vld [vmem:[%s2212 + $0x118] sm:$0xff]
      %v2249 = vld [vmem:[%s2212 + $0x120] sm:$0xff]
      %v2250 = vld [vmem:[%s2212 + $0x128] sm:$0xff]
      %v2251 = vld [vmem:[%s2212 + $0x130] sm:$0xff]
      %v2252 = vld [vmem:[%s2212 + $0x138] sm:$0xff]
      %v2253 = vld [vmem:[%s2212 + $0x140] sm:$0xff]
      %v2254 = vld [vmem:[%s2212 + $0x148] sm:$0xff]
      %v2255 = vld [vmem:[%s2212 + $0x150] sm:$0xff]
      %v2256 = vld [vmem:[%s2212 + $0x158] sm:$0xff]
      %v2257 = vld [vmem:[%s2212 + $0x160] sm:$0xff]
      %v2258 = vld [vmem:[%s2212 + $0x168] sm:$0xff]
      %v2259 = vld [vmem:[%s2212 + $0x170] sm:$0xff]
      %v2260 = vld [vmem:[%s2212 + $0x178] sm:$0xff]
      %v2261 = vld [vmem:[%s2212 + $0x180] sm:$0xff]
      %v2262 = vld [vmem:[%s2212 + $0x188] sm:$0xff]
      %v2263 = vld [vmem:[%s2212 + $0x190] sm:$0xff]
      %v2264 = vld [vmem:[%s2212 + $0x198] sm:$0xff]
      %v2265 = vld [vmem:[%s2212 + $0x1a0] sm:$0xff]
      %v2266 = vld [vmem:[%s2212 + $0x1a8] sm:$0xff]
      %v2267 = vld [vmem:[%s2212 + $0x1b0] sm:$0xff]
      %v2268 = vld [vmem:[%s2212 + $0x1b8] sm:$0xff]
      %v2269 = vld [vmem:[%s2212 + $0x1c0] sm:$0xff]
      %v2270 = vld [vmem:[%s2212 + $0x1c8] sm:$0xff]
      %v2271 = vld [vmem:[%s2212 + $0x1d0] sm:$0xff]
      %v2272 = vld [vmem:[%s2212 + $0x1d8] sm:$0xff]
      %v2273 = vld [vmem:[%s2212 + $0x1e0] sm:$0xff]
      %v2274 = vld [vmem:[%s2212 + $0x1e8] sm:$0xff]
      %v2275 = vld [vmem:[%s2212 + $0x1f0] sm:$0xff]
      %v2276 = vld [vmem:[%s2212 + $0x1f8] sm:$0xff]
      %v2277 = vld [vmem:[%s2212 + $0x200] sm:$0xff]
      %v2278 = vld [vmem:[%s2212 + $0x208] sm:$0xff]
      %v2279 = vld [vmem:[%s2212 + $0x210] sm:$0xff]
      %v2280 = vld [vmem:[%s2212 + $0x218] sm:$0xff]
      %v2281 = vld [vmem:[%s2212 + $0x220] sm:$0xff]
      %v2282 = vld [vmem:[%s2212 + $0x228] sm:$0xff]
      %v2283 = vld [vmem:[%s2212 + $0x230] sm:$0xff]
      %v2284 = vld [vmem:[%s2212 + $0x238] sm:$0xff]
      %v2285 = vld [vmem:[%s2212 + $0x240] sm:$0xff]
      %v2286 = vld [vmem:[%s2212 + $0x248] sm:$0xff]
      %v2287 = vld [vmem:[%s2212 + $0x250] sm:$0xff]
      %v2288 = vld [vmem:[%s2212 + $0x258] sm:$0xff]
      %v2289 = vld [vmem:[%s2212 + $0x260] sm:$0xff]
      %v2290 = vld [vmem:[%s2212 + $0x268] sm:$0xff]
      %v2291 = vld [vmem:[%s2212 + $0x270] sm:$0xff]
      %v2292 = vld [vmem:[%s2212 + $0x278] sm:$0xff]
      %v2293 = vld [vmem:[%s2212 + $0x280] sm:$0xff]
      %v2294 = vld [vmem:[%s2212 + $0x288] sm:$0xff]
      %v2295 = vld [vmem:[%s2212 + $0x290] sm:$0xff]
      %v2296 = vld [vmem:[%s2212 + $0x298] sm:$0xff]
      %v2297 = vld [vmem:[%s2212 + $0x2a0] sm:$0xff]
      %v2298 = vld [vmem:[%s2212 + $0x2a8] sm:$0xff]
      %v2299 = vld [vmem:[%s2212 + $0x2b0] sm:$0xff]
      %v2300 = vld [vmem:[%s2212 + $0x2b8] sm:$0xff]
      %v2301 = vld [vmem:[%s2212 + $0x2c0] sm:$0xff]
      %v2302 = vld [vmem:[%s2212 + $0x2c8] sm:$0xff]
      %v2303 = vld [vmem:[%s2212 + $0x2d0] sm:$0xff]
      %v2304 = vld [vmem:[%s2212 + $0x2d8] sm:$0xff]
      %v2305 = vld [vmem:[%s2212 + $0x2e0] sm:$0xff]
      %v2306 = vld [vmem:[%s2212 + $0x2e8] sm:$0xff]
      %v2307 = vld [vmem:[%s2212 + $0x2f0] sm:$0xff]
      %v2308 = vld [vmem:[%s2212 + $0x2f8] sm:$0xff]
      %v2309 = vld [vmem:[%s2212 + $0x300] sm:$0xff]
      %v2310 = vld [vmem:[%s2212 + $0x308] sm:$0xff]
      %v2311 = vld [vmem:[%s2212 + $0x310] sm:$0xff]
      %v2312 = vld [vmem:[%s2212 + $0x318] sm:$0xff]
      %v2313 = vld [vmem:[%s2212 + $0x320] sm:$0xff]
      %v2314 = vld [vmem:[%s2212 + $0x328] sm:$0xff]
      %v2315 = vld [vmem:[%s2212 + $0x330] sm:$0xff]
      %v2316 = vld [vmem:[%s2212 + $0x338] sm:$0xff]
      %v2317 = vld [vmem:[%s2212 + $0x340] sm:$0xff]
      %v2318 = vld [vmem:[%s2212 + $0x348] sm:$0xff]
      %v2319 = vld [vmem:[%s2212 + $0x350] sm:$0xff]
      %v2320 = vld [vmem:[%s2212 + $0x358] sm:$0xff]
      %v2321 = vld [vmem:[%s2212 + $0x360] sm:$0xff]
      %v2322 = vld [vmem:[%s2212 + $0x368] sm:$0xff]
      %v2323 = vld [vmem:[%s2212 + $0x370] sm:$0xff]
      %v2324 = vld [vmem:[%s2212 + $0x378] sm:$0xff]
      %v2325 = vld [vmem:[%s2212 + $0x380] sm:$0xff]
      %v2326 = vld [vmem:[%s2212 + $0x388] sm:$0xff]
      %v2327 = vld [vmem:[%s2212 + $0x390] sm:$0xff]
      %v2328 = vld [vmem:[%s2212 + $0x398] sm:$0xff]
      %v2329 = vld [vmem:[%s2212 + $0x3a0] sm:$0xff]
      %v2330 = vld [vmem:[%s2212 + $0x3a8] sm:$0xff]
      %v2331 = vld [vmem:[%s2212 + $0x3b0] sm:$0xff]
      %v2332 = vld [vmem:[%s2212 + $0x3b8] sm:$0xff]
      %v2333 = vld [vmem:[%s2212 + $0x3c0] sm:$0xff]
      %v2334 = vld [vmem:[%s2212 + $0x3c8] sm:$0xff]
      %v2335 = vld [vmem:[%s2212 + $0x3d0] sm:$0xff]
      %v2336 = vld [vmem:[%s2212 + $0x3d8] sm:$0xff]
      %v2337 = vld [vmem:[%s2212 + $0x3e0] sm:$0xff]
      %v2338 = vld [vmem:[%s2212 + $0x3e8] sm:$0xff]
      %v2339 = vld [vmem:[%s2212 + $0x3f0] sm:$0xff]
      %v2340 = vld [vmem:[%s2212 + $0x3f8] sm:$0xff]
      %vm2341 = vcmp.ne.f32.partialorder %v2213, %v2213
      %vm2342 = vcmp.ne.f32.partialorder %v2214, %v2214
      %vm2343 = vcmp.ne.f32.partialorder %v2215, %v2215
      %vm2344 = vcmp.ne.f32.partialorder %v2216, %v2216
      %vm2345 = vcmp.ne.f32.partialorder %v2217, %v2217
      %vm2346 = vcmp.ne.f32.partialorder %v2218, %v2218
      %vm2347 = vcmp.ne.f32.partialorder %v2219, %v2219
      %vm2348 = vcmp.ne.f32.partialorder %v2220, %v2220
      %vm2349 = vcmp.ne.f32.partialorder %v2221, %v2221
      %vm2350 = vcmp.ne.f32.partialorder %v2222, %v2222
      %vm2351 = vcmp.ne.f32.partialorder %v2223, %v2223
      %vm2352 = vcmp.ne.f32.partialorder %v2224, %v2224
      %vm2353 = vcmp.ne.f32.partialorder %v2225, %v2225
      %vm2354 = vcmp.ne.f32.partialorder %v2226, %v2226
      %vm2355 = vcmp.ne.f32.partialorder %v2227, %v2227
      %vm2356 = vcmp.ne.f32.partialorder %v2228, %v2228
      %vm2357 = vcmp.ne.f32.partialorder %v2229, %v2229
      %vm2358 = vcmp.ne.f32.partialorder %v2230, %v2230
      %vm2359 = vcmp.ne.f32.partialorder %v2231, %v2231
      %vm2360 = vcmp.ne.f32.partialorder %v2232, %v2232
      %vm2361 = vcmp.ne.f32.partialorder %v2233, %v2233
      %vm2362 = vcmp.ne.f32.partialorder %v2234, %v2234
      %vm2363 = vcmp.ne.f32.partialorder %v2235, %v2235
      %vm2364 = vcmp.ne.f32.partialorder %v2236, %v2236
      %vm2365 = vcmp.ne.f32.partialorder %v2237, %v2237
      %vm2366 = vcmp.ne.f32.partialorder %v2238, %v2238
      %vm2367 = vcmp.ne.f32.partialorder %v2239, %v2239
      %vm2368 = vcmp.ne.f32.partialorder %v2240, %v2240
      %vm2369 = vcmp.ne.f32.partialorder %v2241, %v2241
      %vm2370 = vcmp.ne.f32.partialorder %v2242, %v2242
      %vm2371 = vcmp.ne.f32.partialorder %v2243, %v2243
      %vm2372 = vcmp.ne.f32.partialorder %v2244, %v2244
      %vm2373 = vcmp.ne.f32.partialorder %v2245, %v2245
      %vm2374 = vcmp.ne.f32.partialorder %v2246, %v2246
      %vm2375 = vcmp.ne.f32.partialorder %v2247, %v2247
      %vm2376 = vcmp.ne.f32.partialorder %v2248, %v2248
      %vm2377 = vcmp.ne.f32.partialorder %v2249, %v2249
      %vm2378 = vcmp.ne.f32.partialorder %v2250, %v2250
      %vm2379 = vcmp.ne.f32.partialorder %v2251, %v2251
      %vm2380 = vcmp.ne.f32.partialorder %v2252, %v2252
      %vm2381 = vcmp.ne.f32.partialorder %v2253, %v2253
      %vm2382 = vcmp.ne.f32.partialorder %v2254, %v2254
      %vm2383 = vcmp.ne.f32.partialorder %v2255, %v2255
      %vm2384 = vcmp.ne.f32.partialorder %v2256, %v2256
      %vm2385 = vcmp.ne.f32.partialorder %v2257, %v2257
      %vm2386 = vcmp.ne.f32.partialorder %v2258, %v2258
      %vm2387 = vcmp.ne.f32.partialorder %v2259, %v2259
      %vm2388 = vcmp.ne.f32.partialorder %v2260, %v2260
      %vm2389 = vcmp.ne.f32.partialorder %v2261, %v2261
      %vm2390 = vcmp.ne.f32.partialorder %v2262, %v2262
      %vm2391 = vcmp.ne.f32.partialorder %v2263, %v2263
      %vm2392 = vcmp.ne.f32.partialorder %v2264, %v2264
      %vm2393 = vcmp.ne.f32.partialorder %v2265, %v2265
      %vm2394 = vcmp.ne.f32.partialorder %v2266, %v2266
      %vm2395 = vcmp.ne.f32.partialorder %v2267, %v2267
      %vm2396 = vcmp.ne.f32.partialorder %v2268, %v2268
      %vm2397 = vcmp.ne.f32.partialorder %v2269, %v2269
      %vm2398 = vcmp.ne.f32.partialorder %v2270, %v2270
      %vm2399 = vcmp.ne.f32.partialorder %v2271, %v2271
      %vm2400 = vcmp.ne.f32.partialorder %v2272, %v2272
      %vm2401 = vcmp.ne.f32.partialorder %v2273, %v2273
      %vm2402 = vcmp.ne.f32.partialorder %v2274, %v2274
      %vm2403 = vcmp.ne.f32.partialorder %v2275, %v2275
      %vm2404 = vcmp.ne.f32.partialorder %v2276, %v2276
      %vm2405 = vcmp.ne.f32.partialorder %v2277, %v2277
      %vm2406 = vcmp.ne.f32.partialorder %v2278, %v2278
      %vm2407 = vcmp.ne.f32.partialorder %v2279, %v2279
      %vm2408 = vcmp.ne.f32.partialorder %v2280, %v2280
      %vm2409 = vcmp.ne.f32.partialorder %v2281, %v2281
      %vm2410 = vcmp.ne.f32.partialorder %v2282, %v2282
      %vm2411 = vcmp.ne.f32.partialorder %v2283, %v2283
      %vm2412 = vcmp.ne.f32.partialorder %v2284, %v2284
      %vm2413 = vcmp.ne.f32.partialorder %v2285, %v2285
      %vm2414 = vcmp.ne.f32.partialorder %v2286, %v2286
      %vm2415 = vcmp.ne.f32.partialorder %v2287, %v2287
      %vm2416 = vcmp.ne.f32.partialorder %v2288, %v2288
      %vm2417 = vcmp.ne.f32.partialorder %v2289, %v2289
      %vm2418 = vcmp.ne.f32.partialorder %v2290, %v2290
      %vm2419 = vcmp.ne.f32.partialorder %v2291, %v2291
      %vm2420 = vcmp.ne.f32.partialorder %v2292, %v2292
      %vm2421 = vcmp.ne.f32.partialorder %v2293, %v2293
      %vm2422 = vcmp.ne.f32.partialorder %v2294, %v2294
      %vm2423 = vcmp.ne.f32.partialorder %v2295, %v2295
      %vm2424 = vcmp.ne.f32.partialorder %v2296, %v2296
      %vm2425 = vcmp.ne.f32.partialorder %v2297, %v2297
      %vm2426 = vcmp.ne.f32.partialorder %v2298, %v2298
      %vm2427 = vcmp.ne.f32.partialorder %v2299, %v2299
      %vm2428 = vcmp.ne.f32.partialorder %v2300, %v2300
      %vm2429 = vcmp.ne.f32.partialorder %v2301, %v2301
      %vm2430 = vcmp.ne.f32.partialorder %v2302, %v2302
      %vm2431 = vcmp.ne.f32.partialorder %v2303, %v2303
      %vm2432 = vcmp.ne.f32.partialorder %v2304, %v2304
      %vm2433 = vcmp.ne.f32.partialorder %v2305, %v2305
      %vm2434 = vcmp.ne.f32.partialorder %v2306, %v2306
      %vm2435 = vcmp.ne.f32.partialorder %v2307, %v2307
      %vm2436 = vcmp.ne.f32.partialorder %v2308, %v2308
      %vm2437 = vcmp.ne.f32.partialorder %v2309, %v2309
      %vm2438 = vcmp.ne.f32.partialorder %v2310, %v2310
      %vm2439 = vcmp.ne.f32.partialorder %v2311, %v2311
      %vm2440 = vcmp.ne.f32.partialorder %v2312, %v2312
      %vm2441 = vcmp.ne.f32.partialorder %v2313, %v2313
      %vm2442 = vcmp.ne.f32.partialorder %v2314, %v2314
      %vm2443 = vcmp.ne.f32.partialorder %v2315, %v2315
      %vm2444 = vcmp.ne.f32.partialorder %v2316, %v2316
      %vm2445 = vcmp.ne.f32.partialorder %v2317, %v2317
      %vm2446 = vcmp.ne.f32.partialorder %v2318, %v2318
      %vm2447 = vcmp.ne.f32.partialorder %v2319, %v2319
      %vm2448 = vcmp.ne.f32.partialorder %v2320, %v2320
      %vm2449 = vcmp.ne.f32.partialorder %v2321, %v2321
      %vm2450 = vcmp.ne.f32.partialorder %v2322, %v2322
      %vm2451 = vcmp.ne.f32.partialorder %v2323, %v2323
      %vm2452 = vcmp.ne.f32.partialorder %v2324, %v2324
      %vm2453 = vcmp.ne.f32.partialorder %v2325, %v2325
      %vm2454 = vcmp.ne.f32.partialorder %v2326, %v2326
      %vm2455 = vcmp.ne.f32.partialorder %v2327, %v2327
      %vm2456 = vcmp.ne.f32.partialorder %v2328, %v2328
      %vm2457 = vcmp.ne.f32.partialorder %v2329, %v2329
      %vm2458 = vcmp.ne.f32.partialorder %v2330, %v2330
      %vm2459 = vcmp.ne.f32.partialorder %v2331, %v2331
      %vm2460 = vcmp.ne.f32.partialorder %v2332, %v2332
      %vm2461 = vcmp.ne.f32.partialorder %v2333, %v2333
      %vm2462 = vcmp.ne.f32.partialorder %v2334, %v2334
      %vm2463 = vcmp.ne.f32.partialorder %v2335, %v2335
      %vm2464 = vcmp.ne.f32.partialorder %v2336, %v2336
      %vm2465 = vcmp.ne.f32.partialorder %v2337, %v2337
      %vm2466 = vcmp.ne.f32.partialorder %v2338, %v2338
      %vm2467 = vcmp.ne.f32.partialorder %v2339, %v2339
      %vm2468 = vcmp.ne.f32.partialorder %v2340, %v2340
      %v2469 = vsel %vm2341, 0.0, %v2213
      %v2470 = vsel %vm2342, 0.0, %v2214
      %v2471 = vsel %vm2343, 0.0, %v2215
      %v2472 = vsel %vm2344, 0.0, %v2216
      %v2473 = vsel %vm2345, 0.0, %v2217
      %v2474 = vsel %vm2346, 0.0, %v2218
      %v2475 = vsel %vm2347, 0.0, %v2219
      %v2476 = vsel %vm2348, 0.0, %v2220
      %v2477 = vsel %vm2349, 0.0, %v2221
      %v2478 = vsel %vm2350, 0.0, %v2222
      %v2479 = vsel %vm2351, 0.0, %v2223
      %v2480 = vsel %vm2352, 0.0, %v2224
      %v2481 = vsel %vm2353, 0.0, %v2225
      %v2482 = vsel %vm2354, 0.0, %v2226
      %v2483 = vsel %vm2355, 0.0, %v2227
      %v2484 = vsel %vm2356, 0.0, %v2228
      %v2485 = vsel %vm2357, 0.0, %v2229
      %v2486 = vsel %vm2358, 0.0, %v2230
      %v2487 = vsel %vm2359, 0.0, %v2231
      %v2488 = vsel %vm2360, 0.0, %v2232
      %v2489 = vsel %vm2361, 0.0, %v2233
      %v2490 = vsel %vm2362, 0.0, %v2234
      %v2491 = vsel %vm2363, 0.0, %v2235
      %v2492 = vsel %vm2364, 0.0, %v2236
      %v2493 = vsel %vm2365, 0.0, %v2237
      %v2494 = vsel %vm2366, 0.0, %v2238
      %v2495 = vsel %vm2367, 0.0, %v2239
      %v2496 = vsel %vm2368, 0.0, %v2240
      %v2497 = vsel %vm2369, 0.0, %v2241
      %v2498 = vsel %vm2370, 0.0, %v2242
      %v2499 = vsel %vm2371, 0.0, %v2243
      %v2500 = vsel %vm2372, 0.0, %v2244
      %v2501 = vsel %vm2373, 0.0, %v2245
      %v2502 = vsel %vm2374, 0.0, %v2246
      %v2503 = vsel %vm2375, 0.0, %v2247
      %v2504 = vsel %vm2376, 0.0, %v2248
      %v2505 = vsel %vm2377, 0.0, %v2249
      %v2506 = vsel %vm2378, 0.0, %v2250
      %v2507 = vsel %vm2379, 0.0, %v2251
      %v2508 = vsel %vm2380, 0.0, %v2252
      %v2509 = vsel %vm2381, 0.0, %v2253
      %v2510 = vsel %vm2382, 0.0, %v2254
      %v2511 = vsel %vm2383, 0.0, %v2255
      %v2512 = vsel %vm2384, 0.0, %v2256
      %v2513 = vsel %vm2385, 0.0, %v2257
      %v2514 = vsel %vm2386, 0.0, %v2258
      %v2515 = vsel %vm2387, 0.0, %v2259
      %v2516 = vsel %vm2388, 0.0, %v2260
      %v2517 = vsel %vm2389, 0.0, %v2261
      %v2518 = vsel %vm2390, 0.0, %v2262
      %v2519 = vsel %vm2391, 0.0, %v2263
      %v2520 = vsel %vm2392, 0.0, %v2264
      %v2521 = vsel %vm2393, 0.0, %v2265
      %v2522 = vsel %vm2394, 0.0, %v2266
      %v2523 = vsel %vm2395, 0.0, %v2267
      %v2524 = vsel %vm2396, 0.0, %v2268
      %v2525 = vsel %vm2397, 0.0, %v2269
      %v2526 = vsel %vm2398, 0.0, %v2270
      %v2527 = vsel %vm2399, 0.0, %v2271
      %v2528 = vsel %vm2400, 0.0, %v2272
      %v2529 = vsel %vm2401, 0.0, %v2273
      %v2530 = vsel %vm2402, 0.0, %v2274
      %v2531 = vsel %vm2403, 0.0, %v2275
      %v2532 = vsel %vm2404, 0.0, %v2276
      %v2533 = vsel %vm2405, 0.0, %v2277
      %v2534 = vsel %vm2406, 0.0, %v2278
      %v2535 = vsel %vm2407, 0.0, %v2279
      %v2536 = vsel %vm2408, 0.0, %v2280
      %v2537 = vsel %vm2409, 0.0, %v2281
      %v2538 = vsel %vm2410, 0.0, %v2282
      %v2539 = vsel %vm2411, 0.0, %v2283
      %v2540 = vsel %vm2412, 0.0, %v2284
      %v2541 = vsel %vm2413, 0.0, %v2285
      %v2542 = vsel %vm2414, 0.0, %v2286
      %v2543 = vsel %vm2415, 0.0, %v2287
      %v2544 = vsel %vm2416, 0.0, %v2288
      %v2545 = vsel %vm2417, 0.0, %v2289
      %v2546 = vsel %vm2418, 0.0, %v2290
      %v2547 = vsel %vm2419, 0.0, %v2291
      %v2548 = vsel %vm2420, 0.0, %v2292
      %v2549 = vsel %vm2421, 0.0, %v2293
      %v2550 = vsel %vm2422, 0.0, %v2294
      %v2551 = vsel %vm2423, 0.0, %v2295
      %v2552 = vsel %vm2424, 0.0, %v2296
      %v2553 = vsel %vm2425, 0.0, %v2297
      %v2554 = vsel %vm2426, 0.0, %v2298
      %v2555 = vsel %vm2427, 0.0, %v2299
      %v2556 = vsel %vm2428, 0.0, %v2300
      %v2557 = vsel %vm2429, 0.0, %v2301
      %v2558 = vsel %vm2430, 0.0, %v2302
      %v2559 = vsel %vm2431, 0.0, %v2303
      %v2560 = vsel %vm2432, 0.0, %v2304
      %v2561 = vsel %vm2433, 0.0, %v2305
      %v2562 = vsel %vm2434, 0.0, %v2306
      %v2563 = vsel %vm2435, 0.0, %v2307
      %v2564 = vsel %vm2436, 0.0, %v2308
      %v2565 = vsel %vm2437, 0.0, %v2309
      %v2566 = vsel %vm2438, 0.0, %v2310
      %v2567 = vsel %vm2439, 0.0, %v2311
      %v2568 = vsel %vm2440, 0.0, %v2312
      %v2569 = vsel %vm2441, 0.0, %v2313
      %v2570 = vsel %vm2442, 0.0, %v2314
      %v2571 = vsel %vm2443, 0.0, %v2315
      %v2572 = vsel %vm2444, 0.0, %v2316
      %v2573 = vsel %vm2445, 0.0, %v2317
      %v2574 = vsel %vm2446, 0.0, %v2318
      %v2575 = vsel %vm2447, 0.0, %v2319
      %v2576 = vsel %vm2448, 0.0, %v2320
      %v2577 = vsel %vm2449, 0.0, %v2321
      %v2578 = vsel %vm2450, 0.0, %v2322
      %v2579 = vsel %vm2451, 0.0, %v2323
      %v2580 = vsel %vm2452, 0.0, %v2324
      %v2581 = vsel %vm2453, 0.0, %v2325
      %v2582 = vsel %vm2454, 0.0, %v2326
      %v2583 = vsel %vm2455, 0.0, %v2327
      %v2584 = vsel %vm2456, 0.0, %v2328
      %v2585 = vsel %vm2457, 0.0, %v2329
      %v2586 = vsel %vm2458, 0.0, %v2330
      %v2587 = vsel %vm2459, 0.0, %v2331
      %v2588 = vsel %vm2460, 0.0, %v2332
      %v2589 = vsel %vm2461, 0.0, %v2333
      %v2590 = vsel %vm2462, 0.0, %v2334
      %v2591 = vsel %vm2463, 0.0, %v2335
      %v2592 = vsel %vm2464, 0.0, %v2336
      %v2593 = vsel %vm2465, 0.0, %v2337
      %v2594 = vsel %vm2466, 0.0, %v2338
      %v2595 = vsel %vm2467, 0.0, %v2339
      %v2596 = vsel %vm2468, 0.0, %v2340
      %vm2597 = vcmp.eq.f32.partialorder %v2469, inf
      %vm2598 = vcmp.eq.f32.partialorder %v2470, inf
      %vm2599 = vcmp.eq.f32.partialorder %v2471, inf
      %vm2600 = vcmp.eq.f32.partialorder %v2472, inf
      %vm2601 = vcmp.eq.f32.partialorder %v2473, inf
      %vm2602 = vcmp.eq.f32.partialorder %v2474, inf
      %vm2603 = vcmp.eq.f32.partialorder %v2475, inf
      %vm2604 = vcmp.eq.f32.partialorder %v2476, inf
      %vm2605 = vcmp.eq.f32.partialorder %v2477, inf
      %vm2606 = vcmp.eq.f32.partialorder %v2478, inf
      %vm2607 = vcmp.eq.f32.partialorder %v2479, inf
      %vm2608 = vcmp.eq.f32.partialorder %v2480, inf
      %vm2609 = vcmp.eq.f32.partialorder %v2481, inf
      %vm2610 = vcmp.eq.f32.partialorder %v2482, inf
      %vm2611 = vcmp.eq.f32.partialorder %v2483, inf
      %vm2612 = vcmp.eq.f32.partialorder %v2484, inf
      %vm2613 = vcmp.eq.f32.partialorder %v2485, inf
      %vm2614 = vcmp.eq.f32.partialorder %v2486, inf
      %vm2615 = vcmp.eq.f32.partialorder %v2487, inf
      %vm2616 = vcmp.eq.f32.partialorder %v2488, inf
      %vm2617 = vcmp.eq.f32.partialorder %v2489, inf
      %vm2618 = vcmp.eq.f32.partialorder %v2490, inf
      %vm2619 = vcmp.eq.f32.partialorder %v2491, inf
      %vm2620 = vcmp.eq.f32.partialorder %v2492, inf
      %vm2621 = vcmp.eq.f32.partialorder %v2493, inf
      %vm2622 = vcmp.eq.f32.partialorder %v2494, inf
      %vm2623 = vcmp.eq.f32.partialorder %v2495, inf
      %vm2624 = vcmp.eq.f32.partialorder %v2496, inf
      %vm2625 = vcmp.eq.f32.partialorder %v2497, inf
      %vm2626 = vcmp.eq.f32.partialorder %v2498, inf
      %vm2627 = vcmp.eq.f32.partialorder %v2499, inf
      %vm2628 = vcmp.eq.f32.partialorder %v2500, inf
      %vm2629 = vcmp.eq.f32.partialorder %v2501, inf
      %vm2630 = vcmp.eq.f32.partialorder %v2502, inf
      %vm2631 = vcmp.eq.f32.partialorder %v2503, inf
      %vm2632 = vcmp.eq.f32.partialorder %v2504, inf
      %vm2633 = vcmp.eq.f32.partialorder %v2505, inf
      %vm2634 = vcmp.eq.f32.partialorder %v2506, inf
      %vm2635 = vcmp.eq.f32.partialorder %v2507, inf
      %vm2636 = vcmp.eq.f32.partialorder %v2508, inf
      %vm2637 = vcmp.eq.f32.partialorder %v2509, inf
      %vm2638 = vcmp.eq.f32.partialorder %v2510, inf
      %vm2639 = vcmp.eq.f32.partialorder %v2511, inf
      %vm2640 = vcmp.eq.f32.partialorder %v2512, inf
      %vm2641 = vcmp.eq.f32.partialorder %v2513, inf
      %vm2642 = vcmp.eq.f32.partialorder %v2514, inf
      %vm2643 = vcmp.eq.f32.partialorder %v2515, inf
      %vm2644 = vcmp.eq.f32.partialorder %v2516, inf
      %vm2645 = vcmp.eq.f32.partialorder %v2517, inf
      %vm2646 = vcmp.eq.f32.partialorder %v2518, inf
      %vm2647 = vcmp.eq.f32.partialorder %v2519, inf
      %vm2648 = vcmp.eq.f32.partialorder %v2520, inf
      %vm2649 = vcmp.eq.f32.partialorder %v2521, inf
      %vm2650 = vcmp.eq.f32.partialorder %v2522, inf
      %vm2651 = vcmp.eq.f32.partialorder %v2523, inf
      %vm2652 = vcmp.eq.f32.partialorder %v2524, inf
      %vm2653 = vcmp.eq.f32.partialorder %v2525, inf
      %vm2654 = vcmp.eq.f32.partialorder %v2526, inf
      %vm2655 = vcmp.eq.f32.partialorder %v2527, inf
      %vm2656 = vcmp.eq.f32.partialorder %v2528, inf
      %vm2657 = vcmp.eq.f32.partialorder %v2529, inf
      %vm2658 = vcmp.eq.f32.partialorder %v2530, inf
      %vm2659 = vcmp.eq.f32.partialorder %v2531, inf
      %vm2660 = vcmp.eq.f32.partialorder %v2532, inf
      %vm2661 = vcmp.eq.f32.partialorder %v2533, inf
      %vm2662 = vcmp.eq.f32.partialorder %v2534, inf
      %vm2663 = vcmp.eq.f32.partialorder %v2535, inf
      %vm2664 = vcmp.eq.f32.partialorder %v2536, inf
      %vm2665 = vcmp.eq.f32.partialorder %v2537, inf
      %vm2666 = vcmp.eq.f32.partialorder %v2538, inf
      %vm2667 = vcmp.eq.f32.partialorder %v2539, inf
      %vm2668 = vcmp.eq.f32.partialorder %v2540, inf
      %vm2669 = vcmp.eq.f32.partialorder %v2541, inf
      %vm2670 = vcmp.eq.f32.partialorder %v2542, inf
      %vm2671 = vcmp.eq.f32.partialorder %v2543, inf
      %vm2672 = vcmp.eq.f32.partialorder %v2544, inf
      %vm2673 = vcmp.eq.f32.partialorder %v2545, inf
      %vm2674 = vcmp.eq.f32.partialorder %v2546, inf
      %vm2675 = vcmp.eq.f32.partialorder %v2547, inf
      %vm2676 = vcmp.eq.f32.partialorder %v2548, inf
      %vm2677 = vcmp.eq.f32.partialorder %v2549, inf
      %vm2678 = vcmp.eq.f32.partialorder %v2550, inf
      %vm2679 = vcmp.eq.f32.partialorder %v2551, inf
      %vm2680 = vcmp.eq.f32.partialorder %v2552, inf
      %vm2681 = vcmp.eq.f32.partialorder %v2553, inf
      %vm2682 = vcmp.eq.f32.partialorder %v2554, inf
      %vm2683 = vcmp.eq.f32.partialorder %v2555, inf
      %vm2684 = vcmp.eq.f32.partialorder %v2556, inf
      %vm2685 = vcmp.eq.f32.partialorder %v2557, inf
      %vm2686 = vcmp.eq.f32.partialorder %v2558, inf
      %vm2687 = vcmp.eq.f32.partialorder %v2559, inf
      %vm2688 = vcmp.eq.f32.partialorder %v2560, inf
      %vm2689 = vcmp.eq.f32.partialorder %v2561, inf
      %vm2690 = vcmp.eq.f32.partialorder %v2562, inf
      %vm2691 = vcmp.eq.f32.partialorder %v2563, inf
      %vm2692 = vcmp.eq.f32.partialorder %v2564, inf
      %vm2693 = vcmp.eq.f32.partialorder %v2565, inf
      %vm2694 = vcmp.eq.f32.partialorder %v2566, inf
      %vm2695 = vcmp.eq.f32.partialorder %v2567, inf
      %vm2696 = vcmp.eq.f32.partialorder %v2568, inf
      %vm2697 = vcmp.eq.f32.partialorder %v2569, inf
      %vm2698 = vcmp.eq.f32.partialorder %v2570, inf
      %vm2699 = vcmp.eq.f32.partialorder %v2571, inf
      %vm2700 = vcmp.eq.f32.partialorder %v2572, inf
      %vm2701 = vcmp.eq.f32.partialorder %v2573, inf
      %vm2702 = vcmp.eq.f32.partialorder %v2574, inf
      %vm2703 = vcmp.eq.f32.partialorder %v2575, inf
      %vm2704 = vcmp.eq.f32.partialorder %v2576, inf
      %vm2705 = vcmp.eq.f32.partialorder %v2577, inf
      %vm2706 = vcmp.eq.f32.partialorder %v2578, inf
      %vm2707 = vcmp.eq.f32.partialorder %v2579, inf
      %vm2708 = vcmp.eq.f32.partialorder %v2580, inf
      %vm2709 = vcmp.eq.f32.partialorder %v2581, inf
      %vm2710 = vcmp.eq.f32.partialorder %v2582, inf
      %vm2711 = vcmp.eq.f32.partialorder %v2583, inf
      %vm2712 = vcmp.eq.f32.partialorder %v2584, inf
      %vm2713 = vcmp.eq.f32.partialorder %v2585, inf
      %vm2714 = vcmp.eq.f32.partialorder %v2586, inf
      %vm2715 = vcmp.eq.f32.partialorder %v2587, inf
      %vm2716 = vcmp.eq.f32.partialorder %v2588, inf
      %vm2717 = vcmp.eq.f32.partialorder %v2589, inf
      %vm2718 = vcmp.eq.f32.partialorder %v2590, inf
      %vm2719 = vcmp.eq.f32.partialorder %v2591, inf
      %vm2720 = vcmp.eq.f32.partialorder %v2592, inf
      %vm2721 = vcmp.eq.f32.partialorder %v2593, inf
      %vm2722 = vcmp.eq.f32.partialorder %v2594, inf
      %vm2723 = vcmp.eq.f32.partialorder %v2595, inf
      %vm2724 = vcmp.eq.f32.partialorder %v2596, inf
      %v2725 = vsel %vm2597, 1000.0, %v2469
      %v2726 = vsel %vm2598, 1000.0, %v2470
      %v2727 = vsel %vm2599, 1000.0, %v2471
      %v2728 = vsel %vm2600, 1000.0, %v2472
      %v2729 = vsel %vm2601, 1000.0, %v2473
      %v2730 = vsel %vm2602, 1000.0, %v2474
      %v2731 = vsel %vm2603, 1000.0, %v2475
      %v2732 = vsel %vm2604, 1000.0, %v2476
      %v2733 = vsel %vm2605, 1000.0, %v2477
      %v2734 = vsel %vm2606, 1000.0, %v2478
      %v2735 = vsel %vm2607, 1000.0, %v2479
      %v2736 = vsel %vm2608, 1000.0, %v2480
      %v2737 = vsel %vm2609, 1000.0, %v2481
      %v2738 = vsel %vm2610, 1000.0, %v2482
      %v2739 = vsel %vm2611, 1000.0, %v2483
      %v2740 = vsel %vm2612, 1000.0, %v2484
      %v2741 = vsel %vm2613, 1000.0, %v2485
      %v2742 = vsel %vm2614, 1000.0, %v2486
      %v2743 = vsel %vm2615, 1000.0, %v2487
      %v2744 = vsel %vm2616, 1000.0, %v2488
      %v2745 = vsel %vm2617, 1000.0, %v2489
      %v2746 = vsel %vm2618, 1000.0, %v2490
      %v2747 = vsel %vm2619, 1000.0, %v2491
      %v2748 = vsel %vm2620, 1000.0, %v2492
      %v2749 = vsel %vm2621, 1000.0, %v2493
      %v2750 = vsel %vm2622, 1000.0, %v2494
      %v2751 = vsel %vm2623, 1000.0, %v2495
      %v2752 = vsel %vm2624, 1000.0, %v2496
      %v2753 = vsel %vm2625, 1000.0, %v2497
      %v2754 = vsel %vm2626, 1000.0, %v2498
      %v2755 = vsel %vm2627, 1000.0, %v2499
      %v2756 = vsel %vm2628, 1000.0, %v2500
      %v2757 = vsel %vm2629, 1000.0, %v2501
      %v2758 = vsel %vm2630, 1000.0, %v2502
      %v2759 = vsel %vm2631, 1000.0, %v2503
      %v2760 = vsel %vm2632, 1000.0, %v2504
      %v2761 = vsel %vm2633, 1000.0, %v2505
      %v2762 = vsel %vm2634, 1000.0, %v2506
      %v2763 = vsel %vm2635, 1000.0, %v2507
      %v2764 = vsel %vm2636, 1000.0, %v2508
      %v2765 = vsel %vm2637, 1000.0, %v2509
      %v2766 = vsel %vm2638, 1000.0, %v2510
      %v2767 = vsel %vm2639, 1000.0, %v2511
      %v2768 = vsel %vm2640, 1000.0, %v2512
      %v2769 = vsel %vm2641, 1000.0, %v2513
      %v2770 = vsel %vm2642, 1000.0, %v2514
      %v2771 = vsel %vm2643, 1000.0, %v2515
      %v2772 = vsel %vm2644, 1000.0, %v2516
      %v2773 = vsel %vm2645, 1000.0, %v2517
      %v2774 = vsel %vm2646, 1000.0, %v2518
      %v2775 = vsel %vm2647, 1000.0, %v2519
      %v2776 = vsel %vm2648, 1000.0, %v2520
      %v2777 = vsel %vm2649, 1000.0, %v2521
      %v2778 = vsel %vm2650, 1000.0, %v2522
      %v2779 = vsel %vm2651, 1000.0, %v2523
      %v2780 = vsel %vm2652, 1000.0, %v2524
      %v2781 = vsel %vm2653, 1000.0, %v2525
      %v2782 = vsel %vm2654, 1000.0, %v2526
      %v2783 = vsel %vm2655, 1000.0, %v2527
      %v2784 = vsel %vm2656, 1000.0, %v2528
      %v2785 = vsel %vm2657, 1000.0, %v2529
      %v2786 = vsel %vm2658, 1000.0, %v2530
      %v2787 = vsel %vm2659, 1000.0, %v2531
      %v2788 = vsel %vm2660, 1000.0, %v2532
      %v2789 = vsel %vm2661, 1000.0, %v2533
      %v2790 = vsel %vm2662, 1000.0, %v2534
      %v2791 = vsel %vm2663, 1000.0, %v2535
      %v2792 = vsel %vm2664, 1000.0, %v2536
      %v2793 = vsel %vm2665, 1000.0, %v2537
      %v2794 = vsel %vm2666, 1000.0, %v2538
      %v2795 = vsel %vm2667, 1000.0, %v2539
      %v2796 = vsel %vm2668, 1000.0, %v2540
      %v2797 = vsel %vm2669, 1000.0, %v2541
      %v2798 = vsel %vm2670, 1000.0, %v2542
      %v2799 = vsel %vm2671, 1000.0, %v2543
      %v2800 = vsel %vm2672, 1000.0, %v2544
      %v2801 = vsel %vm2673, 1000.0, %v2545
      %v2802 = vsel %vm2674, 1000.0, %v2546
      %v2803 = vsel %vm2675, 1000.0, %v2547
      %v2804 = vsel %vm2676, 1000.0, %v2548
      %v2805 = vsel %vm2677, 1000.0, %v2549
      %v2806 = vsel %vm2678, 1000.0, %v2550
      %v2807 = vsel %vm2679, 1000.0, %v2551
      %v2808 = vsel %vm2680, 1000.0, %v2552
      %v2809 = vsel %vm2681, 1000.0, %v2553
      %v2810 = vsel %vm2682, 1000.0, %v2554
      %v2811 = vsel %vm2683, 1000.0, %v2555
      %v2812 = vsel %vm2684, 1000.0, %v2556
      %v2813 = vsel %vm2685, 1000.0, %v2557
      %v2814 = vsel %vm2686, 1000.0, %v2558
      %v2815 = vsel %vm2687, 1000.0, %v2559
      %v2816 = vsel %vm2688, 1000.0, %v2560
      %v2817 = vsel %vm2689, 1000.0, %v2561
      %v2818 = vsel %vm2690, 1000.0, %v2562
      %v2819 = vsel %vm2691, 1000.0, %v2563
      %v2820 = vsel %vm2692, 1000.0, %v2564
      %v2821 = vsel %vm2693, 1000.0, %v2565
      %v2822 = vsel %vm2694, 1000.0, %v2566
      %v2823 = vsel %vm2695, 1000.0, %v2567
      %v2824 = vsel %vm2696, 1000.0, %v2568
      %v2825 = vsel %vm2697, 1000.0, %v2569
      %v2826 = vsel %vm2698, 1000.0, %v2570
      %v2827 = vsel %vm2699, 1000.0, %v2571
      %v2828 = vsel %vm2700, 1000.0, %v2572
      %v2829 = vsel %vm2701, 1000.0, %v2573
      %v2830 = vsel %vm2702, 1000.0, %v2574
      %v2831 = vsel %vm2703, 1000.0, %v2575
      %v2832 = vsel %vm2704, 1000.0, %v2576
      %v2833 = vsel %vm2705, 1000.0, %v2577
      %v2834 = vsel %vm2706, 1000.0, %v2578
      %v2835 = vsel %vm2707, 1000.0, %v2579
      %v2836 = vsel %vm2708, 1000.0, %v2580
      %v2837 = vsel %vm2709, 1000.0, %v2581
      %v2838 = vsel %vm2710, 1000.0, %v2582
      %v2839 = vsel %vm2711, 1000.0, %v2583
      %v2840 = vsel %vm2712, 1000.0, %v2584
      %v2841 = vsel %vm2713, 1000.0, %v2585
      %v2842 = vsel %vm2714, 1000.0, %v2586
      %v2843 = vsel %vm2715, 1000.0, %v2587
      %v2844 = vsel %vm2716, 1000.0, %v2588
      %v2845 = vsel %vm2717, 1000.0, %v2589
      %v2846 = vsel %vm2718, 1000.0, %v2590
      %v2847 = vsel %vm2719, 1000.0, %v2591
      %v2848 = vsel %vm2720, 1000.0, %v2592
      %v2849 = vsel %vm2721, 1000.0, %v2593
      %v2850 = vsel %vm2722, 1000.0, %v2594
      %v2851 = vsel %vm2723, 1000.0, %v2595
      %v2852 = vsel %vm2724, 1000.0, %v2596
      %vm2853 = vcmp.eq.f32.partialorder %v2725, -inf
      %vm2854 = vcmp.eq.f32.partialorder %v2726, -inf
      %vm2855 = vcmp.eq.f32.partialorder %v2727, -inf
      %vm2856 = vcmp.eq.f32.partialorder %v2728, -inf
      %vm2857 = vcmp.eq.f32.partialorder %v2729, -inf
      %vm2858 = vcmp.eq.f32.partialorder %v2730, -inf
      %vm2859 = vcmp.eq.f32.partialorder %v2731, -inf
      %vm2860 = vcmp.eq.f32.partialorder %v2732, -inf
      %vm2861 = vcmp.eq.f32.partialorder %v2733, -inf
      %vm2862 = vcmp.eq.f32.partialorder %v2734, -inf
      %vm2863 = vcmp.eq.f32.partialorder %v2735, -inf
      %vm2864 = vcmp.eq.f32.partialorder %v2736, -inf
      %vm2865 = vcmp.eq.f32.partialorder %v2737, -inf
      %vm2866 = vcmp.eq.f32.partialorder %v2738, -inf
      %vm2867 = vcmp.eq.f32.partialorder %v2739, -inf
      %vm2868 = vcmp.eq.f32.partialorder %v2740, -inf
      %vm2869 = vcmp.eq.f32.partialorder %v2741, -inf
      %vm2870 = vcmp.eq.f32.partialorder %v2742, -inf
      %vm2871 = vcmp.eq.f32.partialorder %v2743, -inf
      %vm2872 = vcmp.eq.f32.partialorder %v2744, -inf
      %vm2873 = vcmp.eq.f32.partialorder %v2745, -inf
      %vm2874 = vcmp.eq.f32.partialorder %v2746, -inf
      %vm2875 = vcmp.eq.f32.partialorder %v2747, -inf
      %vm2876 = vcmp.eq.f32.partialorder %v2748, -inf
      %vm2877 = vcmp.eq.f32.partialorder %v2749, -inf
      %vm2878 = vcmp.eq.f32.partialorder %v2750, -inf
      %vm2879 = vcmp.eq.f32.partialorder %v2751, -inf
      %vm2880 = vcmp.eq.f32.partialorder %v2752, -inf
      %vm2881 = vcmp.eq.f32.partialorder %v2753, -inf
      %vm2882 = vcmp.eq.f32.partialorder %v2754, -inf
      %vm2883 = vcmp.eq.f32.partialorder %v2755, -inf
      %vm2884 = vcmp.eq.f32.partialorder %v2756, -inf
      %vm2885 = vcmp.eq.f32.partialorder %v2757, -inf
      %vm2886 = vcmp.eq.f32.partialorder %v2758, -inf
      %vm2887 = vcmp.eq.f32.partialorder %v2759, -inf
      %vm2888 = vcmp.eq.f32.partialorder %v2760, -inf
      %vm2889 = vcmp.eq.f32.partialorder %v2761, -inf
      %vm2890 = vcmp.eq.f32.partialorder %v2762, -inf
      %vm2891 = vcmp.eq.f32.partialorder %v2763, -inf
      %vm2892 = vcmp.eq.f32.partialorder %v2764, -inf
      %vm2893 = vcmp.eq.f32.partialorder %v2765, -inf
      %vm2894 = vcmp.eq.f32.partialorder %v2766, -inf
      %vm2895 = vcmp.eq.f32.partialorder %v2767, -inf
      %vm2896 = vcmp.eq.f32.partialorder %v2768, -inf
      %vm2897 = vcmp.eq.f32.partialorder %v2769, -inf
      %vm2898 = vcmp.eq.f32.partialorder %v2770, -inf
      %vm2899 = vcmp.eq.f32.partialorder %v2771, -inf
      %vm2900 = vcmp.eq.f32.partialorder %v2772, -inf
      %vm2901 = vcmp.eq.f32.partialorder %v2773, -inf
      %vm2902 = vcmp.eq.f32.partialorder %v2774, -inf
      %vm2903 = vcmp.eq.f32.partialorder %v2775, -inf
      %vm2904 = vcmp.eq.f32.partialorder %v2776, -inf
      %vm2905 = vcmp.eq.f32.partialorder %v2777, -inf
      %vm2906 = vcmp.eq.f32.partialorder %v2778, -inf
      %vm2907 = vcmp.eq.f32.partialorder %v2779, -inf
      %vm2908 = vcmp.eq.f32.partialorder %v2780, -inf
      %vm2909 = vcmp.eq.f32.partialorder %v2781, -inf
      %vm2910 = vcmp.eq.f32.partialorder %v2782, -inf
      %vm2911 = vcmp.eq.f32.partialorder %v2783, -inf
      %vm2912 = vcmp.eq.f32.partialorder %v2784, -inf
      %vm2913 = vcmp.eq.f32.partialorder %v2785, -inf
      %vm2914 = vcmp.eq.f32.partialorder %v2786, -inf
      %vm2915 = vcmp.eq.f32.partialorder %v2787, -inf
      %vm2916 = vcmp.eq.f32.partialorder %v2788, -inf
      %vm2917 = vcmp.eq.f32.partialorder %v2789, -inf
      %vm2918 = vcmp.eq.f32.partialorder %v2790, -inf
      %vm2919 = vcmp.eq.f32.partialorder %v2791, -inf
      %vm2920 = vcmp.eq.f32.partialorder %v2792, -inf
      %vm2921 = vcmp.eq.f32.partialorder %v2793, -inf
      %vm2922 = vcmp.eq.f32.partialorder %v2794, -inf
      %vm2923 = vcmp.eq.f32.partialorder %v2795, -inf
      %vm2924 = vcmp.eq.f32.partialorder %v2796, -inf
      %vm2925 = vcmp.eq.f32.partialorder %v2797, -inf
      %vm2926 = vcmp.eq.f32.partialorder %v2798, -inf
      %vm2927 = vcmp.eq.f32.partialorder %v2799, -inf
      %vm2928 = vcmp.eq.f32.partialorder %v2800, -inf
      %vm2929 = vcmp.eq.f32.partialorder %v2801, -inf
      %vm2930 = vcmp.eq.f32.partialorder %v2802, -inf
      %vm2931 = vcmp.eq.f32.partialorder %v2803, -inf
      %vm2932 = vcmp.eq.f32.partialorder %v2804, -inf
      %vm2933 = vcmp.eq.f32.partialorder %v2805, -inf
      %vm2934 = vcmp.eq.f32.partialorder %v2806, -inf
      %vm2935 = vcmp.eq.f32.partialorder %v2807, -inf
      %vm2936 = vcmp.eq.f32.partialorder %v2808, -inf
      %vm2937 = vcmp.eq.f32.partialorder %v2809, -inf
      %vm2938 = vcmp.eq.f32.partialorder %v2810, -inf
      %vm2939 = vcmp.eq.f32.partialorder %v2811, -inf
      %vm2940 = vcmp.eq.f32.partialorder %v2812, -inf
      %vm2941 = vcmp.eq.f32.partialorder %v2813, -inf
      %vm2942 = vcmp.eq.f32.partialorder %v2814, -inf
      %vm2943 = vcmp.eq.f32.partialorder %v2815, -inf
      %vm2944 = vcmp.eq.f32.partialorder %v2816, -inf
      %vm2945 = vcmp.eq.f32.partialorder %v2817, -inf
      %vm2946 = vcmp.eq.f32.partialorder %v2818, -inf
      %vm2947 = vcmp.eq.f32.partialorder %v2819, -inf
      %vm2948 = vcmp.eq.f32.partialorder %v2820, -inf
      %vm2949 = vcmp.eq.f32.partialorder %v2821, -inf
      %vm2950 = vcmp.eq.f32.partialorder %v2822, -inf
      %vm2951 = vcmp.eq.f32.partialorder %v2823, -inf
      %vm2952 = vcmp.eq.f32.partialorder %v2824, -inf
      %vm2953 = vcmp.eq.f32.partialorder %v2825, -inf
      %vm2954 = vcmp.eq.f32.partialorder %v2826, -inf
      %vm2955 = vcmp.eq.f32.partialorder %v2827, -inf
      %vm2956 = vcmp.eq.f32.partialorder %v2828, -inf
      %vm2957 = vcmp.eq.f32.partialorder %v2829, -inf
      %vm2958 = vcmp.eq.f32.partialorder %v2830, -inf
      %vm2959 = vcmp.eq.f32.partialorder %v2831, -inf
      %vm2960 = vcmp.eq.f32.partialorder %v2832, -inf
      %vm2961 = vcmp.eq.f32.partialorder %v2833, -inf
      %vm2962 = vcmp.eq.f32.partialorder %v2834, -inf
      %vm2963 = vcmp.eq.f32.partialorder %v2835, -inf
      %vm2964 = vcmp.eq.f32.partialorder %v2836, -inf
      %vm2965 = vcmp.eq.f32.partialorder %v2837, -inf
      %vm2966 = vcmp.eq.f32.partialorder %v2838, -inf
      %vm2967 = vcmp.eq.f32.partialorder %v2839, -inf
      %vm2968 = vcmp.eq.f32.partialorder %v2840, -inf
      %vm2969 = vcmp.eq.f32.partialorder %v2841, -inf
      %vm2970 = vcmp.eq.f32.partialorder %v2842, -inf
      %vm2971 = vcmp.eq.f32.partialorder %v2843, -inf
      %vm2972 = vcmp.eq.f32.partialorder %v2844, -inf
      %vm2973 = vcmp.eq.f32.partialorder %v2845, -inf
      %vm2974 = vcmp.eq.f32.partialorder %v2846, -inf
      %vm2975 = vcmp.eq.f32.partialorder %v2847, -inf
      %vm2976 = vcmp.eq.f32.partialorder %v2848, -inf
      %vm2977 = vcmp.eq.f32.partialorder %v2849, -inf
      %vm2978 = vcmp.eq.f32.partialorder %v2850, -inf
      %vm2979 = vcmp.eq.f32.partialorder %v2851, -inf
      %vm2980 = vcmp.eq.f32.partialorder %v2852, -inf
      %v2981 = vsel %vm2853, -1000.0, %v2725
      %v2982 = vsel %vm2854, -1000.0, %v2726
      %v2983 = vsel %vm2855, -1000.0, %v2727
      %v2984 = vsel %vm2856, -1000.0, %v2728
      %v2985 = vsel %vm2857, -1000.0, %v2729
      %v2986 = vsel %vm2858, -1000.0, %v2730
      %v2987 = vsel %vm2859, -1000.0, %v2731
      %v2988 = vsel %vm2860, -1000.0, %v2732
      %v2989 = vsel %vm2861, -1000.0, %v2733
      %v2990 = vsel %vm2862, -1000.0, %v2734
      %v2991 = vsel %vm2863, -1000.0, %v2735
      %v2992 = vsel %vm2864, -1000.0, %v2736
      %v2993 = vsel %vm2865, -1000.0, %v2737
      %v2994 = vsel %vm2866, -1000.0, %v2738
      %v2995 = vsel %vm2867, -1000.0, %v2739
      %v2996 = vsel %vm2868, -1000.0, %v2740
      %v2997 = vsel %vm2869, -1000.0, %v2741
      %v2998 = vsel %vm2870, -1000.0, %v2742
      %v2999 = vsel %vm2871, -1000.0, %v2743
      %v3000 = vsel %vm2872, -1000.0, %v2744
      %v3001 = vsel %vm2873, -1000.0, %v2745
      %v3002 = vsel %vm2874, -1000.0, %v2746
      %v3003 = vsel %vm2875, -1000.0, %v2747
      %v3004 = vsel %vm2876, -1000.0, %v2748
      %v3005 = vsel %vm2877, -1000.0, %v2749
      %v3006 = vsel %vm2878, -1000.0, %v2750
      %v3007 = vsel %vm2879, -1000.0, %v2751
      %v3008 = vsel %vm2880, -1000.0, %v2752
      %v3009 = vsel %vm2881, -1000.0, %v2753
      %v3010 = vsel %vm2882, -1000.0, %v2754
      %v3011 = vsel %vm2883, -1000.0, %v2755
      %v3012 = vsel %vm2884, -1000.0, %v2756
      %v3013 = vsel %vm2885, -1000.0, %v2757
      %v3014 = vsel %vm2886, -1000.0, %v2758
      %v3015 = vsel %vm2887, -1000.0, %v2759
      %v3016 = vsel %vm2888, -1000.0, %v2760
      %v3017 = vsel %vm2889, -1000.0, %v2761
      %v3018 = vsel %vm2890, -1000.0, %v2762
      %v3019 = vsel %vm2891, -1000.0, %v2763
      %v3020 = vsel %vm2892, -1000.0, %v2764
      %v3021 = vsel %vm2893, -1000.0, %v2765
      %v3022 = vsel %vm2894, -1000.0, %v2766
      %v3023 = vsel %vm2895, -1000.0, %v2767
      %v3024 = vsel %vm2896, -1000.0, %v2768
      %v3025 = vsel %vm2897, -1000.0, %v2769
      %v3026 = vsel %vm2898, -1000.0, %v2770
      %v3027 = vsel %vm2899, -1000.0, %v2771
      %v3028 = vsel %vm2900, -1000.0, %v2772
      %v3029 = vsel %vm2901, -1000.0, %v2773
      %v3030 = vsel %vm2902, -1000.0, %v2774
      %v3031 = vsel %vm2903, -1000.0, %v2775
      %v3032 = vsel %vm2904, -1000.0, %v2776
      %v3033 = vsel %vm2905, -1000.0, %v2777
      %v3034 = vsel %vm2906, -1000.0, %v2778
      %v3035 = vsel %vm2907, -1000.0, %v2779
      %v3036 = vsel %vm2908, -1000.0, %v2780
      %v3037 = vsel %vm2909, -1000.0, %v2781
      %v3038 = vsel %vm2910, -1000.0, %v2782
      %v3039 = vsel %vm2911, -1000.0, %v2783
      %v3040 = vsel %vm2912, -1000.0, %v2784
      %v3041 = vsel %vm2913, -1000.0, %v2785
      %v3042 = vsel %vm2914, -1000.0, %v2786
      %v3043 = vsel %vm2915, -1000.0, %v2787
      %v3044 = vsel %vm2916, -1000.0, %v2788
      %v3045 = vsel %vm2917, -1000.0, %v2789
      %v3046 = vsel %vm2918, -1000.0, %v2790
      %v3047 = vsel %vm2919, -1000.0, %v2791
      %v3048 = vsel %vm2920, -1000.0, %v2792
      %v3049 = vsel %vm2921, -1000.0, %v2793
      %v3050 = vsel %vm2922, -1000.0, %v2794
      %v3051 = vsel %vm2923, -1000.0, %v2795
      %v3052 = vsel %vm2924, -1000.0, %v2796
      %v3053 = vsel %vm2925, -1000.0, %v2797
      %v3054 = vsel %vm2926, -1000.0, %v2798
      %v3055 = vsel %vm2927, -1000.0, %v2799
      %v3056 = vsel %vm2928, -1000.0, %v2800
      %v3057 = vsel %vm2929, -1000.0, %v2801
      %v3058 = vsel %vm2930, -1000.0, %v2802
      %v3059 = vsel %vm2931, -1000.0, %v2803
      %v3060 = vsel %vm2932, -1000.0, %v2804
      %v3061 = vsel %vm2933, -1000.0, %v2805
      %v3062 = vsel %vm2934, -1000.0, %v2806
      %v3063 = vsel %vm2935, -1000.0, %v2807
      %v3064 = vsel %vm2936, -1000.0, %v2808
      %v3065 = vsel %vm2937, -1000.0, %v2809
      %v3066 = vsel %vm2938, -1000.0, %v2810
      %v3067 = vsel %vm2939, -1000.0, %v2811
      %v3068 = vsel %vm2940, -1000.0, %v2812
      %v3069 = vsel %vm2941, -1000.0, %v2813
      %v3070 = vsel %vm2942, -1000.0, %v2814
      %v3071 = vsel %vm2943, -1000.0, %v2815
      %v3072 = vsel %vm2944, -1000.0, %v2816
      %v3073 = vsel %vm2945, -1000.0, %v2817
      %v3074 = vsel %vm2946, -1000.0, %v2818
      %v3075 = vsel %vm2947, -1000.0, %v2819
      %v3076 = vsel %vm2948, -1000.0, %v2820
      %v3077 = vsel %vm2949, -1000.0, %v2821
      %v3078 = vsel %vm2950, -1000.0, %v2822
      %v3079 = vsel %vm2951, -1000.0, %v2823
      %v3080 = vsel %vm2952, -1000.0, %v2824
      %v3081 = vsel %vm2953, -1000.0, %v2825
      %v3082 = vsel %vm2954, -1000.0, %v2826
      %v3083 = vsel %vm2955, -1000.0, %v2827
      %v3084 = vsel %vm2956, -1000.0, %v2828
      %v3085 = vsel %vm2957, -1000.0, %v2829
      %v3086 = vsel %vm2958, -1000.0, %v2830
      %v3087 = vsel %vm2959, -1000.0, %v2831
      %v3088 = vsel %vm2960, -1000.0, %v2832
      %v3089 = vsel %vm2961, -1000.0, %v2833
      %v3090 = vsel %vm2962, -1000.0, %v2834
      %v3091 = vsel %vm2963, -1000.0, %v2835
      %v3092 = vsel %vm2964, -1000.0, %v2836
      %v3093 = vsel %vm2965, -1000.0, %v2837
      %v3094 = vsel %vm2966, -1000.0, %v2838
      %v3095 = vsel %vm2967, -1000.0, %v2839
      %v3096 = vsel %vm2968, -1000.0, %v2840
      %v3097 = vsel %vm2969, -1000.0, %v2841
      %v3098 = vsel %vm2970, -1000.0, %v2842
      %v3099 = vsel %vm2971, -1000.0, %v2843
      %v3100 = vsel %vm2972, -1000.0, %v2844
      %v3101 = vsel %vm2973, -1000.0, %v2845
      %v3102 = vsel %vm2974, -1000.0, %v2846
      %v3103 = vsel %vm2975, -1000.0, %v2847
      %v3104 = vsel %vm2976, -1000.0, %v2848
      %v3105 = vsel %vm2977, -1000.0, %v2849
      %v3106 = vsel %vm2978, -1000.0, %v2850
      %v3107 = vsel %vm2979, -1000.0, %v2851
      %v3108 = vsel %vm2980, -1000.0, %v2852
      %v3109 = vpack.c.bf16 %v2989, %v2981
      %v3110 = vpack.c.bf16 %v2990, %v2982
      %v3111 = vpack.c.bf16 %v2991, %v2983
      %v3112 = vpack.c.bf16 %v2992, %v2984
      %v3113 = vpack.c.bf16 %v2993, %v2985
      %v3114 = vpack.c.bf16 %v2994, %v2986
      %v3115 = vpack.c.bf16 %v2995, %v2987
      %v3116 = vpack.c.bf16 %v2996, %v2988
      %v3117 = vpack.c.bf16 %v3005, %v2997
      %v3118 = vpack.c.bf16 %v3006, %v2998
      %v3119 = vpack.c.bf16 %v3007, %v2999
      %v3120 = vpack.c.bf16 %v3008, %v3000
      %v3121 = vpack.c.bf16 %v3009, %v3001
      %v3122 = vpack.c.bf16 %v3010, %v3002
      %v3123 = vpack.c.bf16 %v3011, %v3003
      %v3124 = vpack.c.bf16 %v3012, %v3004
      %v3125 = vpack.c.bf16 %v3021, %v3013
      %v3126 = vpack.c.bf16 %v3022, %v3014
      %v3127 = vpack.c.bf16 %v3023, %v3015
      %v3128 = vpack.c.bf16 %v3024, %v3016
      %v3129 = vpack.c.bf16 %v3025, %v3017
      %v3130 = vpack.c.bf16 %v3026, %v3018
      %v3131 = vpack.c.bf16 %v3027, %v3019
      %v3132 = vpack.c.bf16 %v3028, %v3020
      %v3133 = vpack.c.bf16 %v3037, %v3029
      %v3134 = vpack.c.bf16 %v3038, %v3030
      %v3135 = vpack.c.bf16 %v3039, %v3031
      %v3136 = vpack.c.bf16 %v3040, %v3032
      %v3137 = vpack.c.bf16 %v3041, %v3033
      %v3138 = vpack.c.bf16 %v3042, %v3034
      %v3139 = vpack.c.bf16 %v3043, %v3035
      %v3140 = vpack.c.bf16 %v3044, %v3036
      %v3141 = vpack.c.bf16 %v3053, %v3045
      %v3142 = vpack.c.bf16 %v3054, %v3046
      %v3143 = vpack.c.bf16 %v3055, %v3047
      %v3144 = vpack.c.bf16 %v3056, %v3048
      %v3145 = vpack.c.bf16 %v3057, %v3049
      %v3146 = vpack.c.bf16 %v3058, %v3050
      %v3147 = vpack.c.bf16 %v3059, %v3051
      %v3148 = vpack.c.bf16 %v3060, %v3052
      %v3149 = vpack.c.bf16 %v3069, %v3061
      %v3150 = vpack.c.bf16 %v3070, %v3062
      %v3151 = vpack.c.bf16 %v3071, %v3063
      %v3152 = vpack.c.bf16 %v3072, %v3064
      %v3153 = vpack.c.bf16 %v3073, %v3065
      %v3154 = vpack.c.bf16 %v3074, %v3066
      %v3155 = vpack.c.bf16 %v3075, %v3067
      %v3156 = vpack.c.bf16 %v3076, %v3068
      %v3157 = vpack.c.bf16 %v3085, %v3077
      %v3158 = vpack.c.bf16 %v3086, %v3078
      %v3159 = vpack.c.bf16 %v3087, %v3079
      %v3160 = vpack.c.bf16 %v3088, %v3080
      %v3161 = vpack.c.bf16 %v3089, %v3081
      %v3162 = vpack.c.bf16 %v3090, %v3082
      %v3163 = vpack.c.bf16 %v3091, %v3083
      %v3164 = vpack.c.bf16 %v3092, %v3084
      %v3165 = vpack.c.bf16 %v3101, %v3093
      %v3166 = vpack.c.bf16 %v3102, %v3094
      %v3167 = vpack.c.bf16 %v3103, %v3095
      %v3168 = vpack.c.bf16 %v3104, %v3096
      %v3169 = vpack.c.bf16 %v3105, %v3097
      %v3170 = vpack.c.bf16 %v3106, %v3098
      %v3171 = vpack.c.bf16 %v3107, %v3099
      %v3172 = vpack.c.bf16 %v3108, %v3100
      %v3173 = vld [vmem:[%s1] sm:$0xf]
      %v3174 = vld [vmem:[%s1 + $0x4] sm:$0xf]
      %v3175 = vld [vmem:[%s1 + $0x8] sm:$0xf]
      %v3176 = vld [vmem:[%s1 + $0xc] sm:$0xf]
      %v3177 = vld [vmem:[%s1 + $0x10] sm:$0xf]
      %v3178 = vld [vmem:[%s1 + $0x14] sm:$0xf]
      %v3179 = vld [vmem:[%s1 + $0x18] sm:$0xf]
      %v3180 = vld [vmem:[%s1 + $0x1c] sm:$0xf]
      %v3181 = vld [vmem:[%s1 + $0x20] sm:$0xf]
      %v3191 = vunpack.c.l.b16 %v3173
      %v3192 = vunpack.c.l.b16 %v3174
      %v3193 = vunpack.c.l.b16 %v3175
      %v3194 = vunpack.c.l.b16 %v3176
      %v3195 = vunpack.c.l.b16 %v3177
      %v3196 = vunpack.c.l.b16 %v3178
      %v3197 = vunpack.c.l.b16 %v3179
      %v3198 = vunpack.c.l.b16 %v3180
      %v3199 = vunpack.c.l.b16 %v3181
      %v3200 = vpack.c.b16 %v3192, %v3191
      %v3201 = vpack.c.b16 %v3194, %v3193
      %v3202 = vpack.c.b16 %v3196, %v3195
      %v3203 = vpack.c.b16 %v3198, %v3197
      %v3204 = vpack.c.b16 %v3199, %v3199
      %3210 = vmatprep.subr.bf16.mxu0 %v3166
      %3211 = vmatpush1.bf16.msra.mxu0 %v3165
      %3212 = vmatprep.subr.bf16.mxu0 %v3158
      %3213 = vmatpush1.bf16.msra.mxu0 %v3157
      %3214 = vmatprep.subr.bf16.mxu0 %v3150
      %3215 = vmatpush1.bf16.msra.mxu0 %v3149
      %3216 = vmatprep.subr.bf16.mxu0 %v3142
      %3217 = vmatpush1.bf16.msra.mxu0 %v3141
      %3218 = vmatprep.subr.bf16.mxu0 %v3134
      %3219 = vmatpush1.bf16.msra.mxu0 %v3133
      %3220 = vmatprep.subr.bf16.mxu0 %v3126
      %3221 = vmatpush1.bf16.msra.mxu0 %v3125
      %3222 = vmatprep.subr.bf16.mxu0 %v3118
      %3223 = vmatpush1.bf16.msra.mxu0 %v3117
      %3224 = vmatprep.subr.bf16.mxu0 %v3110
      %3225 = vmatpush1.bf16.msra.mxu0 %v3109
      %3226 = vmatprep.subr.bf16.mxu0 0
      %3227 = vmatpush2.bf16.msra.mxu0 0
      %3228 = vmatprep.subr.bf16.mxu0 0
      %3229 = vmatpush2.bf16.msra.mxu0 0
      %3230 = vmatprep.subr.bf16.mxu0 0
      %3231 = vmatpush2.bf16.msra.mxu0 0
      %3232 = vmatprep.subr.bf16.mxu0 0
      %3233 = vmatpush2.bf16.msra.mxu0 0
      %3234 = vmatprep.subr.bf16.mxu0 0
      %3235 = vmatpush2.bf16.msra.mxu0 0
      %3236 = vmatprep.subr.bf16.mxu0 0
      %3237 = vmatpush2.bf16.msra.mxu0 0
      %3238 = vmatprep.subr.bf16.mxu0 0
      %3239 = vmatpush2.bf16.msra.mxu0 0
      %3240 = vmatprep.subr.bf16.mxu0 0
      %3241 = vmatpush2.bf16.msra.mxu0 0
      %3242 = vmatprep.mubr.bf16.mxu0 0
      %3243 = vmatmul.mubr.bf16.gmra.mxu0 %v3200
      %v3244 = vpop.f32.mrf.mxu0
      %v3245 = vadd.f32 0.0, %v3244
      %v3246 = vpop.f32.mrf.mxu0
      %v3247 = vadd.f32 0.0, %v3246
      %v3248 = vpop.f32.mrf.mxu0
      %v3249 = vadd.f32 0.0, %v3248
      %v3250 = vpop.f32.mrf.mxu0
      %v3251 = vadd.f32 0.0, %v3250
      %3252 = vmatprep.mubr.bf16.mxu0 0
      %3253 = vmatmul.mubr.bf16.gmra.mxu0 %v3201
      %v3254 = vpop.f32.mrf.mxu0
      %v3255 = vadd.f32 0.0, %v3254
      %v3256 = vpop.f32.mrf.mxu0
      %v3257 = vadd.f32 0.0, %v3256
      %v3258 = vpop.f32.mrf.mxu0
      %v3259 = vadd.f32 0.0, %v3258
      %v3260 = vpop.f32.mrf.mxu0
      %v3261 = vadd.f32 0.0, %v3260
      %3262 = vmatprep.mubr.bf16.mxu0 0
      %3263 = vmatmul.mubr.bf16.gmra.mxu0 %v3202
      %v3264 = vpop.f32.mrf.mxu0
      %v3265 = vadd.f32 0.0, %v3264
      %v3266 = vpop.f32.mrf.mxu0
      %v3267 = vadd.f32 0.0, %v3266
      %v3268 = vpop.f32.mrf.mxu0
      %v3269 = vadd.f32 0.0, %v3268
      %v3270 = vpop.f32.mrf.mxu0
      %v3271 = vadd.f32 0.0, %v3270
      %3272 = vmatprep.mubr.bf16.mxu0 0
      %3273 = vmatmul.mubr.bf16.gmra.mxu0 %v3203
      %v3274 = vpop.f32.mrf.mxu0
      %v3275 = vadd.f32 0.0, %v3274
      %v3276 = vpop.f32.mrf.mxu0
      %v3277 = vadd.f32 0.0, %v3276
      %v3278 = vpop.f32.mrf.mxu0
      %v3279 = vadd.f32 0.0, %v3278
      %v3280 = vpop.f32.mrf.mxu0
      %v3281 = vadd.f32 0.0, %v3280
      %3282 = vmatprep.mubr.bf16.mxu0 0
      %3283 = vmatmul.mubr.bf16.gmra.mxu0 %v3204
      %v3284 = vpop.f32.mrf.mxu0
      %v3285 = vadd.f32 0.0, %v3284
      %v3286 = vpop.f32.mrf.mxu0
      %v3287 = vadd.f32 0.0, %v3286
      %v3288 = vpop.f32.mrf.mxu0
      %v3289 = vpop.f32.mrf.mxu0
      %3290 = vdwg.mxu0
      %3291 = vmatprep.subr.bf16.mxu0 %v3168
      %3292 = vmatpush1.bf16.msra.mxu0 %v3167
      %3293 = vmatprep.subr.bf16.mxu0 %v3160
      %3294 = vmatpush1.bf16.msra.mxu0 %v3159
      %3295 = vmatprep.subr.bf16.mxu0 %v3152
      %3296 = vmatpush1.bf16.msra.mxu0 %v3151
      %3297 = vmatprep.subr.bf16.mxu0 %v3144
      %3298 = vmatpush1.bf16.msra.mxu0 %v3143
      %3299 = vmatprep.subr.bf16.mxu0 %v3136
      %3300 = vmatpush1.bf16.msra.mxu0 %v3135
      %3301 = vmatprep.subr.bf16.mxu0 %v3128
      %3302 = vmatpush1.bf16.msra.mxu0 %v3127
      %3303 = vmatprep.subr.bf16.mxu0 %v3120
      %3304 = vmatpush1.bf16.msra.mxu0 %v3119
      %3305 = vmatprep.subr.bf16.mxu0 %v3112
      %3306 = vmatpush1.bf16.msra.mxu0 %v3111
      %3307 = vmatprep.subr.bf16.mxu0 0
      %3308 = vmatpush2.bf16.msra.mxu0 0
      %3309 = vmatprep.subr.bf16.mxu0 0
      %3310 = vmatpush2.bf16.msra.mxu0 0
      %3311 = vmatprep.subr.bf16.mxu0 0
      %3312 = vmatpush2.bf16.msra.mxu0 0
      %3313 = vmatprep.subr.bf16.mxu0 0
      %3314 = vmatpush2.bf16.msra.mxu0 0
      %3315 = vmatprep.subr.bf16.mxu0 0
      %3316 = vmatpush2.bf16.msra.mxu0 0
      %3317 = vmatprep.subr.bf16.mxu0 0
      %3318 = vmatpush2.bf16.msra.mxu0 0
      %3319 = vmatprep.subr.bf16.mxu0 0
      %3320 = vmatpush2.bf16.msra.mxu0 0
      %3321 = vmatprep.subr.bf16.mxu0 0
      %3322 = vmatpush2.bf16.msra.mxu0 0
      %3323 = vmatprep.mubr.bf16.mxu0 0
      %3324 = vmatmul.mubr.bf16.gmra.mxu0 %v3200
      %v3325 = vpop.f32.mrf.mxu0
      %v3326 = vadd.f32 0.0, %v3325
      %v3327 = vpop.f32.mrf.mxu0
      %v3328 = vadd.f32 0.0, %v3327
      %v3329 = vpop.f32.mrf.mxu0
      %v3330 = vadd.f32 0.0, %v3329
      %v3331 = vpop.f32.mrf.mxu0
      %v3332 = vadd.f32 0.0, %v3331
      %3333 = vmatprep.mubr.bf16.mxu0 0
      %3334 = vmatmul.mubr.bf16.gmra.mxu0 %v3201
      %v3335 = vpop.f32.mrf.mxu0
      %v3336 = vadd.f32 0.0, %v3335
      %v3337 = vpop.f32.mrf.mxu0
      %v3338 = vadd.f32 0.0, %v3337
      %v3339 = vpop.f32.mrf.mxu0
      %v3340 = vadd.f32 0.0, %v3339
      %v3341 = vpop.f32.mrf.mxu0
      %v3342 = vadd.f32 0.0, %v3341
      %3343 = vmatprep.mubr.bf16.mxu0 0
      %3344 = vmatmul.mubr.bf16.gmra.mxu0 %v3202
      %v3345 = vpop.f32.mrf.mxu0
      %v3346 = vadd.f32 0.0, %v3345
      %v3347 = vpop.f32.mrf.mxu0
      %v3348 = vadd.f32 0.0, %v3347
      %v3349 = vpop.f32.mrf.mxu0
      %v3350 = vadd.f32 0.0, %v3349
      %v3351 = vpop.f32.mrf.mxu0
      %v3352 = vadd.f32 0.0, %v3351
      %3353 = vmatprep.mubr.bf16.mxu0 0
      %3354 = vmatmul.mubr.bf16.gmra.mxu0 %v3203
      %v3355 = vpop.f32.mrf.mxu0
      %v3356 = vadd.f32 0.0, %v3355
      %v3357 = vpop.f32.mrf.mxu0
      %v3358 = vadd.f32 0.0, %v3357
      %v3359 = vpop.f32.mrf.mxu0
      %v3360 = vadd.f32 0.0, %v3359
      %v3361 = vpop.f32.mrf.mxu0
      %v3362 = vadd.f32 0.0, %v3361
      %3363 = vmatprep.mubr.bf16.mxu0 0
      %3364 = vmatmul.mubr.bf16.gmra.mxu0 %v3204
      %v3365 = vpop.f32.mrf.mxu0
      %v3366 = vadd.f32 0.0, %v3365
      %v3367 = vpop.f32.mrf.mxu0
      %v3368 = vadd.f32 0.0, %v3367
      %v3369 = vpop.f32.mrf.mxu0
      %v3370 = vpop.f32.mrf.mxu0
      %3371 = vdwg.mxu0
      %3372 = vmatprep.subr.bf16.mxu0 %v3170
      %3373 = vmatpush1.bf16.msra.mxu0 %v3169
      %3374 = vmatprep.subr.bf16.mxu0 %v3162
      %3375 = vmatpush1.bf16.msra.mxu0 %v3161
      %3376 = vmatprep.subr.bf16.mxu0 %v3154
      %3377 = vmatpush1.bf16.msra.mxu0 %v3153
      %3378 = vmatprep.subr.bf16.mxu0 %v3146
      %3379 = vmatpush1.bf16.msra.mxu0 %v3145
      %3380 = vmatprep.subr.bf16.mxu0 %v3138
      %3381 = vmatpush1.bf16.msra.mxu0 %v3137
      %3382 = vmatprep.subr.bf16.mxu0 %v3130
      %3383 = vmatpush1.bf16.msra.mxu0 %v3129
      %3384 = vmatprep.subr.bf16.mxu0 %v3122
      %3385 = vmatpush1.bf16.msra.mxu0 %v3121
      %3386 = vmatprep.subr.bf16.mxu0 %v3114
      %3387 = vmatpush1.bf16.msra.mxu0 %v3113
      %3388 = vmatprep.subr.bf16.mxu0 0
      %3389 = vmatpush2.bf16.msra.mxu0 0
      %3390 = vmatprep.subr.bf16.mxu0 0
      %3391 = vmatpush2.bf16.msra.mxu0 0
      %3392 = vmatprep.subr.bf16.mxu0 0
      %3393 = vmatpush2.bf16.msra.mxu0 0
      %3394 = vmatprep.subr.bf16.mxu0 0
      %3395 = vmatpush2.bf16.msra.mxu0 0
      %3396 = vmatprep.subr.bf16.mxu0 0
      %3397 = vmatpush2.bf16.msra.mxu0 0
      %3398 = vmatprep.subr.bf16.mxu0 0
      %3399 = vmatpush2.bf16.msra.mxu0 0
      %3400 = vmatprep.subr.bf16.mxu0 0
      %3401 = vmatpush2.bf16.msra.mxu0 0
      %3402 = vmatprep.subr.bf16.mxu0 0
      %3403 = vmatpush2.bf16.msra.mxu0 0
      %3404 = vmatprep.mubr.bf16.mxu0 0
      %3405 = vmatmul.mubr.bf16.gmra.mxu0 %v3200
      %v3406 = vpop.f32.mrf.mxu0
      %v3407 = vadd.f32 0.0, %v3406
      %v3408 = vpop.f32.mrf.mxu0
      %v3409 = vadd.f32 0.0, %v3408
      %v3410 = vpop.f32.mrf.mxu0
      %v3411 = vadd.f32 0.0, %v3410
      %v3412 = vpop.f32.mrf.mxu0
      %v3413 = vadd.f32 0.0, %v3412
      %3414 = vmatprep.mubr.bf16.mxu0 0
      %3415 = vmatmul.mubr.bf16.gmra.mxu0 %v3201
      %v3416 = vpop.f32.mrf.mxu0
      %v3417 = vadd.f32 0.0, %v3416
      %v3418 = vpop.f32.mrf.mxu0
      %v3419 = vadd.f32 0.0, %v3418
      %v3420 = vpop.f32.mrf.mxu0
      %v3421 = vadd.f32 0.0, %v3420
      %v3422 = vpop.f32.mrf.mxu0
      %v3423 = vadd.f32 0.0, %v3422
      %3424 = vmatprep.mubr.bf16.mxu0 0
      %3425 = vmatmul.mubr.bf16.gmra.mxu0 %v3202
      %v3426 = vpop.f32.mrf.mxu0
      %v3427 = vadd.f32 0.0, %v3426
      %v3428 = vpop.f32.mrf.mxu0
      %v3429 = vadd.f32 0.0, %v3428
      %v3430 = vpop.f32.mrf.mxu0
      %v3431 = vadd.f32 0.0, %v3430
      %v3432 = vpop.f32.mrf.mxu0
      %v3433 = vadd.f32 0.0, %v3432
      %3434 = vmatprep.mubr.bf16.mxu0 0
      %3435 = vmatmul.mubr.bf16.gmra.mxu0 %v3203
      %v3436 = vpop.f32.mrf.mxu0
      %v3437 = vadd.f32 0.0, %v3436
      %v3438 = vpop.f32.mrf.mxu0
      %v3439 = vadd.f32 0.0, %v3438
      %v3440 = vpop.f32.mrf.mxu0
      %v3441 = vadd.f32 0.0, %v3440
      %v3442 = vpop.f32.mrf.mxu0
      %v3443 = vadd.f32 0.0, %v3442
      %3444 = vmatprep.mubr.bf16.mxu0 0
      %3445 = vmatmul.mubr.bf16.gmra.mxu0 %v3204
      %v3446 = vpop.f32.mrf.mxu0
      %v3447 = vadd.f32 0.0, %v3446
      %v3448 = vpop.f32.mrf.mxu0
      %v3449 = vadd.f32 0.0, %v3448
      %v3450 = vpop.f32.mrf.mxu0
      %v3451 = vpop.f32.mrf.mxu0
      %3452 = vdwg.mxu0
      %3453 = vmatprep.subr.bf16.mxu0 %v3172
      %3454 = vmatpush1.bf16.msra.mxu0 %v3171
      %3455 = vmatprep.subr.bf16.mxu0 %v3164
      %3456 = vmatpush1.bf16.msra.mxu0 %v3163
      %3457 = vmatprep.subr.bf16.mxu0 %v3156
      %3458 = vmatpush1.bf16.msra.mxu0 %v3155
      %3459 = vmatprep.subr.bf16.mxu0 %v3148
      %3460 = vmatpush1.bf16.msra.mxu0 %v3147
      %3461 = vmatprep.subr.bf16.mxu0 %v3140
      %3462 = vmatpush1.bf16.msra.mxu0 %v3139
      %3463 = vmatprep.subr.bf16.mxu0 %v3132
      %3464 = vmatpush1.bf16.msra.mxu0 %v3131
      %3465 = vmatprep.subr.bf16.mxu0 %v3124
      %3466 = vmatpush1.bf16.msra.mxu0 %v3123
      %3467 = vmatprep.subr.bf16.mxu0 %v3116
      %3468 = vmatpush1.bf16.msra.mxu0 %v3115
      %3469 = vmatprep.subr.bf16.mxu0 0
      %3470 = vmatpush2.bf16.msra.mxu0 0
      %3471 = vmatprep.subr.bf16.mxu0 0
      %3472 = vmatpush2.bf16.msra.mxu0 0
      %3473 = vmatprep.subr.bf16.mxu0 0
      %3474 = vmatpush2.bf16.msra.mxu0 0
      %3475 = vmatprep.subr.bf16.mxu0 0
      %3476 = vmatpush2.bf16.msra.mxu0 0
      %3477 = vmatprep.subr.bf16.mxu0 0
      %3478 = vmatpush2.bf16.msra.mxu0 0
      %3479 = vmatprep.subr.bf16.mxu0 0
      %3480 = vmatpush2.bf16.msra.mxu0 0
      %3481 = vmatprep.subr.bf16.mxu0 0
      %3482 = vmatpush2.bf16.msra.mxu0 0
      %3483 = vmatprep.subr.bf16.mxu0 0
      %3484 = vmatpush2.bf16.msra.mxu0 0
      %3485 = vmatprep.mubr.bf16.mxu0 0
      %3486 = vmatmul.mubr.bf16.gmra.mxu0 %v3200
      %v3487 = vpop.f32.mrf.mxu0
      %v3488 = vadd.f32 0.0, %v3487
      %v3489 = vpop.f32.mrf.mxu0
      %v3490 = vadd.f32 0.0, %v3489
      %v3491 = vpop.f32.mrf.mxu0
      %v3492 = vadd.f32 0.0, %v3491
      %v3493 = vpop.f32.mrf.mxu0
      %v3494 = vadd.f32 0.0, %v3493
      %3495 = vmatprep.mubr.bf16.mxu0 0
      %3496 = vmatmul.mubr.bf16.gmra.mxu0 %v3201
      %v3497 = vpop.f32.mrf.mxu0
      %v3498 = vadd.f32 0.0, %v3497
      %v3499 = vpop.f32.mrf.mxu0
      %v3500 = vadd.f32 0.0, %v3499
      %v3501 = vpop.f32.mrf.mxu0
      %v3502 = vadd.f32 0.0, %v3501
      %v3503 = vpop.f32.mrf.mxu0
      %v3504 = vadd.f32 0.0, %v3503
      %3505 = vmatprep.mubr.bf16.mxu0 0
      %3506 = vmatmul.mubr.bf16.gmra.mxu0 %v3202
      %v3507 = vpop.f32.mrf.mxu0
      %v3508 = vadd.f32 0.0, %v3507
      %v3509 = vpop.f32.mrf.mxu0
      %v3510 = vadd.f32 0.0, %v3509
      %v3511 = vpop.f32.mrf.mxu0
      %v3512 = vadd.f32 0.0, %v3511
      %v3513 = vpop.f32.mrf.mxu0
      %v3514 = vadd.f32 0.0, %v3513
      %3515 = vmatprep.mubr.bf16.mxu0 0
      %3516 = vmatmul.mubr.bf16.gmra.mxu0 %v3203
      %v3517 = vpop.f32.mrf.mxu0
      %v3518 = vadd.f32 0.0, %v3517
      %v3519 = vpop.f32.mrf.mxu0
      %v3520 = vadd.f32 0.0, %v3519
      %v3521 = vpop.f32.mrf.mxu0
      %v3522 = vadd.f32 0.0, %v3521
      %v3523 = vpop.f32.mrf.mxu0
      %v3524 = vadd.f32 0.0, %v3523
      %3525 = vmatprep.mubr.bf16.mxu0 0
      %3526 = vmatmul.mubr.bf16.gmra.mxu0 %v3204
      %v3527 = vpop.f32.mrf.mxu0
      %v3528 = vadd.f32 0.0, %v3527
      %v3529 = vpop.f32.mrf.mxu0
      %v3530 = vadd.f32 0.0, %v3529
      %v3531 = vpop.f32.mrf.mxu0
      %v3532 = vpop.f32.mrf.mxu0
      %3533 = vdwg.mxu0
      %3542 = vrot.lane.b32.xlu0 %v3245, 33
      %v3543 = vpop.permute.xlu0 %3542
      %3544 = vrot.lane.b32.xlu0 %v3247, 33
      %v3545 = vpop.permute.xlu0 %3544
      %3546 = vrot.lane.b32.xlu0 %v3326, 33
      %v3547 = vpop.permute.xlu0 %3546
      %3548 = vrot.lane.b32.xlu0 %v3328, 33
      %v3549 = vpop.permute.xlu0 %3548
      %3550 = vrot.lane.b32.xlu0 %v3407, 33
      %v3551 = vpop.permute.xlu0 %3550
      %3552 = vrot.lane.b32.xlu0 %v3409, 33
      %v3553 = vpop.permute.xlu0 %3552
      %3554 = vrot.lane.b32.xlu0 %v3488, 33
      %v3555 = vpop.permute.xlu0 %3554
      %3556 = vrot.lane.b32.xlu0 %v3490, 33
      %v3557 = vpop.permute.xlu0 %3556
      %v3558 = vsel %vm1726, %v3543, %v3545
      %v3559 = vsel %vm1726, %v3545, %v3547
      %v3560 = vsel %vm1726, %v3547, %v3549
      %v3561 = vsel %vm1726, %v3549, %v3551
      %v3562 = vsel %vm1726, %v3551, %v3553
      %v3563 = vsel %vm1726, %v3553, %v3555
      %v3564 = vsel %vm1726, %v3555, %v3557
      %v3573 = vsel %vm1726, 0.0, %v3543
      %v3574 = vmul.f32 %v3573, %v325
      %v3575 = vmul.f32 %v3558, %v326
      %v3576 = vmul.f32 %v3559, %v327
      %v3577 = vmul.f32 %v3560, %v328
      %v3578 = vmul.f32 %v3561, %v329
      %v3579 = vmul.f32 %v3562, %v330
      %v3580 = vmul.f32 %v3563, %v331
      %v3581 = vmul.f32 %v3564, %v332
      %v3582 = vadd.f32 %v3574, 0.0
      %v3583 = vadd.f32 %v3575, 0.0
      %v3584 = vadd.f32 %v3576, 0.0
      %v3585 = vadd.f32 %v3577, 0.0
      %v3586 = vadd.f32 %v3578, 0.0
      %v3587 = vadd.f32 %v3579, 0.0
      %v3588 = vadd.f32 %v3580, 0.0
      %v3589 = vadd.f32 %v3581, 0.0
      %3598 = vrot.lane.b32.xlu0 %v3249, 32
      %v3599 = vpop.permute.xlu0 %3598
      %3600 = vrot.lane.b32.xlu0 %v3251, 32
      %v3601 = vpop.permute.xlu0 %3600
      %3602 = vrot.lane.b32.xlu0 %v3330, 32
      %v3603 = vpop.permute.xlu0 %3602
      %3604 = vrot.lane.b32.xlu0 %v3332, 32
      %v3605 = vpop.permute.xlu0 %3604
      %3606 = vrot.lane.b32.xlu0 %v3411, 32
      %v3607 = vpop.permute.xlu0 %3606
      %3608 = vrot.lane.b32.xlu0 %v3413, 32
      %v3609 = vpop.permute.xlu0 %3608
      %3610 = vrot.lane.b32.xlu0 %v3492, 32
      %v3611 = vpop.permute.xlu0 %3610
      %3612 = vrot.lane.b32.xlu0 %v3494, 32
      %v3613 = vpop.permute.xlu0 %3612
      %v3614 = vsel %vm1783, %v3599, %v3601
      %v3615 = vsel %vm1783, %v3601, %v3603
      %v3616 = vsel %vm1783, %v3603, %v3605
      %v3617 = vsel %vm1783, %v3605, %v3607
      %v3618 = vsel %vm1783, %v3607, %v3609
      %v3619 = vsel %vm1783, %v3609, %v3611
      %v3620 = vsel %vm1783, %v3611, %v3613
      %v3629 = vsel %vm1783, 0.0, %v3599
      %v3630 = vadd.f32 %v3582, %v3629
      %v3631 = vadd.f32 %v3583, %v3614
      %v3632 = vadd.f32 %v3584, %v3615
      %v3633 = vadd.f32 %v3585, %v3616
      %v3634 = vadd.f32 %v3586, %v3617
      %v3635 = vadd.f32 %v3587, %v3618
      %v3636 = vadd.f32 %v3588, %v3619
      %v3637 = vadd.f32 %v3589, %v3620
      %3646 = vrot.lane.b32.xlu0 %v3255, 31
      %v3647 = vpop.permute.xlu0 %3646
      %3648 = vrot.lane.b32.xlu0 %v3257, 31
      %v3649 = vpop.permute.xlu0 %3648
      %3650 = vrot.lane.b32.xlu0 %v3336, 31
      %v3651 = vpop.permute.xlu0 %3650
      %3652 = vrot.lane.b32.xlu0 %v3338, 31
      %v3653 = vpop.permute.xlu0 %3652
      %3654 = vrot.lane.b32.xlu0 %v3417, 31
      %v3655 = vpop.permute.xlu0 %3654
      %3656 = vrot.lane.b32.xlu0 %v3419, 31
      %v3657 = vpop.permute.xlu0 %3656
      %3658 = vrot.lane.b32.xlu0 %v3498, 31
      %v3659 = vpop.permute.xlu0 %3658
      %3660 = vrot.lane.b32.xlu0 %v3500, 31
      %v3661 = vpop.permute.xlu0 %3660
      %v3662 = vsel %vm1832, %v3647, %v3649
      %v3663 = vsel %vm1832, %v3649, %v3651
      %v3664 = vsel %vm1832, %v3651, %v3653
      %v3665 = vsel %vm1832, %v3653, %v3655
      %v3666 = vsel %vm1832, %v3655, %v3657
      %v3667 = vsel %vm1832, %v3657, %v3659
      %v3668 = vsel %vm1832, %v3659, %v3661
      %v3677 = vsel %vm1832, 0.0, %v3647
      %v3678 = vmul.f32 %v3677, %v373
      %v3679 = vmul.f32 %v3662, %v374
      %v3680 = vmul.f32 %v3663, %v375
      %v3681 = vmul.f32 %v3664, %v376
      %v3682 = vmul.f32 %v3665, %v377
      %v3683 = vmul.f32 %v3666, %v378
      %v3684 = vmul.f32 %v3667, %v379
      %v3685 = vmul.f32 %v3668, %v380
      %v3686 = vadd.f32 %v3630, %v3678
      %v3687 = vadd.f32 %v3631, %v3679
      %v3688 = vadd.f32 %v3632, %v3680
      %v3689 = vadd.f32 %v3633, %v3681
      %v3690 = vadd.f32 %v3634, %v3682
      %v3691 = vadd.f32 %v3635, %v3683
      %v3692 = vadd.f32 %v3636, %v3684
      %v3693 = vadd.f32 %v3637, %v3685
      %3702 = vrot.lane.b32.xlu0 %v3259, 1
      %v3703 = vpop.permute.xlu0 %3702
      %3704 = vrot.lane.b32.xlu0 %v3261, 1
      %v3705 = vpop.permute.xlu0 %3704
      %3706 = vrot.lane.b32.xlu0 %v3340, 1
      %v3707 = vpop.permute.xlu0 %3706
      %3708 = vrot.lane.b32.xlu0 %v3342, 1
      %v3709 = vpop.permute.xlu0 %3708
      %3710 = vrot.lane.b32.xlu0 %v3421, 1
      %v3711 = vpop.permute.xlu0 %3710
      %3712 = vrot.lane.b32.xlu0 %v3423, 1
      %v3713 = vpop.permute.xlu0 %3712
      %3714 = vrot.lane.b32.xlu0 %v3502, 1
      %v3715 = vpop.permute.xlu0 %3714
      %3716 = vrot.lane.b32.xlu0 %v3504, 1
      %v3717 = vpop.permute.xlu0 %3716
      %v3718 = vsel %vm1889, %v3703, %v3705
      %v3719 = vsel %vm1889, %v3705, %v3707
      %v3720 = vsel %vm1889, %v3707, %v3709
      %v3721 = vsel %vm1889, %v3709, %v3711
      %v3722 = vsel %vm1889, %v3711, %v3713
      %v3723 = vsel %vm1889, %v3713, %v3715
      %v3724 = vsel %vm1889, %v3715, %v3717
      %v3733 = vsel %vm1889, 0.0, %v3703
      %v3734 = vmul.f32 %v3733, %v325
      %v3735 = vmul.f32 %v3718, %v326
      %v3736 = vmul.f32 %v3719, %v327
      %v3737 = vmul.f32 %v3720, %v328
      %v3738 = vmul.f32 %v3721, %v329
      %v3739 = vmul.f32 %v3722, %v330
      %v3740 = vmul.f32 %v3723, %v331
      %v3741 = vmul.f32 %v3724, %v332
      %v3742 = vadd.f32 %v3686, %v3734
      %v3743 = vadd.f32 %v3687, %v3735
      %v3744 = vadd.f32 %v3688, %v3736
      %v3745 = vadd.f32 %v3689, %v3737
      %v3746 = vadd.f32 %v3690, %v3738
      %v3747 = vadd.f32 %v3691, %v3739
      %v3748 = vadd.f32 %v3692, %v3740
      %v3749 = vadd.f32 %v3693, %v3741
      %v3750 = vadd.f32 %v3742, %v3265
      %v3751 = vadd.f32 %v3743, %v3267
      %v3752 = vadd.f32 %v3744, %v3346
      %v3753 = vadd.f32 %v3745, %v3348
      %v3754 = vadd.f32 %v3746, %v3427
      %v3755 = vadd.f32 %v3747, %v3429
      %v3756 = vadd.f32 %v3748, %v3508
      %v3757 = vadd.f32 %v3749, %v3510
      %3766 = vrot.lane.b32.xlu0 %v3269, 127
      %v3767 = vpop.permute.xlu0 %3766
      %3768 = vrot.lane.b32.xlu0 %v3271, 127
      %v3769 = vpop.permute.xlu0 %3768
      %3770 = vrot.lane.b32.xlu0 %v3350, 127
      %v3771 = vpop.permute.xlu0 %3770
      %3772 = vrot.lane.b32.xlu0 %v3352, 127
      %v3773 = vpop.permute.xlu0 %3772
      %3774 = vrot.lane.b32.xlu0 %v3431, 127
      %v3775 = vpop.permute.xlu0 %3774
      %3776 = vrot.lane.b32.xlu0 %v3433, 127
      %v3777 = vpop.permute.xlu0 %3776
      %3778 = vrot.lane.b32.xlu0 %v3512, 127
      %v3779 = vpop.permute.xlu0 %3778
      %3780 = vrot.lane.b32.xlu0 %v3514, 127
      %v3781 = vpop.permute.xlu0 %3780
      %v3782 = vsel %vm1954, %v3767, %v3769
      %v3783 = vsel %vm1954, %v3769, %v3771
      %v3784 = vsel %vm1954, %v3771, %v3773
      %v3785 = vsel %vm1954, %v3773, %v3775
      %v3786 = vsel %vm1954, %v3775, %v3777
      %v3787 = vsel %vm1954, %v3777, %v3779
      %v3788 = vsel %vm1954, %v3779, %v3781
      %v3797 = vsel %vm1954, %v3781, 0.0
      %v3798 = vmul.f32 %v3782, %v373
      %v3799 = vmul.f32 %v3783, %v374
      %v3800 = vmul.f32 %v3784, %v375
      %v3801 = vmul.f32 %v3785, %v376
      %v3802 = vmul.f32 %v3786, %v377
      %v3803 = vmul.f32 %v3787, %v378
      %v3804 = vmul.f32 %v3788, %v379
      %v3805 = vmul.f32 %v3797, %v380
      %v3806 = vadd.f32 %v3750, %v3798
      %v3807 = vadd.f32 %v3751, %v3799
      %v3808 = vadd.f32 %v3752, %v3800
      %v3809 = vadd.f32 %v3753, %v3801
      %v3810 = vadd.f32 %v3754, %v3802
      %v3811 = vadd.f32 %v3755, %v3803
      %v3812 = vadd.f32 %v3756, %v3804
      %v3813 = vadd.f32 %v3757, %v3805
      %3822 = vrot.lane.b32.xlu0 %v3275, 97
      %v3823 = vpop.permute.xlu0 %3822
      %3824 = vrot.lane.b32.xlu0 %v3277, 97
      %v3825 = vpop.permute.xlu0 %3824
      %3826 = vrot.lane.b32.xlu0 %v3356, 97
      %v3827 = vpop.permute.xlu0 %3826
      %3828 = vrot.lane.b32.xlu0 %v3358, 97
      %v3829 = vpop.permute.xlu0 %3828
      %3830 = vrot.lane.b32.xlu0 %v3437, 97
      %v3831 = vpop.permute.xlu0 %3830
      %3832 = vrot.lane.b32.xlu0 %v3439, 97
      %v3833 = vpop.permute.xlu0 %3832
      %3834 = vrot.lane.b32.xlu0 %v3518, 97
      %v3835 = vpop.permute.xlu0 %3834
      %3836 = vrot.lane.b32.xlu0 %v3520, 97
      %v3837 = vpop.permute.xlu0 %3836
      %v3838 = vsel %vm2011, %v3823, %v3825
      %v3839 = vsel %vm2011, %v3825, %v3827
      %v3840 = vsel %vm2011, %v3827, %v3829
      %v3841 = vsel %vm2011, %v3829, %v3831
      %v3842 = vsel %vm2011, %v3831, %v3833
      %v3843 = vsel %vm2011, %v3833, %v3835
      %v3844 = vsel %vm2011, %v3835, %v3837
      %v3853 = vsel %vm2011, %v3837, 0.0
      %v3854 = vmul.f32 %v3838, %v325
      %v3855 = vmul.f32 %v3839, %v326
      %v3856 = vmul.f32 %v3840, %v327
      %v3857 = vmul.f32 %v3841, %v328
      %v3858 = vmul.f32 %v3842, %v329
      %v3859 = vmul.f32 %v3843, %v330
      %v3860 = vmul.f32 %v3844, %v331
      %v3861 = vmul.f32 %v3853, %v332
      %v3862 = vadd.f32 %v3806, %v3854
      %v3863 = vadd.f32 %v3807, %v3855
      %v3864 = vadd.f32 %v3808, %v3856
      %v3865 = vadd.f32 %v3809, %v3857
      %v3866 = vadd.f32 %v3810, %v3858
      %v3867 = vadd.f32 %v3811, %v3859
      %v3868 = vadd.f32 %v3812, %v3860
      %v3869 = vadd.f32 %v3813, %v3861
      %3878 = vrot.lane.b32.xlu0 %v3279, 96
      %v3879 = vpop.permute.xlu0 %3878
      %3880 = vrot.lane.b32.xlu0 %v3281, 96
      %v3881 = vpop.permute.xlu0 %3880
      %3882 = vrot.lane.b32.xlu0 %v3360, 96
      %v3883 = vpop.permute.xlu0 %3882
      %3884 = vrot.lane.b32.xlu0 %v3362, 96
      %v3885 = vpop.permute.xlu0 %3884
      %3886 = vrot.lane.b32.xlu0 %v3441, 96
      %v3887 = vpop.permute.xlu0 %3886
      %3888 = vrot.lane.b32.xlu0 %v3443, 96
      %v3889 = vpop.permute.xlu0 %3888
      %3890 = vrot.lane.b32.xlu0 %v3522, 96
      %v3891 = vpop.permute.xlu0 %3890
      %3892 = vrot.lane.b32.xlu0 %v3524, 96
      %v3893 = vpop.permute.xlu0 %3892
      %v3894 = vsel %vm2068, %v3879, %v3881
      %v3895 = vsel %vm2068, %v3881, %v3883
      %v3896 = vsel %vm2068, %v3883, %v3885
      %v3897 = vsel %vm2068, %v3885, %v3887
      %v3898 = vsel %vm2068, %v3887, %v3889
      %v3899 = vsel %vm2068, %v3889, %v3891
      %v3900 = vsel %vm2068, %v3891, %v3893
      %v3909 = vsel %vm2068, %v3893, 0.0
      %v3910 = vadd.f32 %v3862, %v3894
      %v3911 = vadd.f32 %v3863, %v3895
      %v3912 = vadd.f32 %v3864, %v3896
      %v3913 = vadd.f32 %v3865, %v3897
      %v3914 = vadd.f32 %v3866, %v3898
      %v3915 = vadd.f32 %v3867, %v3899
      %v3916 = vadd.f32 %v3868, %v3900
      %v3917 = vadd.f32 %v3869, %v3909
      %3926 = vrot.lane.b32.xlu0 %v3285, 95
      %v3927 = vpop.permute.xlu0 %3926
      %3928 = vrot.lane.b32.xlu0 %v3287, 95
      %v3929 = vpop.permute.xlu0 %3928
      %3930 = vrot.lane.b32.xlu0 %v3366, 95
      %v3931 = vpop.permute.xlu0 %3930
      %3932 = vrot.lane.b32.xlu0 %v3368, 95
      %v3933 = vpop.permute.xlu0 %3932
      %3934 = vrot.lane.b32.xlu0 %v3447, 95
      %v3935 = vpop.permute.xlu0 %3934
      %3936 = vrot.lane.b32.xlu0 %v3449, 95
      %v3937 = vpop.permute.xlu0 %3936
      %3938 = vrot.lane.b32.xlu0 %v3528, 95
      %v3939 = vpop.permute.xlu0 %3938
      %3940 = vrot.lane.b32.xlu0 %v3530, 95
      %v3941 = vpop.permute.xlu0 %3940
      %v3942 = vsel %vm2117, %v3927, %v3929
      %v3943 = vsel %vm2117, %v3929, %v3931
      %v3944 = vsel %vm2117, %v3931, %v3933
      %v3945 = vsel %vm2117, %v3933, %v3935
      %v3946 = vsel %vm2117, %v3935, %v3937
      %v3947 = vsel %vm2117, %v3937, %v3939
      %v3948 = vsel %vm2117, %v3939, %v3941
      %v3957 = vsel %vm2117, %v3941, 0.0
      %v3958 = vmul.f32 %v3942, %v373
      %v3959 = vmul.f32 %v3943, %v374
      %v3960 = vmul.f32 %v3944, %v375
      %v3961 = vmul.f32 %v3945, %v376
      %v3962 = vmul.f32 %v3946, %v377
      %v3963 = vmul.f32 %v3947, %v378
      %v3964 = vmul.f32 %v3948, %v379
      %v3965 = vmul.f32 %v3957, %v380
      %v3966 = vadd.f32 %v3910, %v3958
      %v3967 = vadd.f32 %v3911, %v3959
      %v3968 = vadd.f32 %v3912, %v3960
      %v3969 = vadd.f32 %v3913, %v3961
      %v3970 = vadd.f32 %v3914, %v3962
      %v3971 = vadd.f32 %v3915, %v3963
      %v3972 = vadd.f32 %v3916, %v3964
      %v3973 = vadd.f32 %v3917, %v3965
      %v3974 = vld [vmem:[%s2] sm:$0xff]
      %3976 = vset.pattern.permute.xlu0 0
      %3977 = vperm.xlu0 %3976, %v3974
      %v3978 = vpop.permute.xlu0 %3977
      %v3980 = vadd.f32 %v3966, %v3978
      %v3981 = vadd.f32 %v3967, %v3978
      %v3982 = vadd.f32 %v3968, %v3978
      %v3983 = vadd.f32 %v3969, %v3978
      %v3984 = vadd.f32 %v3970, %v3978
      %v3985 = vadd.f32 %v3971, %v3978
      %v3986 = vadd.f32 %v3972, %v3978
      %v3987 = vadd.f32 %v3973, %v3978
      %v3988 = vmax.f32 %v3980, 0.0
      %v3989 = vmax.f32 %v3981, 0.0
      %v3990 = vmax.f32 %v3982, 0.0
      %v3991 = vmax.f32 %v3983, 0.0
      %v3992 = vmax.f32 %v3984, 0.0
      %v3993 = vmax.f32 %v3985, 0.0
      %v3994 = vmax.f32 %v3986, 0.0
      %v3995 = vmax.f32 %v3987, 0.0
      %vm3996 = vcmp.ne.f32.partialorder %v3988, %v3988
      %vm3997 = vcmp.ne.f32.partialorder %v3989, %v3989
      %vm3998 = vcmp.ne.f32.partialorder %v3990, %v3990
      %vm3999 = vcmp.ne.f32.partialorder %v3991, %v3991
      %vm4000 = vcmp.ne.f32.partialorder %v3992, %v3992
      %vm4001 = vcmp.ne.f32.partialorder %v3993, %v3993
      %vm4002 = vcmp.ne.f32.partialorder %v3994, %v3994
      %vm4003 = vcmp.ne.f32.partialorder %v3995, %v3995
      %v4004 = vsel %vm3996, 0.0, %v3988
      %v4005 = vsel %vm3997, 0.0, %v3989
      %v4006 = vsel %vm3998, 0.0, %v3990
      %v4007 = vsel %vm3999, 0.0, %v3991
      %v4008 = vsel %vm4000, 0.0, %v3992
      %v4009 = vsel %vm4001, 0.0, %v3993
      %v4010 = vsel %vm4002, 0.0, %v3994
      %v4011 = vsel %vm4003, 0.0, %v3995
      %vm4012 = vcmp.eq.f32.partialorder %v4004, inf
      %vm4013 = vcmp.eq.f32.partialorder %v4005, inf
      %vm4014 = vcmp.eq.f32.partialorder %v4006, inf
      %vm4015 = vcmp.eq.f32.partialorder %v4007, inf
      %vm4016 = vcmp.eq.f32.partialorder %v4008, inf
      %vm4017 = vcmp.eq.f32.partialorder %v4009, inf
      %vm4018 = vcmp.eq.f32.partialorder %v4010, inf
      %vm4019 = vcmp.eq.f32.partialorder %v4011, inf
      %v4020 = vsel %vm4012, 1000.0, %v4004
      %v4021 = vsel %vm4013, 1000.0, %v4005
      %v4022 = vsel %vm4014, 1000.0, %v4006
      %v4023 = vsel %vm4015, 1000.0, %v4007
      %v4024 = vsel %vm4016, 1000.0, %v4008
      %v4025 = vsel %vm4017, 1000.0, %v4009
      %v4026 = vsel %vm4018, 1000.0, %v4010
      %v4027 = vsel %vm4019, 1000.0, %v4011
      %s4028 = scalar_lea.vmem %s177, 64
      %4029 = vst [vmem:[%s4028] sm:$0x3f] %v4020
      %4030 = vst [vmem:[%s4028 + $0x8] sm:$0x3f] %v4021
      %4031 = vst [vmem:[%s4028 + $0x10] sm:$0x3f] %v4022
      %4032 = vst [vmem:[%s4028 + $0x18] sm:$0x3f] %v4023
      %4033 = vst [vmem:[%s4028 + $0x20] sm:$0x3f] %v4024
      %4034 = vst [vmem:[%s4028 + $0x28] sm:$0x3f] %v4025
      %4035 = vst [vmem:[%s4028 + $0x30] sm:$0x3f] %v4026
      %4036 = vst [vmem:[%s4028 + $0x38] sm:$0x3f] %v4027
      %s4037 = smul.u32 2, %s14
      %p4038 = scmp.lt.s32.totalorder %s4037, 3
      %s4039 = scalar_select %p4038, %s4037, 3
      %s4040 = smul.addr %s4039, 8
      %s4041 = smul.addr %s4040, 8
      %s4042 = scalar_lea.vmem %s3, %s4041
      // Predicated region
      $region33: #{bev_seg_head_forward.1} parent=31 // pred_check
        %p4043 = pneg %p100
      $region34: #{bev_seg_head_forward.1} parent=31 // pred_check_branch
        %4045 = sbr.rel (%p4043) target = $region36
      $region35: #{bev_seg_head_forward.1} parent=31 // pred_region
        %s4046 = smul.u32 2, %s14
      $region36: #{bev_seg_head_forward.1} parent=31 // pred_fallthru
        _
    $region32: #{bev_seg_head_forward.1} parent=5 // pred_fallthru
      _
    %p4047 = scmp.le.s32.totalorder 2, %s9
    // Predicated region
    $region37: #{bev_seg_head_forward.1} parent=5 // pred_check
      %p4048 = pneg %p4047
    $region38: #{bev_seg_head_forward.1} parent=5 // pred_check_branch
      %4050 = sbr.rel (%p4048) target = $region40
    $region39: #{bev_seg_head_forward.1} parent=5 // pred_region
      %s4051 = ssub.s32 %s9, 2
      // Predicated region
      $region41: #{bev_seg_head_forward.1} parent=39 // pred_check
        %p4052 = pneg %p106
      $region42: #{bev_seg_head_forward.1} parent=39 // pred_check_branch
        %4054 = sbr.rel (%p4052) target = $region44
      $region43: #{bev_seg_head_forward.1} parent=39 // pred_region
        %s4055 = smul.u32 2, %s15
        %p4056 = scmp.lt.s32.totalorder %s4055, 3
        %s4057 = scalar_select %p4056, %s4055, 3
        %s4058 = smul.addr %s4057, 8
        %s4059 = smul.addr %s4058, 8
        %s4060 = scalar_lea.vmem %s3, %s4059
      $region44: #{bev_seg_head_forward.1} parent=39 // pred_fallthru
        _
    $region40: #{bev_seg_head_forward.1} parent=5 // pred_fallthru
      _
  $region6: #{bev_seg_head_forward.1} parent=0 // loop_footer
    %s13 = sadd.s32 1, %s9
  $region7: #{bev_seg_head_forward.1} parent=0 // loop_footer_branch
    %8 = sbr.rel target = $region3
  $region8: #{bev_seg_head_forward.1} parent=0 // loop_exit
    _

</llo_original>
